<compile_context>
chip_gen: v7x
topology: tpu7x:2x2x1
jax: 0.10.0
libtpu: 0.0.40
codegen_flags: <defaults>
</compile_context>

<pallas_src>
import functools

import jax
import jax.numpy as jnp
import numpy as np
from jax.experimental import pallas as pl
from jax.experimental.pallas import tpu as pltpu

_LANE = 128
_K_GRANULE = 16  # bf16 sublane packing granule


def _convbr_kernel(x_ref, w_ref, shift_ref, o_ref, *,
                   stride, dilation, ksize_h, ksize_w, cin, tile_h, wo, k_pad):
    """One (batch n, output-row-tile r) grid step.

    x_ref:     (1, Hp, Wp*Cin)    bf16 lane-dense merged image, resident across r
    w_ref:     (Kdim_p, Cout_p)   bf16 im2col-flattened weights, BN scale folded in
    shift_ref: (1, Cout_p)        f32  folded BN shift
    o_ref:     (1, TH*Wo, Cout_p) bf16 lane-dense output tile
    """
    r = pl.program_id(1)
    th_in = (tile_h - 1) * stride + (ksize_h - 1) * dilation + 1
    h0 = pl.multiple_of(r * (tile_h * stride), tile_h * stride)
    x_rows = x_ref[0, pl.ds(h0, th_in), :]            # (th_in, Wp*Cin) bf16
    wpc = x_rows.shape[1]

    # im2col: with the merged Wp*Cin layout and stride==1 every (kh,kw) tap is a
    # single contiguous lane slice; taps concatenate (kh,kw major, ci minor) to
    # match the weight row order, then ONE MXU matmul per tile.
    taps = []
    for i in range(ksize_h):
        r0 = i * dilation
        if stride == 1:
            rows = jax.lax.slice(x_rows, (r0, 0), (r0 + tile_h, wpc))
        else:
            rows = jax.lax.slice(
                x_rows, (r0, 0),
                (r0 + (tile_h - 1) * stride + 1, wpc), (stride, 1))
        for j in range(ksize_w):
            c0 = j * dilation * cin
            if stride == 1:
                t = jax.lax.slice(rows, (0, c0), (tile_h, c0 + wo * cin))
                taps.append(t.reshape(tile_h, wo, cin))
            else:
                span = (wo - 1) * stride + 1
                t = jax.lax.slice(rows, (0, c0), (tile_h, c0 + span * cin))
                t = t.reshape(tile_h, span, cin)
                taps.append(jax.lax.slice(t, (0, 0, 0), (tile_h, span, cin),
                                          (1, stride, 1)))
    if k_pad:
        # Zero tap block so the contraction dim is a clean multiple of 16.
        taps.append(jnp.zeros((tile_h, wo, k_pad), dtype=x_rows.dtype))
    kdim_p = ksize_h * ksize_w * cin + k_pad
    patches = jnp.concatenate(taps, axis=-1).reshape(tile_h * wo, kdim_p)

    acc = jnp.dot(patches, w_ref[...], preferred_element_type=jnp.float32)
    # BN scale already folded into w; epilogue is shift + ReLU, then bf16 store.
    y = jnp.maximum(acc + shift_ref[0], 0.0)
    o_ref[0] = y.astype(o_ref.dtype)


def _pick_row_tile(ho, wo, cout_p, kdim_p):
    """Output-row tile TH.  Prefer TH*Wo to be a multiple of 256 (fills the
    v6e/v7x 2x256x256 MXU M dim; also a multiple of 128 for v5e's 128x128 MXU),
    falling back to 128 / 8, while capping the per-tile working set (bf16 out +
    f32 acc + bf16 patches) so it fits comfortably in v7x's 32 MiB default
    scoped VMEM."""
    per_pixel = 2 * cout_p + 4 * cout_p + 2 * kdim_p
    budget = 6 << 20
    cap = min(ho, max(1, (budget // per_pixel) // max(wo, 1)))
    for align in (256, 128, 8):
        for th in range(cap, 0, -1):
            if ho % th == 0 and (th * wo) % align == 0:
                return th
    return ho  # whole image: block dim == full array dim is always legal


def _single_buffered(block_shape, index_map):
    """BlockSpec for a grid-invariant operand: single-buffered when the
    pipeline_mode API is available (the default second buffer is pure VMEM
    waste for blocks that never change across the grid)."""
    if hasattr(pl, "Buffered"):
        try:
            return pl.BlockSpec(block_shape, index_map,
                                pipeline_mode=pl.Buffered(1))
        except Exception:  # older BlockSpec signature: fall back to default.
            pass
    return pl.BlockSpec(block_shape, index_map)


def convbr_forward(x_nchw, weight_oihw, gamma, beta, running_mean, running_var,
                   *, stride=1, padding=0, dilation=1, eps=1e-5):
    """ConvBR forward. x_nchw: (N, Cin, H, W) f32. Returns (N, Cout, Ho, Wo) f32."""
    N, Cin, H, W = x_nchw.shape
    Cout, _, KH, KW = weight_oihw.shape

    # Glue: NCHW -> NHWC, spatial zero-pad, merge (Wp, Cin) -> lane-dense Wp*Cin.
    x_nhwc = jnp.transpose(x_nchw, (0, 2, 3, 1))
    x_pad = jnp.pad(x_nhwc, ((0, 0), (padding, padding), (padding, padding), (0, 0)))
    Hp, Wp = H + 2 * padding, W + 2 * padding
    Ho = (Hp - dilation * (KH - 1) - 1) // stride + 1
    Wo = (Wp - dilation * (KW - 1) - 1) // stride + 1
    x_merged = x_pad.reshape(N, Hp, Wp * Cin).astype(jnp.bfloat16)

    Cout_p = ((Cout + _LANE - 1) // _LANE) * _LANE
    Kdim = KH * KW * Cin
    Kdim_p = ((Kdim + _K_GRANULE - 1) // _K_GRANULE) * _K_GRANULE
    k_pad = Kdim_p - Kdim

    # Fold BN (inference stats): scale goes into the weights, shift is the
    # epilogue add.
    inv_std = 1.0 / jnp.sqrt(running_var.astype(jnp.float32) + eps)
    scale = gamma.astype(jnp.float32) * inv_std                       # (Cout,)
    shift = beta.astype(jnp.float32) - running_mean.astype(jnp.float32) * scale

    # Weight: (O,I,KH,KW) -> (KH,KW,I,O) -> (Kdim, Cout); scale-fold in f32;
    # zero-pad Kdim->16-multiple and Cout->128-multiple; bf16 MXU operand.
    w = jnp.transpose(weight_oihw.astype(jnp.float32), (2, 3, 1, 0)).reshape(Kdim, Cout)
    w = w * scale[None, :]
    w = jnp.pad(w, ((0, k_pad), (0, Cout_p - Cout))).astype(jnp.bfloat16)
    shift_p = jnp.pad(shift, (0, Cout_p - Cout)).reshape(1, Cout_p)

    TH = _pick_row_tile(Ho, Wo, Cout_p, Kdim_p)
    n_row_tiles = Ho // TH

    kernel = functools.partial(
        _convbr_kernel, stride=stride, dilation=dilation,
        ksize_h=KH, ksize_w=KW, cin=Cin, tile_h=TH, wo=Wo, k_pad=k_pad)

    # VMEM budget from the actual block footprints (+2x headroom) and a cost hint.
    footprint = (2 * Hp * Wp * Cin * 2            # double-buffered resident image (bf16)
                 + Kdim_p * Cout_p * 2            # single-buffered weight (bf16)
                 + Cout_p * 4                     # shift (f32)
                 + 2 * TH * Wo * Cout_p * 2       # double-buffered output tile (bf16)
                 + TH * Wo * (Kdim_p * 2 + Cout_p * 4))  # patches + f32 acc
    vmem_limit = int(min(64 << 20, max(32 << 20, 2 * footprint)))
    cost = pl.CostEstimate(
        flops=2 * N * Ho * Wo * Cout * Kdim,
        transcendentals=0,
        bytes_accessed=int(N * Hp * Wp * Cin * 2 + Kdim_p * Cout_p * 2
                           + Cout_p * 4 + N * Ho * Wo * Cout_p * 2))

    out_flat = pl.pallas_call(
        kernel,
        out_shape=jax.ShapeDtypeStruct((N, Ho * Wo, Cout_p), jnp.bfloat16),
        grid_spec=pltpu.PrefetchScalarGridSpec(
            num_scalar_prefetch=0,
            grid=(N, n_row_tiles),
            in_specs=[
                # Whole lane-dense image, indexed only by n -> stays resident in
                # VMEM across the row tiles of the same batch element.
                pl.BlockSpec((1, Hp, Wp * Cin), lambda n, r: (n, 0, 0)),
                _single_buffered((Kdim_p, Cout_p), lambda n, r: (0, 0)),
                _single_buffered((1, Cout_p), lambda n, r: (0, 0)),
            ],
            out_specs=pl.BlockSpec((1, TH * Wo, Cout_p), lambda n, r: (n, r, 0)),
        ),
        compiler_params=pltpu.CompilerParams(
            dimension_semantics=("parallel", "parallel"),
            vmem_limit_bytes=vmem_limit),
        cost_estimate=cost,
    )(x_merged, w, shift_p)

    # Glue: drop Cout padding, un-flatten spatial, NCHW transpose in bf16, cast f32.
    out_nhwc = out_flat.reshape(N, Ho, Wo, Cout_p)[..., :Cout]
    return jnp.transpose(out_nhwc, (0, 3, 1, 2)).astype(jnp.float32)


def _reference(x_nchw, weight_oihw, gamma, beta, running_mean, running_var,
               *, stride, padding, dilation, eps=1e-5):
    conv = jax.lax.conv_general_dilated(
        x_nchw, weight_oihw,
        window_strides=(stride, stride),
        padding=((padding, padding), (padding, padding)),
        rhs_dilation=(dilation, dilation),
        dimension_numbers=("NCHW", "OIHW", "NCHW"),
        precision=jax.lax.Precision.HIGHEST)
    inv_std = 1.0 / jnp.sqrt(running_var + eps)
    y = (conv - running_mean[None, :, None, None]) * inv_std[None, :, None, None]
    y = y * gamma[None, :, None, None] + beta[None, :, None, None]
    return jnp.maximum(y, 0.0)


if __name__ == "__main__":
    # ConvBR(in_channel=4, out_channel=8, kernel_size=3, stride=1, padding=1, dilation=1)
    N, Cin, H, W = 2, 4, 16, 16
    Cout, K = 8, 3
    stride, padding, dilation = 1, 1, 1

    key = jax.random.PRNGKey(0)
    kx, kw, kg, kb, km, kv = jax.random.split(key, 6)

    x = jax.random.normal(kx, (N, Cin, H, W), dtype=jnp.float32)

    # Kaiming-normal init with a=1: gain = sqrt(2/(1+a^2)) = 1, std = 1/sqrt(fan_in).
    fan_in = Cin * K * K
    weight = jax.random.normal(kw, (Cout, Cin, K, K), dtype=jnp.float32) / np.sqrt(fan_in)

    # Deterministic (non-trivial) BN parameters / running statistics.
    gamma = 1.0 + 0.1 * jax.random.normal(kg, (Cout,), dtype=jnp.float32)
    beta = 0.1 * jax.random.normal(kb, (Cout,), dtype=jnp.float32)
    running_mean = 0.05 * jax.random.normal(km, (Cout,), dtype=jnp.float32)
    running_var = 1.0 + 0.1 * jax.random.uniform(kv, (Cout,), dtype=jnp.float32)

    out = convbr_forward(
        x, weight, gamma, beta, running_mean, running_var,
        stride=stride, padding=padding, dilation=dilation,
    )
    out = jax.block_until_ready(out)

    ref = _reference(
        x, weight, gamma, beta, running_mean, running_var,
        stride=stride, padding=padding, dilation=dilation,
    )
    # bf16 MXU operands + bf16 output store with f32 accumulation: compare vs the
    # f32 reference with correspondingly loose tolerance.
    np.testing.assert_allclose(np.asarray(out, dtype=np.float32),
                               np.asarray(ref, dtype=np.float32),
                               rtol=4e-2, atol=4e-2)

    print("KERNEL_OK")
</pallas_src>

<mosaic_0001>
module attributes {stable_mosaic.version = 11 : i64} {
  func.func @_convbr_kernel(%arg0: i32, %arg1: i32, %arg2: memref<1x18x72xbf16, #tpu.memory_space<vmem>>, %arg3: memref<48x128xbf16, #tpu.memory_space<vmem>>, %arg4: memref<1x128xf32, #tpu.memory_space<vmem>>, %arg5: memref<1x256x128xbf16, #tpu.memory_space<vmem>>) attributes {dimension_semantics = [#tpu.dimension_semantics<parallel>, #tpu.dimension_semantics<parallel>], iteration_bounds = array<i64: 2, 1>, scalar_prefetch = 0 : i64, scratch_operands = 0 : i64, tpu.core_type = #tpu.core_type<tc>, window_params = [{transform_indices = @transform_0, window_bounds = array<i64: 1, 18, 72>}, {pipeline_mode = #tpu.pipeline_mode<synchronous>, transform_indices = @transform_1, window_bounds = array<i64: 48, 128>}, {pipeline_mode = #tpu.pipeline_mode<synchronous>, transform_indices = @transform_2, window_bounds = array<i64: 1, 128>}, {transform_indices = @transform_3, window_bounds = array<i64: 1, 256, 128>}]} {
    %c16_i32 = arith.constant 16 : i32
    %0 = arith.muli %arg1, %c16_i32 : i32
    %1 = tpu.assume_multiple %0, 16 : i32
    %c0 = arith.constant 0 : index
    %2 = arith.index_cast %1 : i32 to index
    %c0_0 = arith.constant 0 : index
    %3 = vector.load %arg2[%c0, %2, %c0_0] : memref<1x18x72xbf16, #tpu.memory_space<vmem>>, vector<1x18x72xbf16>
    %4 = vector.shape_cast %3 : vector<1x18x72xbf16> to vector<18x72xbf16>
    %5 = vector.extract_strided_slice %4 {offsets = [0, 0], sizes = [16, 72], strides = [1, 1]} : vector<18x72xbf16> to vector<16x72xbf16>
    %6 = vector.extract_strided_slice %5 {offsets = [0, 0], sizes = [16, 64], strides = [1, 1]} : vector<16x72xbf16> to vector<16x64xbf16>
    %7 = vector.shape_cast %6 : vector<16x64xbf16> to vector<16x16x4xbf16>
    %8 = vector.extract_strided_slice %5 {offsets = [0, 4], sizes = [16, 64], strides = [1, 1]} : vector<16x72xbf16> to vector<16x64xbf16>
    %9 = vector.shape_cast %8 : vector<16x64xbf16> to vector<16x16x4xbf16>
    %10 = vector.extract_strided_slice %5 {offsets = [0, 8], sizes = [16, 64], strides = [1, 1]} : vector<16x72xbf16> to vector<16x64xbf16>
    %11 = vector.shape_cast %10 : vector<16x64xbf16> to vector<16x16x4xbf16>
    %12 = vector.extract_strided_slice %4 {offsets = [1, 0], sizes = [16, 72], strides = [1, 1]} : vector<18x72xbf16> to vector<16x72xbf16>
    %13 = vector.extract_strided_slice %12 {offsets = [0, 0], sizes = [16, 64], strides = [1, 1]} : vector<16x72xbf16> to vector<16x64xbf16>
    %14 = vector.shape_cast %13 : vector<16x64xbf16> to vector<16x16x4xbf16>
    %15 = vector.extract_strided_slice %12 {offsets = [0, 4], sizes = [16, 64], strides = [1, 1]} : vector<16x72xbf16> to vector<16x64xbf16>
    %16 = vector.shape_cast %15 : vector<16x64xbf16> to vector<16x16x4xbf16>
    %17 = vector.extract_strided_slice %12 {offsets = [0, 8], sizes = [16, 64], strides = [1, 1]} : vector<16x72xbf16> to vector<16x64xbf16>
    %18 = vector.shape_cast %17 : vector<16x64xbf16> to vector<16x16x4xbf16>
    %19 = vector.extract_strided_slice %4 {offsets = [2, 0], sizes = [16, 72], strides = [1, 1]} : vector<18x72xbf16> to vector<16x72xbf16>
    %20 = vector.extract_strided_slice %19 {offsets = [0, 0], sizes = [16, 64], strides = [1, 1]} : vector<16x72xbf16> to vector<16x64xbf16>
    %21 = vector.shape_cast %20 : vector<16x64xbf16> to vector<16x16x4xbf16>
    %22 = vector.extract_strided_slice %19 {offsets = [0, 4], sizes = [16, 64], strides = [1, 1]} : vector<16x72xbf16> to vector<16x64xbf16>
    %23 = vector.shape_cast %22 : vector<16x64xbf16> to vector<16x16x4xbf16>
    %24 = vector.extract_strided_slice %19 {offsets = [0, 8], sizes = [16, 64], strides = [1, 1]} : vector<16x72xbf16> to vector<16x64xbf16>
    %25 = vector.shape_cast %24 : vector<16x64xbf16> to vector<16x16x4xbf16>
    %cst = arith.constant 0.000000e+00 : bf16
    %26 = vector.broadcast %cst : bf16 to vector<16x16x12xbf16>
    %27 = tpu.concatenate %7, %9, %11, %14, %16, %18, %21, %23, %25, %26 in 2 : vector<16x16x4xbf16>, vector<16x16x4xbf16>, vector<16x16x4xbf16>, vector<16x16x4xbf16>, vector<16x16x4xbf16>, vector<16x16x4xbf16>, vector<16x16x4xbf16>, vector<16x16x4xbf16>, vector<16x16x4xbf16>, vector<16x16x12xbf16> -> vector<16x16x48xbf16>
    %28 = vector.shape_cast %27 : vector<16x16x48xbf16> to vector<256x48xbf16>
    %c0_1 = arith.constant 0 : index
    %c0_2 = arith.constant 0 : index
    %29 = vector.load %arg3[%c0_1, %c0_2] : memref<48x128xbf16, #tpu.memory_space<vmem>>, vector<48x128xbf16>
    %cst_3 = arith.constant dense<0.000000e+00> : vector<256x128xf32>
    %30 = tpu.matmul %28, %29, %cst_3 {dimension_numbers = #tpu.dot_dimension_numbers<[1], [0], [0], [1], [0, 0, 1, 1], [], []>} : vector<256x48xbf16>, vector<48x128xbf16>, vector<256x128xf32> -> vector<256x128xf32>
    %c0_4 = arith.constant 0 : index
    %c0_5 = arith.constant 0 : index
    %31 = vector.load %arg4[%c0_4, %c0_5] : memref<1x128xf32, #tpu.memory_space<vmem>>, vector<1x128xf32>
    %32 = vector.shape_cast %31 : vector<1x128xf32> to vector<128xf32>
    %33 = vector.shape_cast %32 : vector<128xf32> to vector<1x128xf32>
    %34 = vector.broadcast %33 : vector<1x128xf32> to vector<256x128xf32>
    %35 = arith.addf %30, %34 : vector<256x128xf32>
    %cst_6 = arith.constant 0.000000e+00 : f32
    %36 = vector.broadcast %cst_6 : f32 to vector<256x128xf32>
    %37 = arith.maximumf %35, %36 : vector<256x128xf32>
    %38 = arith.truncf %37 : vector<256x128xf32> to vector<256x128xbf16>
    %c0_7 = arith.constant 0 : index
    %c0_8 = arith.constant 0 : index
    %c0_9 = arith.constant 0 : index
    %39 = vector.load %arg5[%c0_7, %c0_8, %c0_9] : memref<1x256x128xbf16, #tpu.memory_space<vmem>>, vector<1x256x128xbf16>
    %40 = vector.shape_cast %39 : vector<1x256x128xbf16> to vector<256x128xbf16>
    %41 = vector.shape_cast %38 : vector<256x128xbf16> to vector<1x256x128xbf16>
    tpu.vector_store %arg5[%c0_7, %c0_8, %c0_9], %41 {strides = array<i32>} : memref<1x256x128xbf16, #tpu.memory_space<vmem>>, vector<1x256x128xbf16>,
    return
  }
  func.func @transform_0(%arg0: i32, %arg1: i32) -> (i32, i32, i32) {
    %c0_i32 = arith.constant 0 : i32
    %c0_i32_0 = arith.constant 0 : i32
    %c0_i32_1 = arith.constant 0 : i32
    return %arg0, %c0_i32, %c0_i32_0 : i32, i32, i32
  }
  func.func @transform_1(%arg0: i32, %arg1: i32) -> (i32, i32) {
    %c0_i32 = arith.constant 0 : i32
    %c0_i32_0 = arith.constant 0 : i32
    %c0_i32_1 = arith.constant 0 : i32
    return %c0_i32, %c0_i32_0 : i32, i32
  }
  func.func @transform_2(%arg0: i32, %arg1: i32) -> (i32, i32) {
    %c0_i32 = arith.constant 0 : i32
    %c0_i32_0 = arith.constant 0 : i32
    %c0_i32_1 = arith.constant 0 : i32
    return %c0_i32, %c0_i32_0 : i32, i32
  }
  func.func @transform_3(%arg0: i32, %arg1: i32) -> (i32, i32, i32) {
    %c0_i32 = arith.constant 0 : i32
    %c0_i32_0 = arith.constant 0 : i32
    return %arg0, %arg1, %c0_i32 : i32, i32, i32
  }
}

</mosaic_0001>

<llo_original>
// kernel: tpu_custom_call.1
$region0: #{tpu_custom_call.1}
  #allocation0 [shape = 'u32[]', space=smem, size = 0x4, offset = 0x4, fixed_abs, tag = 'smem constant byte address 0x4 - core index']
  #allocation1 [shape = 'u32[144,128]{1,0:T(1,128)}', space=vmem, size = 0x12000, scoped, tag = 'internal scratch']
  %s0 = inlined_call_operand.vmem [shape: bf16[2,18,72], index: 0, kind: input, shape index: {}]
  %s1 = inlined_call_operand.vmem [shape: bf16[48,128], index: 1, kind: input, shape index: {}]
  %s2 = inlined_call_operand.vmem [shape: f32[1,128], index: 2, kind: input, shape index: {}]
  %s3 = inlined_call_operand.hbm [shape: bf16[2,256,128], index: 3, kind: output, shape index: {}]
  %s4 = sld [smem:[#allocation0]]
  $region45: #{tpu_custom_call.1} parent=0
    _
  %s6 = ssub.s32 1, %s4
  %s7 = scalar_select 0, %s6, %s4
  $region1: #{tpu_custom_call.1} parent=0
    #allocation2 [shape = 'u8[131072]{0}', space=vmem, size = 0x20000, scoped, tag = 'output window, operand 0']
    #allocation3 [shape = 's32[2]{0}', space=sflag, size = 0x8, scoped, tag = 'scoped memory for tpu_custom_call.1']
    %8 = vsyncpa [#allocation3], 0
    %s9 = scalar_lea.sflag [#allocation3], 1
    %10 = vsyncpa %s9, 0
    loop: start=0, step=1, limit=4
    $region2: #{tpu_custom_call.1} parent=1 // loop_pre_header
      _
    $region3: #{tpu_custom_call.1} parent=1 // loop_header
      %s12 = sphi 0, %s16
      %p13 = scmp.ge.s32.totalorder %s12, 4
      %s19 = sphi 0, %s31
      %s20 = sphi 0, %s27
      %s21 = sphi 0, %s19
      %s22 = sphi 0, %s20
      %s23 = sphi 0, %s21
      %s24 = sphi 0, %s22
      %s34 = sphi 0, %s36
      %s37 = sphi 0, %s34
      %s38 = sphi 0, %s37
      %s54 = sphi 0, %s38
      %s58 = sphi 0, %s58
      %s60 = sphi 0, %s58
      %s61 = sphi 0, %s60
      %s75 = sphi 0, %s61
      %s79 = sphi 0, %s79
      %s81 = sphi 0, %s79
      %s82 = sphi 0, %s81
      %s96 = sphi 0, %s82
      %s104 = sphi 0, %s106
      %s107 = sphi 0, %s104
      %s108 = sphi 0, %s107
      %s124 = sphi 0, %s108
    $region4: #{tpu_custom_call.1} parent=1 // loop_header_branch
      %15 = sbr.rel (%p13) target = $region8
    $region5: #{tpu_custom_call.1} parent=1 // loop_body
      %s17 = ssub.s32 %s12, 1
      %s18 = ssub.s32 %s12, 2
      %s25 = sadd.s32 1, %s20
      %p26 = scmp.ge.s32.totalorder %s25, 1
      %s27 = scalar_select %p26, 0, %s25
      %s28 = sadd.s32 1, %s19
      %s29 = scalar_select %p26, %s28, %s19
      %p30 = scmp.ge.s32.totalorder %s29, 2
      %s31 = scalar_select %p30, 0, %s29
      %s32 = ssub.s32 %s19, %s31
      %p33 = scmp.eq.s32.totalorder %s32, 0
      %s35 = sadd.s32 %s34, 1
      %s36 = scalar_select %p33, %s34, %s35
      %p39 = pneg %p33
      %p40 = scmp.eq.s32.totalorder %s12, 1
      %p41 = por %p39, %p40
      %p42 = scmp.ne.s32.totalorder %s34, %s37
      %p43 = scmp.eq.s32.totalorder %s12, 0
      %p44 = por %p42, %p43
      %p45 = scmp.ne.s32.totalorder %s34, %s37
      %p46 = scmp.eq.s32.totalorder %s17, 1
      %p47 = por %p45, %p46
      %p48 = scmp.ne.s32.totalorder %s37, %s38
      %p49 = scmp.eq.s32.totalorder %s17, 0
      %p50 = por %p48, %p49
      %p51 = scmp.ne.s32.totalorder %s37, %s38
      %p52 = scmp.eq.s32.totalorder %s18, 1
      %p53 = por %p51, %p52
      %p55 = scmp.ne.s32.totalorder %s38, %s54
      %p56 = scmp.eq.s32.totalorder %s18, 0
      %p57 = por %p55, %p56
      %s59 = sadd.s32 %s58, 1
      %p62 = scmp.eq.s32.totalorder %s12, 1
      %p63 = scmp.ne.s32.totalorder %s58, %s60
      %p64 = scmp.eq.s32.totalorder %s12, 0
      %p65 = por %p63, %p64
      %p66 = scmp.ne.s32.totalorder %s58, %s60
      %p67 = scmp.eq.s32.totalorder %s17, 1
      %p68 = por %p66, %p67
      %p69 = scmp.ne.s32.totalorder %s60, %s61
      %p70 = scmp.eq.s32.totalorder %s17, 0
      %p71 = por %p69, %p70
      %p72 = scmp.ne.s32.totalorder %s60, %s61
      %p73 = scmp.eq.s32.totalorder %s18, 1
      %p74 = por %p72, %p73
      %p76 = scmp.ne.s32.totalorder %s61, %s75
      %p77 = scmp.eq.s32.totalorder %s18, 0
      %p78 = por %p76, %p77
      %s80 = sadd.s32 %s79, 1
      %p83 = scmp.eq.s32.totalorder %s12, 1
      %p84 = scmp.ne.s32.totalorder %s79, %s81
      %p85 = scmp.eq.s32.totalorder %s12, 0
      %p86 = por %p84, %p85
      %p87 = scmp.ne.s32.totalorder %s79, %s81
      %p88 = scmp.eq.s32.totalorder %s17, 1
      %p89 = por %p87, %p88
      %p90 = scmp.ne.s32.totalorder %s81, %s82
      %p91 = scmp.eq.s32.totalorder %s17, 0
      %p92 = por %p90, %p91
      %p93 = scmp.ne.s32.totalorder %s81, %s82
      %p94 = scmp.eq.s32.totalorder %s18, 1
      %p95 = por %p93, %p94
      %p97 = scmp.ne.s32.totalorder %s82, %s96
      %p98 = scmp.eq.s32.totalorder %s18, 0
      %p99 = por %p97, %p98
      %s100 = ssub.s32 %s19, %s31
      %s101 = ssub.s32 %s20, %s27
      %s102 = sor.u32 %s100, %s101
      %p103 = scmp.eq.s32.totalorder %s102, 0
      %s105 = sadd.s32 %s104, 1
      %s106 = scalar_select %p103, %s104, %s105
      %p109 = pneg %p103
      %p110 = scmp.eq.s32.totalorder %s12, 1
      %p111 = por %p109, %p110
      %p112 = scmp.ne.s32.totalorder %s104, %s107
      %p113 = scmp.eq.s32.totalorder %s12, 0
      %p114 = por %p112, %p113
      %p115 = scmp.ne.s32.totalorder %s104, %s107
      %p116 = scmp.eq.s32.totalorder %s17, 1
      %p117 = por %p115, %p116
      %p118 = scmp.ne.s32.totalorder %s107, %s108
      %p119 = scmp.eq.s32.totalorder %s17, 0
      %p120 = por %p118, %p119
      %p121 = scmp.ne.s32.totalorder %s107, %s108
      %p122 = scmp.eq.s32.totalorder %s18, 1
      %p123 = por %p121, %p122
      %p125 = scmp.ne.s32.totalorder %s108, %s124
      %p126 = scmp.eq.s32.totalorder %s18, 0
      %p127 = por %p125, %p126
      %p128 = scmp.le.s32.totalorder 1, %s12
      %p129 = scmp.lt.s32.totalorder %s12, 3
      %p130 = pnand %p128, %p129
      %p131 = pneg %p130
      // Predicated region
      $region9: #{tpu_custom_call.1} parent=5 // pred_check
        _
      $region10: #{tpu_custom_call.1} parent=5 // pred_check_branch
        %133 = sbr.rel (%p130) target = $region12
      $region11: #{tpu_custom_call.1} parent=5 // pred_region
        %s134 = ssub.s32 %s12, 1
        // Predicated region
        $region13: #{tpu_custom_call.1} parent=11 // pred_check
          %p135 = pneg %p71
        $region14: #{tpu_custom_call.1} parent=11 // pred_check_branch
          %137 = sbr.rel (%p135) target = $region16
        $region15: #{tpu_custom_call.1} parent=11 // pred_region
          _
        $region16: #{tpu_custom_call.1} parent=11 // pred_fallthru
          _
        // Predicated region
        $region17: #{tpu_custom_call.1} parent=11 // pred_check
          %p138 = pneg %p92
        $region18: #{tpu_custom_call.1} parent=11 // pred_check_branch
          %140 = sbr.rel (%p138) target = $region20
        $region19: #{tpu_custom_call.1} parent=11 // pred_region
          _
        $region20: #{tpu_custom_call.1} parent=11 // pred_fallthru
          _
      $region12: #{tpu_custom_call.1} parent=5 // pred_fallthru
        _
      %p141 = scmp.lt.s32.totalorder %s12, 2
      // Predicated region
      $region21: #{tpu_custom_call.1} parent=5 // pred_check
        %p142 = pneg %p141
      $region22: #{tpu_custom_call.1} parent=5 // pred_check_branch
        %144 = sbr.rel (%p142) target = $region24
      $region23: #{tpu_custom_call.1} parent=5 // pred_region
        // Predicated region
        $region25: #{tpu_custom_call.1} parent=23 // pred_check
          %p145 = pneg %p44
        $region26: #{tpu_custom_call.1} parent=23 // pred_check_branch
          %147 = sbr.rel (%p145) target = $region28
        $region27: #{tpu_custom_call.1} parent=23 // pred_region
          %p148 = scmp.lt.s32.totalorder %s19, 1
          %s149 = scalar_select %p148, %s19, 1
          %s150 = smul.addr %s149, 3
          %s151 = smul.addr %s150, 4
          %s152 = scalar_lea.vmem %s0, %s151
        $region28: #{tpu_custom_call.1} parent=23 // pred_fallthru
          _
      $region24: #{tpu_custom_call.1} parent=5 // pred_fallthru
        _
      %p153 = scmp.le.s32.totalorder 1, %s12
      %p154 = scmp.lt.s32.totalorder %s12, 3
      %p155 = pnand %p153, %p154
      %p156 = pneg %p155
      // Predicated region
      $region29: #{tpu_custom_call.1} parent=5 // pred_check
        _
      $region30: #{tpu_custom_call.1} parent=5 // pred_check_branch
        %158 = sbr.rel (%p155) target = $region32
      $region31: #{tpu_custom_call.1} parent=5 // pred_region
        %s159 = ssub.s32 %s12, 1
        %p160 = scmp.lt.s32.totalorder %s21, 1
        %s161 = scalar_select %p160, %s21, 1
        %s162 = smul.addr %s161, 3
        %s163 = smul.addr %s162, 4
        %s164 = scalar_lea.vmem %s0, %s163
        %p165 = pneg %p50
        %p166 = pneg %p47
        %p167 = pneg %p71
        %p168 = pneg %p68
        %p169 = pneg %p92
        %p170 = pneg %p89
        %p171 = pneg %p120
        %p172 = pneg %p117
        %s173 = sand.u32 %s107, 1
        %s174 = scalar_lea.sflag [#allocation3], %s173
        %s175 = sand.u32 %s107, 1
        %s176 = smul.addr %s175, 128
        %s177 = scalar_lea.vmem [#allocation2], %s176
        %p178 = scmp.lt.s32.totalorder %s21, 1
        %s179 = scalar_select %p178, %s21, 1
        %s180 = smul.addr %s179, 3
        %s181 = smul.addr %s180, 4
        %s182 = scalar_lea.vmem %s0, %s181
        %s183 = smul.u32 32, %s22
        %s185 = smul.u32 %s22, 16
        %s186 = sshra.s32 %s185, 3
        %s187 = sand.u32 %s185, 7
        %s188 = smul.addr %s186, 4
        %s189 = scalar_lea.vmem %s182, %s188
        %v190 = vld [vmem:[%s189] sm:$0xf]
        %v191 = vld [vmem:[%s189 + $0x4] sm:$0xf]
        %v192 = vld [vmem:[%s189 + $0x8] sm:$0x1]
        %195 = vrot.lane.b32.xlu0 %v190, 124
        %v196 = vpop.permute.xlu0 %195
        %197 = vrot.lane.b32.xlu0 %v191, 124
        %v198 = vpop.permute.xlu0 %197
        %201 = vrot.lane.b32.xlu0 %v190, 120
        %v202 = vpop.permute.xlu0 %201
        %203 = vrot.lane.b32.xlu0 %v191, 120
        %v204 = vpop.permute.xlu0 %203
        %207 = vrot.lane.b32.xlu0 %v190, 116
        %v208 = vpop.permute.xlu0 %207
        %209 = vrot.lane.b32.xlu0 %v191, 116
        %v210 = vpop.permute.xlu0 %209
        %213 = vrot.lane.b32.xlu0 %v190, 112
        %v214 = vpop.permute.xlu0 %213
        %215 = vrot.lane.b32.xlu0 %v191, 112
        %v216 = vpop.permute.xlu0 %215
        %219 = vrot.lane.b32.xlu0 %v190, 108
        %v220 = vpop.permute.xlu0 %219
        %221 = vrot.lane.b32.xlu0 %v191, 108
        %v222 = vpop.permute.xlu0 %221
        %225 = vrot.lane.b32.xlu0 %v190, 104
        %v226 = vpop.permute.xlu0 %225
        %227 = vrot.lane.b32.xlu0 %v191, 104
        %v228 = vpop.permute.xlu0 %227
        %231 = vrot.lane.b32.xlu0 %v190, 100
        %v232 = vpop.permute.xlu0 %231
        %233 = vrot.lane.b32.xlu0 %v191, 100
        %v234 = vpop.permute.xlu0 %233
        %237 = vrot.lane.b32.xlu0 %v190, 96
        %v238 = vpop.permute.xlu0 %237
        %239 = vrot.lane.b32.xlu0 %v191, 96
        %v240 = vpop.permute.xlu0 %239
        %243 = vrot.lane.b32.xlu0 %v190, 92
        %v244 = vpop.permute.xlu0 %243
        %245 = vrot.lane.b32.xlu0 %v191, 92
        %v246 = vpop.permute.xlu0 %245
        %249 = vrot.lane.b32.xlu0 %v190, 88
        %v250 = vpop.permute.xlu0 %249
        %251 = vrot.lane.b32.xlu0 %v191, 88
        %v252 = vpop.permute.xlu0 %251
        %255 = vrot.lane.b32.xlu0 %v190, 84
        %v256 = vpop.permute.xlu0 %255
        %257 = vrot.lane.b32.xlu0 %v191, 84
        %v258 = vpop.permute.xlu0 %257
        %261 = vrot.lane.b32.xlu0 %v190, 80
        %v262 = vpop.permute.xlu0 %261
        %263 = vrot.lane.b32.xlu0 %v191, 80
        %v264 = vpop.permute.xlu0 %263
        %267 = vrot.lane.b32.xlu0 %v190, 76
        %v268 = vpop.permute.xlu0 %267
        %269 = vrot.lane.b32.xlu0 %v191, 76
        %v270 = vpop.permute.xlu0 %269
        %273 = vrot.lane.b32.xlu0 %v190, 72
        %v274 = vpop.permute.xlu0 %273
        %275 = vrot.lane.b32.xlu0 %v191, 72
        %v276 = vpop.permute.xlu0 %275
        %279 = vrot.lane.b32.xlu0 %v190, 68
        %v280 = vpop.permute.xlu0 %279
        %281 = vrot.lane.b32.xlu0 %v191, 68
        %v282 = vpop.permute.xlu0 %281
        %v285 = vcombine.low %v190, %v214
        %v287 = vunpack.c.l.s4 1983009808
        %v288 = vunpack.c.0.s8 %v287
        %v289 = vlaneseq
        %v290 = vshrl.u32 %v289, 7
        %v291 = vsub.s32 %v288, %v290
        %v292 = vrot.slane %v285, %v291
        %v293 = vcombine.low %v202, %v226
        %v295 = vunpack.c.l.s4 1983009808
        %v296 = vunpack.c.0.s8 %v295
        %v297 = vlaneseq
        %v298 = vshrl.u32 %v297, 7
        %v299 = vsub.s32 %v296, %v298
        %v300 = vrot.slane %v293, %v299
        %v301 = vcombine.low %v292, %v300
        %v302 = vcombine.high %v292, %v300
        %v304 = vunpack.c.l.s4 1934713408
        %v305 = vunpack.c.0.s8 %v304
        %v306 = vlaneseq
        %v307 = vshrl.u32 %v306, 7
        %v308 = vsub.s32 %v305, %v307
        %v309 = vrot.slane %v301, %v308
        %v311 = vunpack.c.l.s4 1934713408
        %v312 = vunpack.c.0.s8 %v311
        %v313 = vlaneseq
        %v314 = vshrl.u32 %v313, 7
        %v315 = vsub.s32 %v312, %v314
        %v316 = vrot.slane %v302, %v315
        %v317 = vcombine.high %v309, 0
        %v318 = vcombine.high %v316, 0
        %v319 = vcombine.low %v196, %v220
        %v321 = vunpack.c.l.s4 1983009808
        %v322 = vunpack.c.0.s8 %v321
        %v323 = vlaneseq
        %v324 = vshrl.u32 %v323, 7
        %v325 = vsub.s32 %v322, %v324
        %v326 = vrot.slane %v319, %v325
        %v327 = vcombine.low %v208, %v232
        %v329 = vunpack.c.l.s4 1983009808
        %v330 = vunpack.c.0.s8 %v329
        %v331 = vlaneseq
        %v332 = vshrl.u32 %v331, 7
        %v333 = vsub.s32 %v330, %v332
        %v334 = vrot.slane %v327, %v333
        %v335 = vcombine.low %v326, %v334
        %v336 = vcombine.high %v326, %v334
        %v338 = vunpack.c.l.s4 1934713408
        %v339 = vunpack.c.0.s8 %v338
        %v340 = vlaneseq
        %v341 = vshrl.u32 %v340, 7
        %v342 = vsub.s32 %v339, %v341
        %v343 = vrot.slane %v335, %v342
        %v345 = vunpack.c.l.s4 1934713408
        %v346 = vunpack.c.0.s8 %v345
        %v347 = vlaneseq
        %v348 = vshrl.u32 %v347, 7
        %v349 = vsub.s32 %v346, %v348
        %v350 = vrot.slane %v336, %v349
        %v351 = vcombine.high %v343, 0
        %v352 = vcombine.high %v350, 0
        %v353 = vcombine.low %v238, %v262
        %v355 = vunpack.c.l.s4 1983009808
        %v356 = vunpack.c.0.s8 %v355
        %v357 = vlaneseq
        %v358 = vshrl.u32 %v357, 7
        %v359 = vsub.s32 %v356, %v358
        %v360 = vrot.slane %v353, %v359
        %v361 = vcombine.low %v250, %v274
        %v363 = vunpack.c.l.s4 1983009808
        %v364 = vunpack.c.0.s8 %v363
        %v365 = vlaneseq
        %v366 = vshrl.u32 %v365, 7
        %v367 = vsub.s32 %v364, %v366
        %v368 = vrot.slane %v361, %v367
        %v369 = vcombine.low %v360, %v368
        %v370 = vcombine.high %v360, %v368
        %v372 = vunpack.c.l.s4 1934713408
        %v373 = vunpack.c.0.s8 %v372
        %v374 = vlaneseq
        %v375 = vshrl.u32 %v374, 7
        %v376 = vsub.s32 %v373, %v375
        %v377 = vrot.slane %v369, %v376
        %v379 = vunpack.c.l.s4 1934713408
        %v380 = vunpack.c.0.s8 %v379
        %v381 = vlaneseq
        %v382 = vshrl.u32 %v381, 7
        %v383 = vsub.s32 %v380, %v382
        %v384 = vrot.slane %v370, %v383
        %v385 = vcombine.high %v377, 0
        %v386 = vcombine.high %v384, 0
        %v387 = vcombine.low %v244, %v268
        %v389 = vunpack.c.l.s4 1983009808
        %v390 = vunpack.c.0.s8 %v389
        %v391 = vlaneseq
        %v392 = vshrl.u32 %v391, 7
        %v393 = vsub.s32 %v390, %v392
        %v394 = vrot.slane %v387, %v393
        %v395 = vcombine.low %v256, %v280
        %v397 = vunpack.c.l.s4 1983009808
        %v398 = vunpack.c.0.s8 %v397
        %v399 = vlaneseq
        %v400 = vshrl.u32 %v399, 7
        %v401 = vsub.s32 %v398, %v400
        %v402 = vrot.slane %v395, %v401
        %v403 = vcombine.low %v394, %v402
        %v404 = vcombine.high %v394, %v402
        %v406 = vunpack.c.l.s4 1934713408
        %v407 = vunpack.c.0.s8 %v406
        %v408 = vlaneseq
        %v409 = vshrl.u32 %v408, 7
        %v410 = vsub.s32 %v407, %v409
        %v411 = vrot.slane %v403, %v410
        %v413 = vunpack.c.l.s4 1934713408
        %v414 = vunpack.c.0.s8 %v413
        %v415 = vlaneseq
        %v416 = vshrl.u32 %v415, 7
        %v417 = vsub.s32 %v414, %v416
        %v418 = vrot.slane %v404, %v417
        %v419 = vcombine.high %v411, 0
        %v420 = vcombine.high %v418, 0
        %v421 = vcombine.low %v191, %v216
        %v423 = vunpack.c.l.s4 1983009808
        %v424 = vunpack.c.0.s8 %v423
        %v425 = vlaneseq
        %v426 = vshrl.u32 %v425, 7
        %v427 = vsub.s32 %v424, %v426
        %v428 = vrot.slane %v421, %v427
        %v429 = vcombine.low %v204, %v228
        %v431 = vunpack.c.l.s4 1983009808
        %v432 = vunpack.c.0.s8 %v431
        %v433 = vlaneseq
        %v434 = vshrl.u32 %v433, 7
        %v435 = vsub.s32 %v432, %v434
        %v436 = vrot.slane %v429, %v435
        %v437 = vcombine.low %v428, %v436
        %v438 = vcombine.high %v428, %v436
        %v440 = vunpack.c.l.s4 1934713408
        %v441 = vunpack.c.0.s8 %v440
        %v442 = vlaneseq
        %v443 = vshrl.u32 %v442, 7
        %v444 = vsub.s32 %v441, %v443
        %v445 = vrot.slane %v437, %v444
        %v447 = vunpack.c.l.s4 1934713408
        %v448 = vunpack.c.0.s8 %v447
        %v449 = vlaneseq
        %v450 = vshrl.u32 %v449, 7
        %v451 = vsub.s32 %v448, %v450
        %v452 = vrot.slane %v438, %v451
        %v453 = vcombine.high %v445, 0
        %v454 = vcombine.high %v452, 0
        %v455 = vcombine.low %v198, %v222
        %v457 = vunpack.c.l.s4 1983009808
        %v458 = vunpack.c.0.s8 %v457
        %v459 = vlaneseq
        %v460 = vshrl.u32 %v459, 7
        %v461 = vsub.s32 %v458, %v460
        %v462 = vrot.slane %v455, %v461
        %v463 = vcombine.low %v210, %v234
        %v465 = vunpack.c.l.s4 1983009808
        %v466 = vunpack.c.0.s8 %v465
        %v467 = vlaneseq
        %v468 = vshrl.u32 %v467, 7
        %v469 = vsub.s32 %v466, %v468
        %v470 = vrot.slane %v463, %v469
        %v471 = vcombine.low %v462, %v470
        %v472 = vcombine.high %v462, %v470
        %v474 = vunpack.c.l.s4 1934713408
        %v475 = vunpack.c.0.s8 %v474
        %v476 = vlaneseq
        %v477 = vshrl.u32 %v476, 7
        %v478 = vsub.s32 %v475, %v477
        %v479 = vrot.slane %v471, %v478
        %v481 = vunpack.c.l.s4 1934713408
        %v482 = vunpack.c.0.s8 %v481
        %v483 = vlaneseq
        %v484 = vshrl.u32 %v483, 7
        %v485 = vsub.s32 %v482, %v484
        %v486 = vrot.slane %v472, %v485
        %v487 = vcombine.high %v479, 0
        %v488 = vcombine.high %v486, 0
        %v489 = vcombine.low %v240, %v264
        %v491 = vunpack.c.l.s4 1983009808
        %v492 = vunpack.c.0.s8 %v491
        %v493 = vlaneseq
        %v494 = vshrl.u32 %v493, 7
        %v495 = vsub.s32 %v492, %v494
        %v496 = vrot.slane %v489, %v495
        %v497 = vcombine.low %v252, %v276
        %v499 = vunpack.c.l.s4 1983009808
        %v500 = vunpack.c.0.s8 %v499
        %v501 = vlaneseq
        %v502 = vshrl.u32 %v501, 7
        %v503 = vsub.s32 %v500, %v502
        %v504 = vrot.slane %v497, %v503
        %v505 = vcombine.low %v496, %v504
        %v506 = vcombine.high %v496, %v504
        %v508 = vunpack.c.l.s4 1934713408
        %v509 = vunpack.c.0.s8 %v508
        %v510 = vlaneseq
        %v511 = vshrl.u32 %v510, 7
        %v512 = vsub.s32 %v509, %v511
        %v513 = vrot.slane %v505, %v512
        %v515 = vunpack.c.l.s4 1934713408
        %v516 = vunpack.c.0.s8 %v515
        %v517 = vlaneseq
        %v518 = vshrl.u32 %v517, 7
        %v519 = vsub.s32 %v516, %v518
        %v520 = vrot.slane %v506, %v519
        %v521 = vcombine.high %v513, 0
        %v522 = vcombine.high %v520, 0
        %v523 = vcombine.low %v246, %v270
        %v525 = vunpack.c.l.s4 1983009808
        %v526 = vunpack.c.0.s8 %v525
        %v527 = vlaneseq
        %v528 = vshrl.u32 %v527, 7
        %v529 = vsub.s32 %v526, %v528
        %v530 = vrot.slane %v523, %v529
        %v531 = vcombine.low %v258, %v282
        %v533 = vunpack.c.l.s4 1983009808
        %v534 = vunpack.c.0.s8 %v533
        %v535 = vlaneseq
        %v536 = vshrl.u32 %v535, 7
        %v537 = vsub.s32 %v534, %v536
        %v538 = vrot.slane %v531, %v537
        %v539 = vcombine.low %v530, %v538
        %v540 = vcombine.high %v530, %v538
        %v542 = vunpack.c.l.s4 1934713408
        %v543 = vunpack.c.0.s8 %v542
        %v544 = vlaneseq
        %v545 = vshrl.u32 %v544, 7
        %v546 = vsub.s32 %v543, %v545
        %v547 = vrot.slane %v539, %v546
        %v549 = vunpack.c.l.s4 1934713408
        %v550 = vunpack.c.0.s8 %v549
        %v551 = vlaneseq
        %v552 = vshrl.u32 %v551, 7
        %v553 = vsub.s32 %v550, %v552
        %v554 = vrot.slane %v540, %v553
        %v555 = vcombine.high %v547, 0
        %v556 = vcombine.high %v554, 0
        %v559 = vpack.i.b16 %v343, %v309
        %v560 = vshrl.u32 %v309, 16
        %v561 = vshrl.u32 %v343, 16
        %v562 = vpack.i.b16 %v561, %v560
        %v565 = vpack.i.b16 %v351, %v317
        %v566 = vshrl.u32 %v317, 16
        %v567 = vshrl.u32 %v351, 16
        %v568 = vpack.i.b16 %v567, %v566
        %v571 = vpack.i.b16 %v350, %v316
        %v572 = vshrl.u32 %v316, 16
        %v573 = vshrl.u32 %v350, 16
        %v574 = vpack.i.b16 %v573, %v572
        %v577 = vpack.i.b16 %v352, %v318
        %v578 = vshrl.u32 %v318, 16
        %v579 = vshrl.u32 %v352, 16
        %v580 = vpack.i.b16 %v579, %v578
        %v583 = vpack.i.b16 %v479, %v445
        %v584 = vshrl.u32 %v445, 16
        %v585 = vshrl.u32 %v479, 16
        %v586 = vpack.i.b16 %v585, %v584
        %v589 = vpack.i.b16 %v487, %v453
        %v590 = vshrl.u32 %v453, 16
        %v591 = vshrl.u32 %v487, 16
        %v592 = vpack.i.b16 %v591, %v590
        %v595 = vpack.i.b16 %v486, %v452
        %v596 = vshrl.u32 %v452, 16
        %v597 = vshrl.u32 %v486, 16
        %v598 = vpack.i.b16 %v597, %v596
        %v601 = vpack.i.b16 %v488, %v454
        %v602 = vshrl.u32 %v454, 16
        %v603 = vshrl.u32 %v488, 16
        %v604 = vpack.i.b16 %v603, %v602
        %v607 = vpack.i.b16 %v411, %v377
        %v608 = vshrl.u32 %v377, 16
        %v609 = vshrl.u32 %v411, 16
        %v610 = vpack.i.b16 %v609, %v608
        %v613 = vpack.i.b16 %v419, %v385
        %v614 = vshrl.u32 %v385, 16
        %v615 = vshrl.u32 %v419, 16
        %v616 = vpack.i.b16 %v615, %v614
        %v619 = vpack.i.b16 %v418, %v384
        %v620 = vshrl.u32 %v384, 16
        %v621 = vshrl.u32 %v418, 16
        %v622 = vpack.i.b16 %v621, %v620
        %v625 = vpack.i.b16 %v420, %v386
        %v626 = vshrl.u32 %v386, 16
        %v627 = vshrl.u32 %v420, 16
        %v628 = vpack.i.b16 %v627, %v626
        %v631 = vpack.i.b16 %v547, %v513
        %v632 = vshrl.u32 %v513, 16
        %v633 = vshrl.u32 %v547, 16
        %v634 = vpack.i.b16 %v633, %v632
        %v637 = vpack.i.b16 %v555, %v521
        %v638 = vshrl.u32 %v521, 16
        %v639 = vshrl.u32 %v555, 16
        %v640 = vpack.i.b16 %v639, %v638
        %v643 = vpack.i.b16 %v554, %v520
        %v644 = vshrl.u32 %v520, 16
        %v645 = vshrl.u32 %v554, 16
        %v646 = vpack.i.b16 %v645, %v644
        %v649 = vpack.i.b16 %v556, %v522
        %v650 = vshrl.u32 %v522, 16
        %v651 = vshrl.u32 %v556, 16
        %v652 = vpack.i.b16 %v651, %v650
        %653 = vrot.lane.b32.xlu0 %v196, 124
        %v654 = vpop.permute.xlu0 %653
        %655 = vrot.lane.b32.xlu0 %v198, 124
        %v656 = vpop.permute.xlu0 %655
        %657 = vrot.lane.b32.xlu0 %v202, 124
        %v658 = vpop.permute.xlu0 %657
        %659 = vrot.lane.b32.xlu0 %v204, 124
        %v660 = vpop.permute.xlu0 %659
        %661 = vrot.lane.b32.xlu0 %v208, 124
        %v662 = vpop.permute.xlu0 %661
        %663 = vrot.lane.b32.xlu0 %v210, 124
        %v664 = vpop.permute.xlu0 %663
        %665 = vrot.lane.b32.xlu0 %v214, 124
        %v666 = vpop.permute.xlu0 %665
        %667 = vrot.lane.b32.xlu0 %v216, 124
        %v668 = vpop.permute.xlu0 %667
        %669 = vrot.lane.b32.xlu0 %v220, 124
        %v670 = vpop.permute.xlu0 %669
        %671 = vrot.lane.b32.xlu0 %v222, 124
        %v672 = vpop.permute.xlu0 %671
        %673 = vrot.lane.b32.xlu0 %v226, 124
        %v674 = vpop.permute.xlu0 %673
        %675 = vrot.lane.b32.xlu0 %v228, 124
        %v676 = vpop.permute.xlu0 %675
        %677 = vrot.lane.b32.xlu0 %v232, 124
        %v678 = vpop.permute.xlu0 %677
        %679 = vrot.lane.b32.xlu0 %v234, 124
        %v680 = vpop.permute.xlu0 %679
        %681 = vrot.lane.b32.xlu0 %v238, 124
        %v682 = vpop.permute.xlu0 %681
        %683 = vrot.lane.b32.xlu0 %v240, 124
        %v684 = vpop.permute.xlu0 %683
        %685 = vrot.lane.b32.xlu0 %v244, 124
        %v686 = vpop.permute.xlu0 %685
        %687 = vrot.lane.b32.xlu0 %v246, 124
        %v688 = vpop.permute.xlu0 %687
        %689 = vrot.lane.b32.xlu0 %v250, 124
        %v690 = vpop.permute.xlu0 %689
        %691 = vrot.lane.b32.xlu0 %v252, 124
        %v692 = vpop.permute.xlu0 %691
        %693 = vrot.lane.b32.xlu0 %v256, 124
        %v694 = vpop.permute.xlu0 %693
        %695 = vrot.lane.b32.xlu0 %v258, 124
        %v696 = vpop.permute.xlu0 %695
        %697 = vrot.lane.b32.xlu0 %v262, 124
        %v698 = vpop.permute.xlu0 %697
        %699 = vrot.lane.b32.xlu0 %v264, 124
        %v700 = vpop.permute.xlu0 %699
        %701 = vrot.lane.b32.xlu0 %v268, 124
        %v702 = vpop.permute.xlu0 %701
        %703 = vrot.lane.b32.xlu0 %v270, 124
        %v704 = vpop.permute.xlu0 %703
        %705 = vrot.lane.b32.xlu0 %v274, 124
        %v706 = vpop.permute.xlu0 %705
        %707 = vrot.lane.b32.xlu0 %v276, 124
        %v708 = vpop.permute.xlu0 %707
        %709 = vrot.lane.b32.xlu0 %v280, 124
        %v710 = vpop.permute.xlu0 %709
        %711 = vrot.lane.b32.xlu0 %v282, 124
        %v712 = vpop.permute.xlu0 %711
        %v743 = vcombine.low %v196, %v666
        %v745 = vunpack.c.l.s4 1983009808
        %v746 = vunpack.c.0.s8 %v745
        %v747 = vlaneseq
        %v748 = vshrl.u32 %v747, 7
        %v749 = vsub.s32 %v746, %v748
        %v750 = vrot.slane %v743, %v749
        %v751 = vcombine.low %v658, %v674
        %v753 = vunpack.c.l.s4 1983009808
        %v754 = vunpack.c.0.s8 %v753
        %v755 = vlaneseq
        %v756 = vshrl.u32 %v755, 7
        %v757 = vsub.s32 %v754, %v756
        %v758 = vrot.slane %v751, %v757
        %v759 = vcombine.low %v750, %v758
        %v760 = vcombine.high %v750, %v758
        %v762 = vunpack.c.l.s4 1934713408
        %v763 = vunpack.c.0.s8 %v762
        %v764 = vlaneseq
        %v765 = vshrl.u32 %v764, 7
        %v766 = vsub.s32 %v763, %v765
        %v767 = vrot.slane %v759, %v766
        %v769 = vunpack.c.l.s4 1934713408
        %v770 = vunpack.c.0.s8 %v769
        %v771 = vlaneseq
        %v772 = vshrl.u32 %v771, 7
        %v773 = vsub.s32 %v770, %v772
        %v774 = vrot.slane %v760, %v773
        %v775 = vcombine.high %v767, 0
        %v776 = vcombine.high %v774, 0
        %v777 = vcombine.low %v654, %v670
        %v779 = vunpack.c.l.s4 1983009808
        %v780 = vunpack.c.0.s8 %v779
        %v781 = vlaneseq
        %v782 = vshrl.u32 %v781, 7
        %v783 = vsub.s32 %v780, %v782
        %v784 = vrot.slane %v777, %v783
        %v785 = vcombine.low %v662, %v678
        %v787 = vunpack.c.l.s4 1983009808
        %v788 = vunpack.c.0.s8 %v787
        %v789 = vlaneseq
        %v790 = vshrl.u32 %v789, 7
        %v791 = vsub.s32 %v788, %v790
        %v792 = vrot.slane %v785, %v791
        %v793 = vcombine.low %v784, %v792
        %v794 = vcombine.high %v784, %v792
        %v796 = vunpack.c.l.s4 1934713408
        %v797 = vunpack.c.0.s8 %v796
        %v798 = vlaneseq
        %v799 = vshrl.u32 %v798, 7
        %v800 = vsub.s32 %v797, %v799
        %v801 = vrot.slane %v793, %v800
        %v803 = vunpack.c.l.s4 1934713408
        %v804 = vunpack.c.0.s8 %v803
        %v805 = vlaneseq
        %v806 = vshrl.u32 %v805, 7
        %v807 = vsub.s32 %v804, %v806
        %v808 = vrot.slane %v794, %v807
        %v809 = vcombine.high %v801, 0
        %v810 = vcombine.high %v808, 0
        %v811 = vcombine.low %v682, %v698
        %v813 = vunpack.c.l.s4 1983009808
        %v814 = vunpack.c.0.s8 %v813
        %v815 = vlaneseq
        %v816 = vshrl.u32 %v815, 7
        %v817 = vsub.s32 %v814, %v816
        %v818 = vrot.slane %v811, %v817
        %v819 = vcombine.low %v690, %v706
        %v821 = vunpack.c.l.s4 1983009808
        %v822 = vunpack.c.0.s8 %v821
        %v823 = vlaneseq
        %v824 = vshrl.u32 %v823, 7
        %v825 = vsub.s32 %v822, %v824
        %v826 = vrot.slane %v819, %v825
        %v827 = vcombine.low %v818, %v826
        %v828 = vcombine.high %v818, %v826
        %v830 = vunpack.c.l.s4 1934713408
        %v831 = vunpack.c.0.s8 %v830
        %v832 = vlaneseq
        %v833 = vshrl.u32 %v832, 7
        %v834 = vsub.s32 %v831, %v833
        %v835 = vrot.slane %v827, %v834
        %v837 = vunpack.c.l.s4 1934713408
        %v838 = vunpack.c.0.s8 %v837
        %v839 = vlaneseq
        %v840 = vshrl.u32 %v839, 7
        %v841 = vsub.s32 %v838, %v840
        %v842 = vrot.slane %v828, %v841
        %v843 = vcombine.high %v835, 0
        %v844 = vcombine.high %v842, 0
        %v845 = vcombine.low %v686, %v702
        %v847 = vunpack.c.l.s4 1983009808
        %v848 = vunpack.c.0.s8 %v847
        %v849 = vlaneseq
        %v850 = vshrl.u32 %v849, 7
        %v851 = vsub.s32 %v848, %v850
        %v852 = vrot.slane %v845, %v851
        %v853 = vcombine.low %v694, %v710
        %v855 = vunpack.c.l.s4 1983009808
        %v856 = vunpack.c.0.s8 %v855
        %v857 = vlaneseq
        %v858 = vshrl.u32 %v857, 7
        %v859 = vsub.s32 %v856, %v858
        %v860 = vrot.slane %v853, %v859
        %v861 = vcombine.low %v852, %v860
        %v862 = vcombine.high %v852, %v860
        %v864 = vunpack.c.l.s4 1934713408
        %v865 = vunpack.c.0.s8 %v864
        %v866 = vlaneseq
        %v867 = vshrl.u32 %v866, 7
        %v868 = vsub.s32 %v865, %v867
        %v869 = vrot.slane %v861, %v868
        %v871 = vunpack.c.l.s4 1934713408
        %v872 = vunpack.c.0.s8 %v871
        %v873 = vlaneseq
        %v874 = vshrl.u32 %v873, 7
        %v875 = vsub.s32 %v872, %v874
        %v876 = vrot.slane %v862, %v875
        %v877 = vcombine.high %v869, 0
        %v878 = vcombine.high %v876, 0
        %v879 = vcombine.low %v198, %v668
        %v881 = vunpack.c.l.s4 1983009808
        %v882 = vunpack.c.0.s8 %v881
        %v883 = vlaneseq
        %v884 = vshrl.u32 %v883, 7
        %v885 = vsub.s32 %v882, %v884
        %v886 = vrot.slane %v879, %v885
        %v887 = vcombine.low %v660, %v676
        %v889 = vunpack.c.l.s4 1983009808
        %v890 = vunpack.c.0.s8 %v889
        %v891 = vlaneseq
        %v892 = vshrl.u32 %v891, 7
        %v893 = vsub.s32 %v890, %v892
        %v894 = vrot.slane %v887, %v893
        %v895 = vcombine.low %v886, %v894
        %v896 = vcombine.high %v886, %v894
        %v898 = vunpack.c.l.s4 1934713408
        %v899 = vunpack.c.0.s8 %v898
        %v900 = vlaneseq
        %v901 = vshrl.u32 %v900, 7
        %v902 = vsub.s32 %v899, %v901
        %v903 = vrot.slane %v895, %v902
        %v905 = vunpack.c.l.s4 1934713408
        %v906 = vunpack.c.0.s8 %v905
        %v907 = vlaneseq
        %v908 = vshrl.u32 %v907, 7
        %v909 = vsub.s32 %v906, %v908
        %v910 = vrot.slane %v896, %v909
        %v911 = vcombine.high %v903, 0
        %v912 = vcombine.high %v910, 0
        %v913 = vcombine.low %v656, %v672
        %v915 = vunpack.c.l.s4 1983009808
        %v916 = vunpack.c.0.s8 %v915
        %v917 = vlaneseq
        %v918 = vshrl.u32 %v917, 7
        %v919 = vsub.s32 %v916, %v918
        %v920 = vrot.slane %v913, %v919
        %v921 = vcombine.low %v664, %v680
        %v923 = vunpack.c.l.s4 1983009808
        %v924 = vunpack.c.0.s8 %v923
        %v925 = vlaneseq
        %v926 = vshrl.u32 %v925, 7
        %v927 = vsub.s32 %v924, %v926
        %v928 = vrot.slane %v921, %v927
        %v929 = vcombine.low %v920, %v928
        %v930 = vcombine.high %v920, %v928
        %v932 = vunpack.c.l.s4 1934713408
        %v933 = vunpack.c.0.s8 %v932
        %v934 = vlaneseq
        %v935 = vshrl.u32 %v934, 7
        %v936 = vsub.s32 %v933, %v935
        %v937 = vrot.slane %v929, %v936
        %v939 = vunpack.c.l.s4 1934713408
        %v940 = vunpack.c.0.s8 %v939
        %v941 = vlaneseq
        %v942 = vshrl.u32 %v941, 7
        %v943 = vsub.s32 %v940, %v942
        %v944 = vrot.slane %v930, %v943
        %v945 = vcombine.high %v937, 0
        %v946 = vcombine.high %v944, 0
        %v947 = vcombine.low %v684, %v700
        %v949 = vunpack.c.l.s4 1983009808
        %v950 = vunpack.c.0.s8 %v949
        %v951 = vlaneseq
        %v952 = vshrl.u32 %v951, 7
        %v953 = vsub.s32 %v950, %v952
        %v954 = vrot.slane %v947, %v953
        %v955 = vcombine.low %v692, %v708
        %v957 = vunpack.c.l.s4 1983009808
        %v958 = vunpack.c.0.s8 %v957
        %v959 = vlaneseq
        %v960 = vshrl.u32 %v959, 7
        %v961 = vsub.s32 %v958, %v960
        %v962 = vrot.slane %v955, %v961
        %v963 = vcombine.low %v954, %v962
        %v964 = vcombine.high %v954, %v962
        %v966 = vunpack.c.l.s4 1934713408
        %v967 = vunpack.c.0.s8 %v966
        %v968 = vlaneseq
        %v969 = vshrl.u32 %v968, 7
        %v970 = vsub.s32 %v967, %v969
        %v971 = vrot.slane %v963, %v970
        %v973 = vunpack.c.l.s4 1934713408
        %v974 = vunpack.c.0.s8 %v973
        %v975 = vlaneseq
        %v976 = vshrl.u32 %v975, 7
        %v977 = vsub.s32 %v974, %v976
        %v978 = vrot.slane %v964, %v977
        %v979 = vcombine.high %v971, 0
        %v980 = vcombine.high %v978, 0
        %v981 = vcombine.low %v688, %v704
        %v983 = vunpack.c.l.s4 1983009808
        %v984 = vunpack.c.0.s8 %v983
        %v985 = vlaneseq
        %v986 = vshrl.u32 %v985, 7
        %v987 = vsub.s32 %v984, %v986
        %v988 = vrot.slane %v981, %v987
        %v989 = vcombine.low %v696, %v712
        %v991 = vunpack.c.l.s4 1983009808
        %v992 = vunpack.c.0.s8 %v991
        %v993 = vlaneseq
        %v994 = vshrl.u32 %v993, 7
        %v995 = vsub.s32 %v992, %v994
        %v996 = vrot.slane %v989, %v995
        %v997 = vcombine.low %v988, %v996
        %v998 = vcombine.high %v988, %v996
        %v1000 = vunpack.c.l.s4 1934713408
        %v1001 = vunpack.c.0.s8 %v1000
        %v1002 = vlaneseq
        %v1003 = vshrl.u32 %v1002, 7
        %v1004 = vsub.s32 %v1001, %v1003
        %v1005 = vrot.slane %v997, %v1004
        %v1007 = vunpack.c.l.s4 1934713408
        %v1008 = vunpack.c.0.s8 %v1007
        %v1009 = vlaneseq
        %v1010 = vshrl.u32 %v1009, 7
        %v1011 = vsub.s32 %v1008, %v1010
        %v1012 = vrot.slane %v998, %v1011
        %v1013 = vcombine.high %v1005, 0
        %v1014 = vcombine.high %v1012, 0
        %v1017 = vpack.i.b16 %v801, %v767
        %v1018 = vshrl.u32 %v767, 16
        %v1019 = vshrl.u32 %v801, 16
        %v1020 = vpack.i.b16 %v1019, %v1018
        %v1023 = vpack.i.b16 %v809, %v775
        %v1024 = vshrl.u32 %v775, 16
        %v1025 = vshrl.u32 %v809, 16
        %v1026 = vpack.i.b16 %v1025, %v1024
        %v1029 = vpack.i.b16 %v808, %v774
        %v1030 = vshrl.u32 %v774, 16
        %v1031 = vshrl.u32 %v808, 16
        %v1032 = vpack.i.b16 %v1031, %v1030
        %v1035 = vpack.i.b16 %v810, %v776
        %v1036 = vshrl.u32 %v776, 16
        %v1037 = vshrl.u32 %v810, 16
        %v1038 = vpack.i.b16 %v1037, %v1036
        %v1041 = vpack.i.b16 %v937, %v903
        %v1042 = vshrl.u32 %v903, 16
        %v1043 = vshrl.u32 %v937, 16
        %v1044 = vpack.i.b16 %v1043, %v1042
        %v1047 = vpack.i.b16 %v945, %v911
        %v1048 = vshrl.u32 %v911, 16
        %v1049 = vshrl.u32 %v945, 16
        %v1050 = vpack.i.b16 %v1049, %v1048
        %v1053 = vpack.i.b16 %v944, %v910
        %v1054 = vshrl.u32 %v910, 16
        %v1055 = vshrl.u32 %v944, 16
        %v1056 = vpack.i.b16 %v1055, %v1054
        %v1059 = vpack.i.b16 %v946, %v912
        %v1060 = vshrl.u32 %v912, 16
        %v1061 = vshrl.u32 %v946, 16
        %v1062 = vpack.i.b16 %v1061, %v1060
        %v1065 = vpack.i.b16 %v869, %v835
        %v1066 = vshrl.u32 %v835, 16
        %v1067 = vshrl.u32 %v869, 16
        %v1068 = vpack.i.b16 %v1067, %v1066
        %v1071 = vpack.i.b16 %v877, %v843
        %v1072 = vshrl.u32 %v843, 16
        %v1073 = vshrl.u32 %v877, 16
        %v1074 = vpack.i.b16 %v1073, %v1072
        %v1077 = vpack.i.b16 %v876, %v842
        %v1078 = vshrl.u32 %v842, 16
        %v1079 = vshrl.u32 %v876, 16
        %v1080 = vpack.i.b16 %v1079, %v1078
        %v1083 = vpack.i.b16 %v878, %v844
        %v1084 = vshrl.u32 %v844, 16
        %v1085 = vshrl.u32 %v878, 16
        %v1086 = vpack.i.b16 %v1085, %v1084
        %v1089 = vpack.i.b16 %v1005, %v971
        %v1090 = vshrl.u32 %v971, 16
        %v1091 = vshrl.u32 %v1005, 16
        %v1092 = vpack.i.b16 %v1091, %v1090
        %v1095 = vpack.i.b16 %v1013, %v979
        %v1096 = vshrl.u32 %v979, 16
        %v1097 = vshrl.u32 %v1013, 16
        %v1098 = vpack.i.b16 %v1097, %v1096
        %v1101 = vpack.i.b16 %v1012, %v978
        %v1102 = vshrl.u32 %v978, 16
        %v1103 = vshrl.u32 %v1012, 16
        %v1104 = vpack.i.b16 %v1103, %v1102
        %v1107 = vpack.i.b16 %v1014, %v980
        %v1108 = vshrl.u32 %v980, 16
        %v1109 = vshrl.u32 %v1014, 16
        %v1110 = vpack.i.b16 %v1109, %v1108
        %1111 = vrot.lane.b32.xlu0 %v196, 120
        %v1112 = vpop.permute.xlu0 %1111
        %1113 = vrot.lane.b32.xlu0 %v198, 120
        %v1114 = vpop.permute.xlu0 %1113
        %1115 = vrot.lane.b32.xlu0 %v202, 120
        %v1116 = vpop.permute.xlu0 %1115
        %1117 = vrot.lane.b32.xlu0 %v204, 120
        %v1118 = vpop.permute.xlu0 %1117
        %1119 = vrot.lane.b32.xlu0 %v208, 120
        %v1120 = vpop.permute.xlu0 %1119
        %1121 = vrot.lane.b32.xlu0 %v210, 120
        %v1122 = vpop.permute.xlu0 %1121
        %1123 = vrot.lane.b32.xlu0 %v214, 120
        %v1124 = vpop.permute.xlu0 %1123
        %1125 = vrot.lane.b32.xlu0 %v216, 120
        %v1126 = vpop.permute.xlu0 %1125
        %1127 = vrot.lane.b32.xlu0 %v220, 120
        %v1128 = vpop.permute.xlu0 %1127
        %1129 = vrot.lane.b32.xlu0 %v222, 120
        %v1130 = vpop.permute.xlu0 %1129
        %1131 = vrot.lane.b32.xlu0 %v226, 120
        %v1132 = vpop.permute.xlu0 %1131
        %1133 = vrot.lane.b32.xlu0 %v228, 120
        %v1134 = vpop.permute.xlu0 %1133
        %1135 = vrot.lane.b32.xlu0 %v232, 120
        %v1136 = vpop.permute.xlu0 %1135
        %1137 = vrot.lane.b32.xlu0 %v234, 120
        %v1138 = vpop.permute.xlu0 %1137
        %1139 = vrot.lane.b32.xlu0 %v238, 120
        %v1140 = vpop.permute.xlu0 %1139
        %1141 = vrot.lane.b32.xlu0 %v240, 120
        %v1142 = vpop.permute.xlu0 %1141
        %1143 = vrot.lane.b32.xlu0 %v244, 120
        %v1144 = vpop.permute.xlu0 %1143
        %1145 = vrot.lane.b32.xlu0 %v246, 120
        %v1146 = vpop.permute.xlu0 %1145
        %1147 = vrot.lane.b32.xlu0 %v250, 120
        %v1148 = vpop.permute.xlu0 %1147
        %1149 = vrot.lane.b32.xlu0 %v252, 120
        %v1150 = vpop.permute.xlu0 %1149
        %1151 = vrot.lane.b32.xlu0 %v256, 120
        %v1152 = vpop.permute.xlu0 %1151
        %1153 = vrot.lane.b32.xlu0 %v258, 120
        %v1154 = vpop.permute.xlu0 %1153
        %1155 = vrot.lane.b32.xlu0 %v262, 120
        %v1156 = vpop.permute.xlu0 %1155
        %1157 = vrot.lane.b32.xlu0 %v264, 120
        %v1158 = vpop.permute.xlu0 %1157
        %1159 = vrot.lane.b32.xlu0 %v268, 120
        %v1160 = vpop.permute.xlu0 %1159
        %1161 = vrot.lane.b32.xlu0 %v270, 120
        %v1162 = vpop.permute.xlu0 %1161
        %1163 = vrot.lane.b32.xlu0 %v274, 120
        %v1164 = vpop.permute.xlu0 %1163
        %1165 = vrot.lane.b32.xlu0 %v276, 120
        %v1166 = vpop.permute.xlu0 %1165
        %1167 = vrot.lane.b32.xlu0 %v280, 120
        %v1168 = vpop.permute.xlu0 %1167
        %1169 = vrot.lane.b32.xlu0 %v282, 120
        %v1170 = vpop.permute.xlu0 %1169
        %v1201 = vcombine.low %v202, %v1124
        %v1203 = vunpack.c.l.s4 1983009808
        %v1204 = vunpack.c.0.s8 %v1203
        %v1205 = vlaneseq
        %v1206 = vshrl.u32 %v1205, 7
        %v1207 = vsub.s32 %v1204, %v1206
        %v1208 = vrot.slane %v1201, %v1207
        %v1209 = vcombine.low %v1116, %v1132
        %v1211 = vunpack.c.l.s4 1983009808
        %v1212 = vunpack.c.0.s8 %v1211
        %v1213 = vlaneseq
        %v1214 = vshrl.u32 %v1213, 7
        %v1215 = vsub.s32 %v1212, %v1214
        %v1216 = vrot.slane %v1209, %v1215
        %v1217 = vcombine.low %v1208, %v1216
        %v1218 = vcombine.high %v1208, %v1216
        %v1220 = vunpack.c.l.s4 1934713408
        %v1221 = vunpack.c.0.s8 %v1220
        %v1222 = vlaneseq
        %v1223 = vshrl.u32 %v1222, 7
        %v1224 = vsub.s32 %v1221, %v1223
        %v1225 = vrot.slane %v1217, %v1224
        %v1227 = vunpack.c.l.s4 1934713408
        %v1228 = vunpack.c.0.s8 %v1227
        %v1229 = vlaneseq
        %v1230 = vshrl.u32 %v1229, 7
        %v1231 = vsub.s32 %v1228, %v1230
        %v1232 = vrot.slane %v1218, %v1231
        %v1233 = vcombine.high %v1225, 0
        %v1234 = vcombine.high %v1232, 0
        %v1235 = vcombine.low %v1112, %v1128
        %v1237 = vunpack.c.l.s4 1983009808
        %v1238 = vunpack.c.0.s8 %v1237
        %v1239 = vlaneseq
        %v1240 = vshrl.u32 %v1239, 7
        %v1241 = vsub.s32 %v1238, %v1240
        %v1242 = vrot.slane %v1235, %v1241
        %v1243 = vcombine.low %v1120, %v1136
        %v1245 = vunpack.c.l.s4 1983009808
        %v1246 = vunpack.c.0.s8 %v1245
        %v1247 = vlaneseq
        %v1248 = vshrl.u32 %v1247, 7
        %v1249 = vsub.s32 %v1246, %v1248
        %v1250 = vrot.slane %v1243, %v1249
        %v1251 = vcombine.low %v1242, %v1250
        %v1252 = vcombine.high %v1242, %v1250
        %v1254 = vunpack.c.l.s4 1934713408
        %v1255 = vunpack.c.0.s8 %v1254
        %v1256 = vlaneseq
        %v1257 = vshrl.u32 %v1256, 7
        %v1258 = vsub.s32 %v1255, %v1257
        %v1259 = vrot.slane %v1251, %v1258
        %v1261 = vunpack.c.l.s4 1934713408
        %v1262 = vunpack.c.0.s8 %v1261
        %v1263 = vlaneseq
        %v1264 = vshrl.u32 %v1263, 7
        %v1265 = vsub.s32 %v1262, %v1264
        %v1266 = vrot.slane %v1252, %v1265
        %v1267 = vcombine.high %v1259, 0
        %v1268 = vcombine.high %v1266, 0
        %v1269 = vcombine.low %v1140, %v1156
        %v1271 = vunpack.c.l.s4 1983009808
        %v1272 = vunpack.c.0.s8 %v1271
        %v1273 = vlaneseq
        %v1274 = vshrl.u32 %v1273, 7
        %v1275 = vsub.s32 %v1272, %v1274
        %v1276 = vrot.slane %v1269, %v1275
        %v1277 = vcombine.low %v1148, %v1164
        %v1279 = vunpack.c.l.s4 1983009808
        %v1280 = vunpack.c.0.s8 %v1279
        %v1281 = vlaneseq
        %v1282 = vshrl.u32 %v1281, 7
        %v1283 = vsub.s32 %v1280, %v1282
        %v1284 = vrot.slane %v1277, %v1283
        %v1285 = vcombine.low %v1276, %v1284
        %v1286 = vcombine.high %v1276, %v1284
        %v1288 = vunpack.c.l.s4 1934713408
        %v1289 = vunpack.c.0.s8 %v1288
        %v1290 = vlaneseq
        %v1291 = vshrl.u32 %v1290, 7
        %v1292 = vsub.s32 %v1289, %v1291
        %v1293 = vrot.slane %v1285, %v1292
        %v1295 = vunpack.c.l.s4 1934713408
        %v1296 = vunpack.c.0.s8 %v1295
        %v1297 = vlaneseq
        %v1298 = vshrl.u32 %v1297, 7
        %v1299 = vsub.s32 %v1296, %v1298
        %v1300 = vrot.slane %v1286, %v1299
        %v1301 = vcombine.high %v1293, 0
        %v1302 = vcombine.high %v1300, 0
        %v1303 = vcombine.low %v1144, %v1160
        %v1305 = vunpack.c.l.s4 1983009808
        %v1306 = vunpack.c.0.s8 %v1305
        %v1307 = vlaneseq
        %v1308 = vshrl.u32 %v1307, 7
        %v1309 = vsub.s32 %v1306, %v1308
        %v1310 = vrot.slane %v1303, %v1309
        %v1311 = vcombine.low %v1152, %v1168
        %v1313 = vunpack.c.l.s4 1983009808
        %v1314 = vunpack.c.0.s8 %v1313
        %v1315 = vlaneseq
        %v1316 = vshrl.u32 %v1315, 7
        %v1317 = vsub.s32 %v1314, %v1316
        %v1318 = vrot.slane %v1311, %v1317
        %v1319 = vcombine.low %v1310, %v1318
        %v1320 = vcombine.high %v1310, %v1318
        %v1322 = vunpack.c.l.s4 1934713408
        %v1323 = vunpack.c.0.s8 %v1322
        %v1324 = vlaneseq
        %v1325 = vshrl.u32 %v1324, 7
        %v1326 = vsub.s32 %v1323, %v1325
        %v1327 = vrot.slane %v1319, %v1326
        %v1329 = vunpack.c.l.s4 1934713408
        %v1330 = vunpack.c.0.s8 %v1329
        %v1331 = vlaneseq
        %v1332 = vshrl.u32 %v1331, 7
        %v1333 = vsub.s32 %v1330, %v1332
        %v1334 = vrot.slane %v1320, %v1333
        %v1335 = vcombine.high %v1327, 0
        %v1336 = vcombine.high %v1334, 0
        %v1337 = vcombine.low %v204, %v1126
        %v1339 = vunpack.c.l.s4 1983009808
        %v1340 = vunpack.c.0.s8 %v1339
        %v1341 = vlaneseq
        %v1342 = vshrl.u32 %v1341, 7
        %v1343 = vsub.s32 %v1340, %v1342
        %v1344 = vrot.slane %v1337, %v1343
        %v1345 = vcombine.low %v1118, %v1134
        %v1347 = vunpack.c.l.s4 1983009808
        %v1348 = vunpack.c.0.s8 %v1347
        %v1349 = vlaneseq
        %v1350 = vshrl.u32 %v1349, 7
        %v1351 = vsub.s32 %v1348, %v1350
        %v1352 = vrot.slane %v1345, %v1351
        %v1353 = vcombine.low %v1344, %v1352
        %v1354 = vcombine.high %v1344, %v1352
        %v1356 = vunpack.c.l.s4 1934713408
        %v1357 = vunpack.c.0.s8 %v1356
        %v1358 = vlaneseq
        %v1359 = vshrl.u32 %v1358, 7
        %v1360 = vsub.s32 %v1357, %v1359
        %v1361 = vrot.slane %v1353, %v1360
        %v1363 = vunpack.c.l.s4 1934713408
        %v1364 = vunpack.c.0.s8 %v1363
        %v1365 = vlaneseq
        %v1366 = vshrl.u32 %v1365, 7
        %v1367 = vsub.s32 %v1364, %v1366
        %v1368 = vrot.slane %v1354, %v1367
        %v1369 = vcombine.high %v1361, 0
        %v1370 = vcombine.high %v1368, 0
        %v1371 = vcombine.low %v1114, %v1130
        %v1373 = vunpack.c.l.s4 1983009808
        %v1374 = vunpack.c.0.s8 %v1373
        %v1375 = vlaneseq
        %v1376 = vshrl.u32 %v1375, 7
        %v1377 = vsub.s32 %v1374, %v1376
        %v1378 = vrot.slane %v1371, %v1377
        %v1379 = vcombine.low %v1122, %v1138
        %v1381 = vunpack.c.l.s4 1983009808
        %v1382 = vunpack.c.0.s8 %v1381
        %v1383 = vlaneseq
        %v1384 = vshrl.u32 %v1383, 7
        %v1385 = vsub.s32 %v1382, %v1384
        %v1386 = vrot.slane %v1379, %v1385
        %v1387 = vcombine.low %v1378, %v1386
        %v1388 = vcombine.high %v1378, %v1386
        %v1390 = vunpack.c.l.s4 1934713408
        %v1391 = vunpack.c.0.s8 %v1390
        %v1392 = vlaneseq
        %v1393 = vshrl.u32 %v1392, 7
        %v1394 = vsub.s32 %v1391, %v1393
        %v1395 = vrot.slane %v1387, %v1394
        %v1397 = vunpack.c.l.s4 1934713408
        %v1398 = vunpack.c.0.s8 %v1397
        %v1399 = vlaneseq
        %v1400 = vshrl.u32 %v1399, 7
        %v1401 = vsub.s32 %v1398, %v1400
        %v1402 = vrot.slane %v1388, %v1401
        %v1403 = vcombine.high %v1395, 0
        %v1404 = vcombine.high %v1402, 0
        %v1405 = vcombine.low %v1142, %v1158
        %v1407 = vunpack.c.l.s4 1983009808
        %v1408 = vunpack.c.0.s8 %v1407
        %v1409 = vlaneseq
        %v1410 = vshrl.u32 %v1409, 7
        %v1411 = vsub.s32 %v1408, %v1410
        %v1412 = vrot.slane %v1405, %v1411
        %v1413 = vcombine.low %v1150, %v1166
        %v1415 = vunpack.c.l.s4 1983009808
        %v1416 = vunpack.c.0.s8 %v1415
        %v1417 = vlaneseq
        %v1418 = vshrl.u32 %v1417, 7
        %v1419 = vsub.s32 %v1416, %v1418
        %v1420 = vrot.slane %v1413, %v1419
        %v1421 = vcombine.low %v1412, %v1420
        %v1422 = vcombine.high %v1412, %v1420
        %v1424 = vunpack.c.l.s4 1934713408
        %v1425 = vunpack.c.0.s8 %v1424
        %v1426 = vlaneseq
        %v1427 = vshrl.u32 %v1426, 7
        %v1428 = vsub.s32 %v1425, %v1427
        %v1429 = vrot.slane %v1421, %v1428
        %v1431 = vunpack.c.l.s4 1934713408
        %v1432 = vunpack.c.0.s8 %v1431
        %v1433 = vlaneseq
        %v1434 = vshrl.u32 %v1433, 7
        %v1435 = vsub.s32 %v1432, %v1434
        %v1436 = vrot.slane %v1422, %v1435
        %v1437 = vcombine.high %v1429, 0
        %v1438 = vcombine.high %v1436, 0
        %v1439 = vcombine.low %v1146, %v1162
        %v1441 = vunpack.c.l.s4 1983009808
        %v1442 = vunpack.c.0.s8 %v1441
        %v1443 = vlaneseq
        %v1444 = vshrl.u32 %v1443, 7
        %v1445 = vsub.s32 %v1442, %v1444
        %v1446 = vrot.slane %v1439, %v1445
        %v1447 = vcombine.low %v1154, %v1170
        %v1449 = vunpack.c.l.s4 1983009808
        %v1450 = vunpack.c.0.s8 %v1449
        %v1451 = vlaneseq
        %v1452 = vshrl.u32 %v1451, 7
        %v1453 = vsub.s32 %v1450, %v1452
        %v1454 = vrot.slane %v1447, %v1453
        %v1455 = vcombine.low %v1446, %v1454
        %v1456 = vcombine.high %v1446, %v1454
        %v1458 = vunpack.c.l.s4 1934713408
        %v1459 = vunpack.c.0.s8 %v1458
        %v1460 = vlaneseq
        %v1461 = vshrl.u32 %v1460, 7
        %v1462 = vsub.s32 %v1459, %v1461
        %v1463 = vrot.slane %v1455, %v1462
        %v1465 = vunpack.c.l.s4 1934713408
        %v1466 = vunpack.c.0.s8 %v1465
        %v1467 = vlaneseq
        %v1468 = vshrl.u32 %v1467, 7
        %v1469 = vsub.s32 %v1466, %v1468
        %v1470 = vrot.slane %v1456, %v1469
        %v1471 = vcombine.high %v1463, 0
        %v1472 = vcombine.high %v1470, 0
        %v1475 = vpack.i.b16 %v1259, %v1225
        %v1476 = vshrl.u32 %v1225, 16
        %v1477 = vshrl.u32 %v1259, 16
        %v1478 = vpack.i.b16 %v1477, %v1476
        %v1481 = vpack.i.b16 %v1267, %v1233
        %v1482 = vshrl.u32 %v1233, 16
        %v1483 = vshrl.u32 %v1267, 16
        %v1484 = vpack.i.b16 %v1483, %v1482
        %v1487 = vpack.i.b16 %v1266, %v1232
        %v1488 = vshrl.u32 %v1232, 16
        %v1489 = vshrl.u32 %v1266, 16
        %v1490 = vpack.i.b16 %v1489, %v1488
        %v1493 = vpack.i.b16 %v1268, %v1234
        %v1494 = vshrl.u32 %v1234, 16
        %v1495 = vshrl.u32 %v1268, 16
        %v1496 = vpack.i.b16 %v1495, %v1494
        %v1499 = vpack.i.b16 %v1395, %v1361
        %v1500 = vshrl.u32 %v1361, 16
        %v1501 = vshrl.u32 %v1395, 16
        %v1502 = vpack.i.b16 %v1501, %v1500
        %v1505 = vpack.i.b16 %v1403, %v1369
        %v1506 = vshrl.u32 %v1369, 16
        %v1507 = vshrl.u32 %v1403, 16
        %v1508 = vpack.i.b16 %v1507, %v1506
        %v1511 = vpack.i.b16 %v1402, %v1368
        %v1512 = vshrl.u32 %v1368, 16
        %v1513 = vshrl.u32 %v1402, 16
        %v1514 = vpack.i.b16 %v1513, %v1512
        %v1517 = vpack.i.b16 %v1404, %v1370
        %v1518 = vshrl.u32 %v1370, 16
        %v1519 = vshrl.u32 %v1404, 16
        %v1520 = vpack.i.b16 %v1519, %v1518
        %v1523 = vpack.i.b16 %v1327, %v1293
        %v1524 = vshrl.u32 %v1293, 16
        %v1525 = vshrl.u32 %v1327, 16
        %v1526 = vpack.i.b16 %v1525, %v1524
        %v1529 = vpack.i.b16 %v1335, %v1301
        %v1530 = vshrl.u32 %v1301, 16
        %v1531 = vshrl.u32 %v1335, 16
        %v1532 = vpack.i.b16 %v1531, %v1530
        %v1535 = vpack.i.b16 %v1334, %v1300
        %v1536 = vshrl.u32 %v1300, 16
        %v1537 = vshrl.u32 %v1334, 16
        %v1538 = vpack.i.b16 %v1537, %v1536
        %v1541 = vpack.i.b16 %v1336, %v1302
        %v1542 = vshrl.u32 %v1302, 16
        %v1543 = vshrl.u32 %v1336, 16
        %v1544 = vpack.i.b16 %v1543, %v1542
        %v1547 = vpack.i.b16 %v1463, %v1429
        %v1548 = vshrl.u32 %v1429, 16
        %v1549 = vshrl.u32 %v1463, 16
        %v1550 = vpack.i.b16 %v1549, %v1548
        %v1553 = vpack.i.b16 %v1471, %v1437
        %v1554 = vshrl.u32 %v1437, 16
        %v1555 = vshrl.u32 %v1471, 16
        %v1556 = vpack.i.b16 %v1555, %v1554
        %v1559 = vpack.i.b16 %v1470, %v1436
        %v1560 = vshrl.u32 %v1436, 16
        %v1561 = vshrl.u32 %v1470, 16
        %v1562 = vpack.i.b16 %v1561, %v1560
        %v1565 = vpack.i.b16 %v1472, %v1438
        %v1566 = vshrl.u32 %v1438, 16
        %v1567 = vshrl.u32 %v1472, 16
        %v1568 = vpack.i.b16 %v1567, %v1566
        %1570 = vrot.lane.b32.xlu0 %v192, 124
        %v1571 = vpop.permute.xlu0 %1570
        %1572 = vrot.lane.b32.xlu0 %v192, 120
        %v1573 = vpop.permute.xlu0 %1572
        %1574 = vrot.lane.b32.xlu0 %v192, 116
        %v1575 = vpop.permute.xlu0 %1574
        %1576 = vrot.lane.b32.xlu0 %v192, 112
        %v1577 = vpop.permute.xlu0 %1576
        %1578 = vrot.lane.b32.xlu0 %v192, 108
        %v1579 = vpop.permute.xlu0 %1578
        %1580 = vrot.lane.b32.xlu0 %v192, 104
        %v1581 = vpop.permute.xlu0 %1580
        %1582 = vrot.lane.b32.xlu0 %v192, 100
        %v1583 = vpop.permute.xlu0 %1582
        %1584 = vrot.lane.b32.xlu0 %v192, 96
        %v1585 = vpop.permute.xlu0 %1584
        %1586 = vrot.lane.b32.xlu0 %v192, 92
        %v1587 = vpop.permute.xlu0 %1586
        %1588 = vrot.lane.b32.xlu0 %v192, 88
        %v1589 = vpop.permute.xlu0 %1588
        %1590 = vrot.lane.b32.xlu0 %v192, 84
        %v1591 = vpop.permute.xlu0 %1590
        %1592 = vrot.lane.b32.xlu0 %v192, 80
        %v1593 = vpop.permute.xlu0 %1592
        %1594 = vrot.lane.b32.xlu0 %v192, 76
        %v1595 = vpop.permute.xlu0 %1594
        %1596 = vrot.lane.b32.xlu0 %v192, 72
        %v1597 = vpop.permute.xlu0 %1596
        %1598 = vrot.lane.b32.xlu0 %v192, 68
        %v1599 = vpop.permute.xlu0 %1598
        %vm1600 = vsmask.f32 3328
        %vm1601 = vsmask.f32 7440
        %vm1602 = vmor %vm1600, %vm1601
        %v1604 = vshrl.u32 %v190, 16
        %v1606 = vrot.slane %v1604, 4
        %v1607 = vshll.u32 %v190, 16
        %v1609 = vrot.slane %v1607, 5
        %v1610 = vor.u32 %v1606, %v1609
        %v1611 = vrot.slane %v1610, 4
        %v1613 = vshll.u32 %v191, 16
        %v1615 = vrot.slane %v1613, 5
        %v1616 = vsel %vm1602, %v1611, %v1615
        %v1617 = vshrl.u32 %v191, 16
        %v1619 = vrot.slane %v1617, 4
        %v1620 = vor.u32 %v1619, %v1615
        %v1621 = vrot.slane %v1620, 4
        %v1623 = vshll.u32 %v192, 16
        %v1625 = vrot.slane %v1623, 5
        %v1626 = vsel %vm1602, %v1621, %v1625
        %v1628 = vshrl.u32 %v196, 16
        %v1630 = vrot.slane %v1628, 4
        %v1631 = vshll.u32 %v196, 16
        %v1633 = vrot.slane %v1631, 5
        %v1634 = vor.u32 %v1630, %v1633
        %v1635 = vrot.slane %v1634, 4
        %v1637 = vshll.u32 %v198, 16
        %v1639 = vrot.slane %v1637, 5
        %v1640 = vsel %vm1602, %v1635, %v1639
        %v1641 = vshrl.u32 %v198, 16
        %v1643 = vrot.slane %v1641, 4
        %v1644 = vor.u32 %v1643, %v1639
        %v1645 = vrot.slane %v1644, 4
        %v1647 = vshll.u32 %v1571, 16
        %v1649 = vrot.slane %v1647, 5
        %v1650 = vsel %vm1602, %v1645, %v1649
        %v1652 = vshrl.u32 %v202, 16
        %v1654 = vrot.slane %v1652, 4
        %v1655 = vshll.u32 %v202, 16
        %v1657 = vrot.slane %v1655, 5
        %v1658 = vor.u32 %v1654, %v1657
        %v1659 = vrot.slane %v1658, 4
        %v1661 = vshll.u32 %v204, 16
        %v1663 = vrot.slane %v1661, 5
        %v1664 = vsel %vm1602, %v1659, %v1663
        %v1665 = vshrl.u32 %v204, 16
        %v1667 = vrot.slane %v1665, 4
        %v1668 = vor.u32 %v1667, %v1663
        %v1669 = vrot.slane %v1668, 4
        %v1671 = vshll.u32 %v1573, 16
        %v1673 = vrot.slane %v1671, 5
        %v1674 = vsel %vm1602, %v1669, %v1673
        %v1676 = vshrl.u32 %v208, 16
        %v1678 = vrot.slane %v1676, 4
        %v1679 = vshll.u32 %v208, 16
        %v1681 = vrot.slane %v1679, 5
        %v1682 = vor.u32 %v1678, %v1681
        %v1683 = vrot.slane %v1682, 4
        %v1685 = vshll.u32 %v210, 16
        %v1687 = vrot.slane %v1685, 5
        %v1688 = vsel %vm1602, %v1683, %v1687
        %v1689 = vshrl.u32 %v210, 16
        %v1691 = vrot.slane %v1689, 4
        %v1692 = vor.u32 %v1691, %v1687
        %v1693 = vrot.slane %v1692, 4
        %v1695 = vshll.u32 %v1575, 16
        %v1697 = vrot.slane %v1695, 5
        %v1698 = vsel %vm1602, %v1693, %v1697
        %v1700 = vshrl.u32 %v214, 16
        %v1702 = vrot.slane %v1700, 4
        %v1703 = vshll.u32 %v214, 16
        %v1705 = vrot.slane %v1703, 5
        %v1706 = vor.u32 %v1702, %v1705
        %v1707 = vrot.slane %v1706, 4
        %v1709 = vshll.u32 %v216, 16
        %v1711 = vrot.slane %v1709, 5
        %v1712 = vsel %vm1602, %v1707, %v1711
        %v1713 = vshrl.u32 %v216, 16
        %v1715 = vrot.slane %v1713, 4
        %v1716 = vor.u32 %v1715, %v1711
        %v1717 = vrot.slane %v1716, 4
        %v1719 = vshll.u32 %v1577, 16
        %v1721 = vrot.slane %v1719, 5
        %v1722 = vsel %vm1602, %v1717, %v1721
        %v1724 = vshrl.u32 %v220, 16
        %v1726 = vrot.slane %v1724, 4
        %v1727 = vshll.u32 %v220, 16
        %v1729 = vrot.slane %v1727, 5
        %v1730 = vor.u32 %v1726, %v1729
        %v1731 = vrot.slane %v1730, 4
        %v1733 = vshll.u32 %v222, 16
        %v1735 = vrot.slane %v1733, 5
        %v1736 = vsel %vm1602, %v1731, %v1735
        %v1737 = vshrl.u32 %v222, 16
        %v1739 = vrot.slane %v1737, 4
        %v1740 = vor.u32 %v1739, %v1735
        %v1741 = vrot.slane %v1740, 4
        %v1743 = vshll.u32 %v1579, 16
        %v1745 = vrot.slane %v1743, 5
        %v1746 = vsel %vm1602, %v1741, %v1745
        %v1748 = vshrl.u32 %v226, 16
        %v1750 = vrot.slane %v1748, 4
        %v1751 = vshll.u32 %v226, 16
        %v1753 = vrot.slane %v1751, 5
        %v1754 = vor.u32 %v1750, %v1753
        %v1755 = vrot.slane %v1754, 4
        %v1757 = vshll.u32 %v228, 16
        %v1759 = vrot.slane %v1757, 5
        %v1760 = vsel %vm1602, %v1755, %v1759
        %v1761 = vshrl.u32 %v228, 16
        %v1763 = vrot.slane %v1761, 4
        %v1764 = vor.u32 %v1763, %v1759
        %v1765 = vrot.slane %v1764, 4
        %v1767 = vshll.u32 %v1581, 16
        %v1769 = vrot.slane %v1767, 5
        %v1770 = vsel %vm1602, %v1765, %v1769
        %v1772 = vshrl.u32 %v232, 16
        %v1774 = vrot.slane %v1772, 4
        %v1775 = vshll.u32 %v232, 16
        %v1777 = vrot.slane %v1775, 5
        %v1778 = vor.u32 %v1774, %v1777
        %v1779 = vrot.slane %v1778, 4
        %v1781 = vshll.u32 %v234, 16
        %v1783 = vrot.slane %v1781, 5
        %v1784 = vsel %vm1602, %v1779, %v1783
        %v1785 = vshrl.u32 %v234, 16
        %v1787 = vrot.slane %v1785, 4
        %v1788 = vor.u32 %v1787, %v1783
        %v1789 = vrot.slane %v1788, 4
        %v1791 = vshll.u32 %v1583, 16
        %v1793 = vrot.slane %v1791, 5
        %v1794 = vsel %vm1602, %v1789, %v1793
        %v1796 = vshrl.u32 %v238, 16
        %v1798 = vrot.slane %v1796, 4
        %v1799 = vshll.u32 %v238, 16
        %v1801 = vrot.slane %v1799, 5
        %v1802 = vor.u32 %v1798, %v1801
        %v1803 = vrot.slane %v1802, 4
        %v1805 = vshll.u32 %v240, 16
        %v1807 = vrot.slane %v1805, 5
        %v1808 = vsel %vm1602, %v1803, %v1807
        %v1809 = vshrl.u32 %v240, 16
        %v1811 = vrot.slane %v1809, 4
        %v1812 = vor.u32 %v1811, %v1807
        %v1813 = vrot.slane %v1812, 4
        %v1815 = vshll.u32 %v1585, 16
        %v1817 = vrot.slane %v1815, 5
        %v1818 = vsel %vm1602, %v1813, %v1817
        %v1820 = vshrl.u32 %v244, 16
        %v1822 = vrot.slane %v1820, 4
        %v1823 = vshll.u32 %v244, 16
        %v1825 = vrot.slane %v1823, 5
        %v1826 = vor.u32 %v1822, %v1825
        %v1827 = vrot.slane %v1826, 4
        %v1829 = vshll.u32 %v246, 16
        %v1831 = vrot.slane %v1829, 5
        %v1832 = vsel %vm1602, %v1827, %v1831
        %v1833 = vshrl.u32 %v246, 16
        %v1835 = vrot.slane %v1833, 4
        %v1836 = vor.u32 %v1835, %v1831
        %v1837 = vrot.slane %v1836, 4
        %v1839 = vshll.u32 %v1587, 16
        %v1841 = vrot.slane %v1839, 5
        %v1842 = vsel %vm1602, %v1837, %v1841
        %v1844 = vshrl.u32 %v250, 16
        %v1846 = vrot.slane %v1844, 4
        %v1847 = vshll.u32 %v250, 16
        %v1849 = vrot.slane %v1847, 5
        %v1850 = vor.u32 %v1846, %v1849
        %v1851 = vrot.slane %v1850, 4
        %v1853 = vshll.u32 %v252, 16
        %v1855 = vrot.slane %v1853, 5
        %v1856 = vsel %vm1602, %v1851, %v1855
        %v1857 = vshrl.u32 %v252, 16
        %v1859 = vrot.slane %v1857, 4
        %v1860 = vor.u32 %v1859, %v1855
        %v1861 = vrot.slane %v1860, 4
        %v1863 = vshll.u32 %v1589, 16
        %v1865 = vrot.slane %v1863, 5
        %v1866 = vsel %vm1602, %v1861, %v1865
        %v1868 = vshrl.u32 %v256, 16
        %v1870 = vrot.slane %v1868, 4
        %v1871 = vshll.u32 %v256, 16
        %v1873 = vrot.slane %v1871, 5
        %v1874 = vor.u32 %v1870, %v1873
        %v1875 = vrot.slane %v1874, 4
        %v1877 = vshll.u32 %v258, 16
        %v1879 = vrot.slane %v1877, 5
        %v1880 = vsel %vm1602, %v1875, %v1879
        %v1881 = vshrl.u32 %v258, 16
        %v1883 = vrot.slane %v1881, 4
        %v1884 = vor.u32 %v1883, %v1879
        %v1885 = vrot.slane %v1884, 4
        %v1887 = vshll.u32 %v1591, 16
        %v1889 = vrot.slane %v1887, 5
        %v1890 = vsel %vm1602, %v1885, %v1889
        %v1892 = vshrl.u32 %v262, 16
        %v1894 = vrot.slane %v1892, 4
        %v1895 = vshll.u32 %v262, 16
        %v1897 = vrot.slane %v1895, 5
        %v1898 = vor.u32 %v1894, %v1897
        %v1899 = vrot.slane %v1898, 4
        %v1901 = vshll.u32 %v264, 16
        %v1903 = vrot.slane %v1901, 5
        %v1904 = vsel %vm1602, %v1899, %v1903
        %v1905 = vshrl.u32 %v264, 16
        %v1907 = vrot.slane %v1905, 4
        %v1908 = vor.u32 %v1907, %v1903
        %v1909 = vrot.slane %v1908, 4
        %v1911 = vshll.u32 %v1593, 16
        %v1913 = vrot.slane %v1911, 5
        %v1914 = vsel %vm1602, %v1909, %v1913
        %v1916 = vshrl.u32 %v268, 16
        %v1918 = vrot.slane %v1916, 4
        %v1919 = vshll.u32 %v268, 16
        %v1921 = vrot.slane %v1919, 5
        %v1922 = vor.u32 %v1918, %v1921
        %v1923 = vrot.slane %v1922, 4
        %v1925 = vshll.u32 %v270, 16
        %v1927 = vrot.slane %v1925, 5
        %v1928 = vsel %vm1602, %v1923, %v1927
        %v1929 = vshrl.u32 %v270, 16
        %v1931 = vrot.slane %v1929, 4
        %v1932 = vor.u32 %v1931, %v1927
        %v1933 = vrot.slane %v1932, 4
        %v1935 = vshll.u32 %v1595, 16
        %v1937 = vrot.slane %v1935, 5
        %v1938 = vsel %vm1602, %v1933, %v1937
        %v1940 = vshrl.u32 %v274, 16
        %v1942 = vrot.slane %v1940, 4
        %v1943 = vshll.u32 %v274, 16
        %v1945 = vrot.slane %v1943, 5
        %v1946 = vor.u32 %v1942, %v1945
        %v1947 = vrot.slane %v1946, 4
        %v1949 = vshll.u32 %v276, 16
        %v1951 = vrot.slane %v1949, 5
        %v1952 = vsel %vm1602, %v1947, %v1951
        %v1953 = vshrl.u32 %v276, 16
        %v1955 = vrot.slane %v1953, 4
        %v1956 = vor.u32 %v1955, %v1951
        %v1957 = vrot.slane %v1956, 4
        %v1959 = vshll.u32 %v1597, 16
        %v1961 = vrot.slane %v1959, 5
        %v1962 = vsel %vm1602, %v1957, %v1961
        %v1964 = vshrl.u32 %v280, 16
        %v1966 = vrot.slane %v1964, 4
        %v1967 = vshll.u32 %v280, 16
        %v1969 = vrot.slane %v1967, 5
        %v1970 = vor.u32 %v1966, %v1969
        %v1971 = vrot.slane %v1970, 4
        %v1973 = vshll.u32 %v282, 16
        %v1975 = vrot.slane %v1973, 5
        %v1976 = vsel %vm1602, %v1971, %v1975
        %v1977 = vshrl.u32 %v282, 16
        %v1979 = vrot.slane %v1977, 4
        %v1980 = vor.u32 %v1979, %v1975
        %v1981 = vrot.slane %v1980, 4
        %v1983 = vshll.u32 %v1599, 16
        %v1985 = vrot.slane %v1983, 5
        %v1986 = vsel %vm1602, %v1981, %v1985
        %v2019 = vcombine.low %v1616, %v1712
        %v2021 = vunpack.c.l.s4 1983009808
        %v2022 = vunpack.c.0.s8 %v2021
        %v2023 = vlaneseq
        %v2024 = vshrl.u32 %v2023, 7
        %v2025 = vsub.s32 %v2022, %v2024
        %v2026 = vrot.slane %v2019, %v2025
        %v2027 = vcombine.low %v1664, %v1760
        %v2029 = vunpack.c.l.s4 1983009808
        %v2030 = vunpack.c.0.s8 %v2029
        %v2031 = vlaneseq
        %v2032 = vshrl.u32 %v2031, 7
        %v2033 = vsub.s32 %v2030, %v2032
        %v2034 = vrot.slane %v2027, %v2033
        %v2035 = vcombine.low %v2026, %v2034
        %v2036 = vcombine.high %v2026, %v2034
        %v2038 = vunpack.c.l.s4 1934713408
        %v2039 = vunpack.c.0.s8 %v2038
        %v2040 = vlaneseq
        %v2041 = vshrl.u32 %v2040, 7
        %v2042 = vsub.s32 %v2039, %v2041
        %v2043 = vrot.slane %v2035, %v2042
        %v2045 = vunpack.c.l.s4 1934713408
        %v2046 = vunpack.c.0.s8 %v2045
        %v2047 = vlaneseq
        %v2048 = vshrl.u32 %v2047, 7
        %v2049 = vsub.s32 %v2046, %v2048
        %v2050 = vrot.slane %v2036, %v2049
        %v2051 = vcombine.high %v2043, 0
        %v2052 = vcombine.high %v2050, 0
        %v2053 = vcombine.low %v1640, %v1736
        %v2055 = vunpack.c.l.s4 1983009808
        %v2056 = vunpack.c.0.s8 %v2055
        %v2057 = vlaneseq
        %v2058 = vshrl.u32 %v2057, 7
        %v2059 = vsub.s32 %v2056, %v2058
        %v2060 = vrot.slane %v2053, %v2059
        %v2061 = vcombine.low %v1688, %v1784
        %v2063 = vunpack.c.l.s4 1983009808
        %v2064 = vunpack.c.0.s8 %v2063
        %v2065 = vlaneseq
        %v2066 = vshrl.u32 %v2065, 7
        %v2067 = vsub.s32 %v2064, %v2066
        %v2068 = vrot.slane %v2061, %v2067
        %v2069 = vcombine.low %v2060, %v2068
        %v2070 = vcombine.high %v2060, %v2068
        %v2072 = vunpack.c.l.s4 1934713408
        %v2073 = vunpack.c.0.s8 %v2072
        %v2074 = vlaneseq
        %v2075 = vshrl.u32 %v2074, 7
        %v2076 = vsub.s32 %v2073, %v2075
        %v2077 = vrot.slane %v2069, %v2076
        %v2079 = vunpack.c.l.s4 1934713408
        %v2080 = vunpack.c.0.s8 %v2079
        %v2081 = vlaneseq
        %v2082 = vshrl.u32 %v2081, 7
        %v2083 = vsub.s32 %v2080, %v2082
        %v2084 = vrot.slane %v2070, %v2083
        %v2085 = vcombine.high %v2077, 0
        %v2086 = vcombine.high %v2084, 0
        %v2087 = vcombine.low %v1808, %v1904
        %v2089 = vunpack.c.l.s4 1983009808
        %v2090 = vunpack.c.0.s8 %v2089
        %v2091 = vlaneseq
        %v2092 = vshrl.u32 %v2091, 7
        %v2093 = vsub.s32 %v2090, %v2092
        %v2094 = vrot.slane %v2087, %v2093
        %v2095 = vcombine.low %v1856, %v1952
        %v2097 = vunpack.c.l.s4 1983009808
        %v2098 = vunpack.c.0.s8 %v2097
        %v2099 = vlaneseq
        %v2100 = vshrl.u32 %v2099, 7
        %v2101 = vsub.s32 %v2098, %v2100
        %v2102 = vrot.slane %v2095, %v2101
        %v2103 = vcombine.low %v2094, %v2102
        %v2104 = vcombine.high %v2094, %v2102
        %v2106 = vunpack.c.l.s4 1934713408
        %v2107 = vunpack.c.0.s8 %v2106
        %v2108 = vlaneseq
        %v2109 = vshrl.u32 %v2108, 7
        %v2110 = vsub.s32 %v2107, %v2109
        %v2111 = vrot.slane %v2103, %v2110
        %v2113 = vunpack.c.l.s4 1934713408
        %v2114 = vunpack.c.0.s8 %v2113
        %v2115 = vlaneseq
        %v2116 = vshrl.u32 %v2115, 7
        %v2117 = vsub.s32 %v2114, %v2116
        %v2118 = vrot.slane %v2104, %v2117
        %v2119 = vcombine.high %v2111, 0
        %v2120 = vcombine.high %v2118, 0
        %v2121 = vcombine.low %v1832, %v1928
        %v2123 = vunpack.c.l.s4 1983009808
        %v2124 = vunpack.c.0.s8 %v2123
        %v2125 = vlaneseq
        %v2126 = vshrl.u32 %v2125, 7
        %v2127 = vsub.s32 %v2124, %v2126
        %v2128 = vrot.slane %v2121, %v2127
        %v2129 = vcombine.low %v1880, %v1976
        %v2131 = vunpack.c.l.s4 1983009808
        %v2132 = vunpack.c.0.s8 %v2131
        %v2133 = vlaneseq
        %v2134 = vshrl.u32 %v2133, 7
        %v2135 = vsub.s32 %v2132, %v2134
        %v2136 = vrot.slane %v2129, %v2135
        %v2137 = vcombine.low %v2128, %v2136
        %v2138 = vcombine.high %v2128, %v2136
        %v2140 = vunpack.c.l.s4 1934713408
        %v2141 = vunpack.c.0.s8 %v2140
        %v2142 = vlaneseq
        %v2143 = vshrl.u32 %v2142, 7
        %v2144 = vsub.s32 %v2141, %v2143
        %v2145 = vrot.slane %v2137, %v2144
        %v2147 = vunpack.c.l.s4 1934713408
        %v2148 = vunpack.c.0.s8 %v2147
        %v2149 = vlaneseq
        %v2150 = vshrl.u32 %v2149, 7
        %v2151 = vsub.s32 %v2148, %v2150
        %v2152 = vrot.slane %v2138, %v2151
        %v2153 = vcombine.high %v2145, 0
        %v2154 = vcombine.high %v2152, 0
        %v2155 = vcombine.low %v1626, %v1722
        %v2157 = vunpack.c.l.s4 1983009808
        %v2158 = vunpack.c.0.s8 %v2157
        %v2159 = vlaneseq
        %v2160 = vshrl.u32 %v2159, 7
        %v2161 = vsub.s32 %v2158, %v2160
        %v2162 = vrot.slane %v2155, %v2161
        %v2163 = vcombine.low %v1674, %v1770
        %v2165 = vunpack.c.l.s4 1983009808
        %v2166 = vunpack.c.0.s8 %v2165
        %v2167 = vlaneseq
        %v2168 = vshrl.u32 %v2167, 7
        %v2169 = vsub.s32 %v2166, %v2168
        %v2170 = vrot.slane %v2163, %v2169
        %v2171 = vcombine.low %v2162, %v2170
        %v2172 = vcombine.high %v2162, %v2170
        %v2174 = vunpack.c.l.s4 1934713408
        %v2175 = vunpack.c.0.s8 %v2174
        %v2176 = vlaneseq
        %v2177 = vshrl.u32 %v2176, 7
        %v2178 = vsub.s32 %v2175, %v2177
        %v2179 = vrot.slane %v2171, %v2178
        %v2181 = vunpack.c.l.s4 1934713408
        %v2182 = vunpack.c.0.s8 %v2181
        %v2183 = vlaneseq
        %v2184 = vshrl.u32 %v2183, 7
        %v2185 = vsub.s32 %v2182, %v2184
        %v2186 = vrot.slane %v2172, %v2185
        %v2187 = vcombine.high %v2179, 0
        %v2188 = vcombine.high %v2186, 0
        %v2189 = vcombine.low %v1650, %v1746
        %v2191 = vunpack.c.l.s4 1983009808
        %v2192 = vunpack.c.0.s8 %v2191
        %v2193 = vlaneseq
        %v2194 = vshrl.u32 %v2193, 7
        %v2195 = vsub.s32 %v2192, %v2194
        %v2196 = vrot.slane %v2189, %v2195
        %v2197 = vcombine.low %v1698, %v1794
        %v2199 = vunpack.c.l.s4 1983009808
        %v2200 = vunpack.c.0.s8 %v2199
        %v2201 = vlaneseq
        %v2202 = vshrl.u32 %v2201, 7
        %v2203 = vsub.s32 %v2200, %v2202
        %v2204 = vrot.slane %v2197, %v2203
        %v2205 = vcombine.low %v2196, %v2204
        %v2206 = vcombine.high %v2196, %v2204
        %v2208 = vunpack.c.l.s4 1934713408
        %v2209 = vunpack.c.0.s8 %v2208
        %v2210 = vlaneseq
        %v2211 = vshrl.u32 %v2210, 7
        %v2212 = vsub.s32 %v2209, %v2211
        %v2213 = vrot.slane %v2205, %v2212
        %v2215 = vunpack.c.l.s4 1934713408
        %v2216 = vunpack.c.0.s8 %v2215
        %v2217 = vlaneseq
        %v2218 = vshrl.u32 %v2217, 7
        %v2219 = vsub.s32 %v2216, %v2218
        %v2220 = vrot.slane %v2206, %v2219
        %v2221 = vcombine.high %v2213, 0
        %v2222 = vcombine.high %v2220, 0
        %v2223 = vcombine.low %v1818, %v1914
        %v2225 = vunpack.c.l.s4 1983009808
        %v2226 = vunpack.c.0.s8 %v2225
        %v2227 = vlaneseq
        %v2228 = vshrl.u32 %v2227, 7
        %v2229 = vsub.s32 %v2226, %v2228
        %v2230 = vrot.slane %v2223, %v2229
        %v2231 = vcombine.low %v1866, %v1962
        %v2233 = vunpack.c.l.s4 1983009808
        %v2234 = vunpack.c.0.s8 %v2233
        %v2235 = vlaneseq
        %v2236 = vshrl.u32 %v2235, 7
        %v2237 = vsub.s32 %v2234, %v2236
        %v2238 = vrot.slane %v2231, %v2237
        %v2239 = vcombine.low %v2230, %v2238
        %v2240 = vcombine.high %v2230, %v2238
        %v2242 = vunpack.c.l.s4 1934713408
        %v2243 = vunpack.c.0.s8 %v2242
        %v2244 = vlaneseq
        %v2245 = vshrl.u32 %v2244, 7
        %v2246 = vsub.s32 %v2243, %v2245
        %v2247 = vrot.slane %v2239, %v2246
        %v2249 = vunpack.c.l.s4 1934713408
        %v2250 = vunpack.c.0.s8 %v2249
        %v2251 = vlaneseq
        %v2252 = vshrl.u32 %v2251, 7
        %v2253 = vsub.s32 %v2250, %v2252
        %v2254 = vrot.slane %v2240, %v2253
        %v2255 = vcombine.high %v2247, 0
        %v2256 = vcombine.high %v2254, 0
        %v2257 = vcombine.low %v1842, %v1938
        %v2259 = vunpack.c.l.s4 1983009808
        %v2260 = vunpack.c.0.s8 %v2259
        %v2261 = vlaneseq
        %v2262 = vshrl.u32 %v2261, 7
        %v2263 = vsub.s32 %v2260, %v2262
        %v2264 = vrot.slane %v2257, %v2263
        %v2265 = vcombine.low %v1890, %v1986
        %v2267 = vunpack.c.l.s4 1983009808
        %v2268 = vunpack.c.0.s8 %v2267
        %v2269 = vlaneseq
        %v2270 = vshrl.u32 %v2269, 7
        %v2271 = vsub.s32 %v2268, %v2270
        %v2272 = vrot.slane %v2265, %v2271
        %v2273 = vcombine.low %v2264, %v2272
        %v2274 = vcombine.high %v2264, %v2272
        %v2276 = vunpack.c.l.s4 1934713408
        %v2277 = vunpack.c.0.s8 %v2276
        %v2278 = vlaneseq
        %v2279 = vshrl.u32 %v2278, 7
        %v2280 = vsub.s32 %v2277, %v2279
        %v2281 = vrot.slane %v2273, %v2280
        %v2283 = vunpack.c.l.s4 1934713408
        %v2284 = vunpack.c.0.s8 %v2283
        %v2285 = vlaneseq
        %v2286 = vshrl.u32 %v2285, 7
        %v2287 = vsub.s32 %v2284, %v2286
        %v2288 = vrot.slane %v2274, %v2287
        %v2289 = vcombine.high %v2281, 0
        %v2290 = vcombine.high %v2288, 0
        %v2293 = vpack.i.b16 %v2077, %v2043
        %v2294 = vshrl.u32 %v2043, 16
        %v2295 = vshrl.u32 %v2077, 16
        %v2296 = vpack.i.b16 %v2295, %v2294
        %v2299 = vpack.i.b16 %v2085, %v2051
        %v2300 = vshrl.u32 %v2051, 16
        %v2301 = vshrl.u32 %v2085, 16
        %v2302 = vpack.i.b16 %v2301, %v2300
        %v2305 = vpack.i.b16 %v2084, %v2050
        %v2306 = vshrl.u32 %v2050, 16
        %v2307 = vshrl.u32 %v2084, 16
        %v2308 = vpack.i.b16 %v2307, %v2306
        %v2311 = vpack.i.b16 %v2086, %v2052
        %v2312 = vshrl.u32 %v2052, 16
        %v2313 = vshrl.u32 %v2086, 16
        %v2314 = vpack.i.b16 %v2313, %v2312
        %v2317 = vpack.i.b16 %v2213, %v2179
        %v2318 = vshrl.u32 %v2179, 16
        %v2319 = vshrl.u32 %v2213, 16
        %v2320 = vpack.i.b16 %v2319, %v2318
        %v2323 = vpack.i.b16 %v2221, %v2187
        %v2324 = vshrl.u32 %v2187, 16
        %v2325 = vshrl.u32 %v2221, 16
        %v2326 = vpack.i.b16 %v2325, %v2324
        %v2329 = vpack.i.b16 %v2220, %v2186
        %v2330 = vshrl.u32 %v2186, 16
        %v2331 = vshrl.u32 %v2220, 16
        %v2332 = vpack.i.b16 %v2331, %v2330
        %v2335 = vpack.i.b16 %v2222, %v2188
        %v2336 = vshrl.u32 %v2188, 16
        %v2337 = vshrl.u32 %v2222, 16
        %v2338 = vpack.i.b16 %v2337, %v2336
        %v2341 = vpack.i.b16 %v2145, %v2111
        %v2342 = vshrl.u32 %v2111, 16
        %v2343 = vshrl.u32 %v2145, 16
        %v2344 = vpack.i.b16 %v2343, %v2342
        %v2347 = vpack.i.b16 %v2153, %v2119
        %v2348 = vshrl.u32 %v2119, 16
        %v2349 = vshrl.u32 %v2153, 16
        %v2350 = vpack.i.b16 %v2349, %v2348
        %v2353 = vpack.i.b16 %v2152, %v2118
        %v2354 = vshrl.u32 %v2118, 16
        %v2355 = vshrl.u32 %v2152, 16
        %v2356 = vpack.i.b16 %v2355, %v2354
        %v2359 = vpack.i.b16 %v2154, %v2120
        %v2360 = vshrl.u32 %v2120, 16
        %v2361 = vshrl.u32 %v2154, 16
        %v2362 = vpack.i.b16 %v2361, %v2360
        %v2365 = vpack.i.b16 %v2281, %v2247
        %v2366 = vshrl.u32 %v2247, 16
        %v2367 = vshrl.u32 %v2281, 16
        %v2368 = vpack.i.b16 %v2367, %v2366
        %v2371 = vpack.i.b16 %v2289, %v2255
        %v2372 = vshrl.u32 %v2255, 16
        %v2373 = vshrl.u32 %v2289, 16
        %v2374 = vpack.i.b16 %v2373, %v2372
        %v2377 = vpack.i.b16 %v2288, %v2254
        %v2378 = vshrl.u32 %v2254, 16
        %v2379 = vshrl.u32 %v2288, 16
        %v2380 = vpack.i.b16 %v2379, %v2378
        %v2383 = vpack.i.b16 %v2290, %v2256
        %v2384 = vshrl.u32 %v2256, 16
        %v2385 = vshrl.u32 %v2290, 16
        %v2386 = vpack.i.b16 %v2385, %v2384
        %2387 = vrot.lane.b32.xlu0 %v1616, 124
        %v2388 = vpop.permute.xlu0 %2387
        %2389 = vrot.lane.b32.xlu0 %v1626, 124
        %v2390 = vpop.permute.xlu0 %2389
        %2391 = vrot.lane.b32.xlu0 %v1640, 124
        %v2392 = vpop.permute.xlu0 %2391
        %2393 = vrot.lane.b32.xlu0 %v1650, 124
        %v2394 = vpop.permute.xlu0 %2393
        %2395 = vrot.lane.b32.xlu0 %v1664, 124
        %v2396 = vpop.permute.xlu0 %2395
        %2397 = vrot.lane.b32.xlu0 %v1674, 124
        %v2398 = vpop.permute.xlu0 %2397
        %2399 = vrot.lane.b32.xlu0 %v1688, 124
        %v2400 = vpop.permute.xlu0 %2399
        %2401 = vrot.lane.b32.xlu0 %v1698, 124
        %v2402 = vpop.permute.xlu0 %2401
        %2403 = vrot.lane.b32.xlu0 %v1712, 124
        %v2404 = vpop.permute.xlu0 %2403
        %2405 = vrot.lane.b32.xlu0 %v1722, 124
        %v2406 = vpop.permute.xlu0 %2405
        %2407 = vrot.lane.b32.xlu0 %v1736, 124
        %v2408 = vpop.permute.xlu0 %2407
        %2409 = vrot.lane.b32.xlu0 %v1746, 124
        %v2410 = vpop.permute.xlu0 %2409
        %2411 = vrot.lane.b32.xlu0 %v1760, 124
        %v2412 = vpop.permute.xlu0 %2411
        %2413 = vrot.lane.b32.xlu0 %v1770, 124
        %v2414 = vpop.permute.xlu0 %2413
        %2415 = vrot.lane.b32.xlu0 %v1784, 124
        %v2416 = vpop.permute.xlu0 %2415
        %2417 = vrot.lane.b32.xlu0 %v1794, 124
        %v2418 = vpop.permute.xlu0 %2417
        %2419 = vrot.lane.b32.xlu0 %v1808, 124
        %v2420 = vpop.permute.xlu0 %2419
        %2421 = vrot.lane.b32.xlu0 %v1818, 124
        %v2422 = vpop.permute.xlu0 %2421
        %2423 = vrot.lane.b32.xlu0 %v1832, 124
        %v2424 = vpop.permute.xlu0 %2423
        %2425 = vrot.lane.b32.xlu0 %v1842, 124
        %v2426 = vpop.permute.xlu0 %2425
        %2427 = vrot.lane.b32.xlu0 %v1856, 124
        %v2428 = vpop.permute.xlu0 %2427
        %2429 = vrot.lane.b32.xlu0 %v1866, 124
        %v2430 = vpop.permute.xlu0 %2429
        %2431 = vrot.lane.b32.xlu0 %v1880, 124
        %v2432 = vpop.permute.xlu0 %2431
        %2433 = vrot.lane.b32.xlu0 %v1890, 124
        %v2434 = vpop.permute.xlu0 %2433
        %2435 = vrot.lane.b32.xlu0 %v1904, 124
        %v2436 = vpop.permute.xlu0 %2435
        %2437 = vrot.lane.b32.xlu0 %v1914, 124
        %v2438 = vpop.permute.xlu0 %2437
        %2439 = vrot.lane.b32.xlu0 %v1928, 124
        %v2440 = vpop.permute.xlu0 %2439
        %2441 = vrot.lane.b32.xlu0 %v1938, 124
        %v2442 = vpop.permute.xlu0 %2441
        %2443 = vrot.lane.b32.xlu0 %v1952, 124
        %v2444 = vpop.permute.xlu0 %2443
        %2445 = vrot.lane.b32.xlu0 %v1962, 124
        %v2446 = vpop.permute.xlu0 %2445
        %2447 = vrot.lane.b32.xlu0 %v1976, 124
        %v2448 = vpop.permute.xlu0 %2447
        %2449 = vrot.lane.b32.xlu0 %v1986, 124
        %v2450 = vpop.permute.xlu0 %2449
        %v2483 = vcombine.low %v2388, %v2404
        %v2485 = vunpack.c.l.s4 1983009808
        %v2486 = vunpack.c.0.s8 %v2485
        %v2487 = vlaneseq
        %v2488 = vshrl.u32 %v2487, 7
        %v2489 = vsub.s32 %v2486, %v2488
        %v2490 = vrot.slane %v2483, %v2489
        %v2491 = vcombine.low %v2396, %v2412
        %v2493 = vunpack.c.l.s4 1983009808
        %v2494 = vunpack.c.0.s8 %v2493
        %v2495 = vlaneseq
        %v2496 = vshrl.u32 %v2495, 7
        %v2497 = vsub.s32 %v2494, %v2496
        %v2498 = vrot.slane %v2491, %v2497
        %v2499 = vcombine.low %v2490, %v2498
        %v2500 = vcombine.high %v2490, %v2498
        %v2502 = vunpack.c.l.s4 1934713408
        %v2503 = vunpack.c.0.s8 %v2502
        %v2504 = vlaneseq
        %v2505 = vshrl.u32 %v2504, 7
        %v2506 = vsub.s32 %v2503, %v2505
        %v2507 = vrot.slane %v2499, %v2506
        %v2509 = vunpack.c.l.s4 1934713408
        %v2510 = vunpack.c.0.s8 %v2509
        %v2511 = vlaneseq
        %v2512 = vshrl.u32 %v2511, 7
        %v2513 = vsub.s32 %v2510, %v2512
        %v2514 = vrot.slane %v2500, %v2513
        %v2515 = vcombine.high %v2507, 0
        %v2516 = vcombine.high %v2514, 0
        %v2517 = vcombine.low %v2392, %v2408
        %v2519 = vunpack.c.l.s4 1983009808
        %v2520 = vunpack.c.0.s8 %v2519
        %v2521 = vlaneseq
        %v2522 = vshrl.u32 %v2521, 7
        %v2523 = vsub.s32 %v2520, %v2522
        %v2524 = vrot.slane %v2517, %v2523
        %v2525 = vcombine.low %v2400, %v2416
        %v2527 = vunpack.c.l.s4 1983009808
        %v2528 = vunpack.c.0.s8 %v2527
        %v2529 = vlaneseq
        %v2530 = vshrl.u32 %v2529, 7
        %v2531 = vsub.s32 %v2528, %v2530
        %v2532 = vrot.slane %v2525, %v2531
        %v2533 = vcombine.low %v2524, %v2532
        %v2534 = vcombine.high %v2524, %v2532
        %v2536 = vunpack.c.l.s4 1934713408
        %v2537 = vunpack.c.0.s8 %v2536
        %v2538 = vlaneseq
        %v2539 = vshrl.u32 %v2538, 7
        %v2540 = vsub.s32 %v2537, %v2539
        %v2541 = vrot.slane %v2533, %v2540
        %v2543 = vunpack.c.l.s4 1934713408
        %v2544 = vunpack.c.0.s8 %v2543
        %v2545 = vlaneseq
        %v2546 = vshrl.u32 %v2545, 7
        %v2547 = vsub.s32 %v2544, %v2546
        %v2548 = vrot.slane %v2534, %v2547
        %v2549 = vcombine.high %v2541, 0
        %v2550 = vcombine.high %v2548, 0
        %v2551 = vcombine.low %v2420, %v2436
        %v2553 = vunpack.c.l.s4 1983009808
        %v2554 = vunpack.c.0.s8 %v2553
        %v2555 = vlaneseq
        %v2556 = vshrl.u32 %v2555, 7
        %v2557 = vsub.s32 %v2554, %v2556
        %v2558 = vrot.slane %v2551, %v2557
        %v2559 = vcombine.low %v2428, %v2444
        %v2561 = vunpack.c.l.s4 1983009808
        %v2562 = vunpack.c.0.s8 %v2561
        %v2563 = vlaneseq
        %v2564 = vshrl.u32 %v2563, 7
        %v2565 = vsub.s32 %v2562, %v2564
        %v2566 = vrot.slane %v2559, %v2565
        %v2567 = vcombine.low %v2558, %v2566
        %v2568 = vcombine.high %v2558, %v2566
        %v2570 = vunpack.c.l.s4 1934713408
        %v2571 = vunpack.c.0.s8 %v2570
        %v2572 = vlaneseq
        %v2573 = vshrl.u32 %v2572, 7
        %v2574 = vsub.s32 %v2571, %v2573
        %v2575 = vrot.slane %v2567, %v2574
        %v2577 = vunpack.c.l.s4 1934713408
        %v2578 = vunpack.c.0.s8 %v2577
        %v2579 = vlaneseq
        %v2580 = vshrl.u32 %v2579, 7
        %v2581 = vsub.s32 %v2578, %v2580
        %v2582 = vrot.slane %v2568, %v2581
        %v2583 = vcombine.high %v2575, 0
        %v2584 = vcombine.high %v2582, 0
        %v2585 = vcombine.low %v2424, %v2440
        %v2587 = vunpack.c.l.s4 1983009808
        %v2588 = vunpack.c.0.s8 %v2587
        %v2589 = vlaneseq
        %v2590 = vshrl.u32 %v2589, 7
        %v2591 = vsub.s32 %v2588, %v2590
        %v2592 = vrot.slane %v2585, %v2591
        %v2593 = vcombine.low %v2432, %v2448
        %v2595 = vunpack.c.l.s4 1983009808
        %v2596 = vunpack.c.0.s8 %v2595
        %v2597 = vlaneseq
        %v2598 = vshrl.u32 %v2597, 7
        %v2599 = vsub.s32 %v2596, %v2598
        %v2600 = vrot.slane %v2593, %v2599
        %v2601 = vcombine.low %v2592, %v2600
        %v2602 = vcombine.high %v2592, %v2600
        %v2604 = vunpack.c.l.s4 1934713408
        %v2605 = vunpack.c.0.s8 %v2604
        %v2606 = vlaneseq
        %v2607 = vshrl.u32 %v2606, 7
        %v2608 = vsub.s32 %v2605, %v2607
        %v2609 = vrot.slane %v2601, %v2608
        %v2611 = vunpack.c.l.s4 1934713408
        %v2612 = vunpack.c.0.s8 %v2611
        %v2613 = vlaneseq
        %v2614 = vshrl.u32 %v2613, 7
        %v2615 = vsub.s32 %v2612, %v2614
        %v2616 = vrot.slane %v2602, %v2615
        %v2617 = vcombine.high %v2609, 0
        %v2618 = vcombine.high %v2616, 0
        %v2619 = vcombine.low %v2390, %v2406
        %v2621 = vunpack.c.l.s4 1983009808
        %v2622 = vunpack.c.0.s8 %v2621
        %v2623 = vlaneseq
        %v2624 = vshrl.u32 %v2623, 7
        %v2625 = vsub.s32 %v2622, %v2624
        %v2626 = vrot.slane %v2619, %v2625
        %v2627 = vcombine.low %v2398, %v2414
        %v2629 = vunpack.c.l.s4 1983009808
        %v2630 = vunpack.c.0.s8 %v2629
        %v2631 = vlaneseq
        %v2632 = vshrl.u32 %v2631, 7
        %v2633 = vsub.s32 %v2630, %v2632
        %v2634 = vrot.slane %v2627, %v2633
        %v2635 = vcombine.low %v2626, %v2634
        %v2636 = vcombine.high %v2626, %v2634
        %v2638 = vunpack.c.l.s4 1934713408
        %v2639 = vunpack.c.0.s8 %v2638
        %v2640 = vlaneseq
        %v2641 = vshrl.u32 %v2640, 7
        %v2642 = vsub.s32 %v2639, %v2641
        %v2643 = vrot.slane %v2635, %v2642
        %v2645 = vunpack.c.l.s4 1934713408
        %v2646 = vunpack.c.0.s8 %v2645
        %v2647 = vlaneseq
        %v2648 = vshrl.u32 %v2647, 7
        %v2649 = vsub.s32 %v2646, %v2648
        %v2650 = vrot.slane %v2636, %v2649
        %v2651 = vcombine.high %v2643, 0
        %v2652 = vcombine.high %v2650, 0
        %v2653 = vcombine.low %v2394, %v2410
        %v2655 = vunpack.c.l.s4 1983009808
        %v2656 = vunpack.c.0.s8 %v2655
        %v2657 = vlaneseq
        %v2658 = vshrl.u32 %v2657, 7
        %v2659 = vsub.s32 %v2656, %v2658
        %v2660 = vrot.slane %v2653, %v2659
        %v2661 = vcombine.low %v2402, %v2418
        %v2663 = vunpack.c.l.s4 1983009808
        %v2664 = vunpack.c.0.s8 %v2663
        %v2665 = vlaneseq
        %v2666 = vshrl.u32 %v2665, 7
        %v2667 = vsub.s32 %v2664, %v2666
        %v2668 = vrot.slane %v2661, %v2667
        %v2669 = vcombine.low %v2660, %v2668
        %v2670 = vcombine.high %v2660, %v2668
        %v2672 = vunpack.c.l.s4 1934713408
        %v2673 = vunpack.c.0.s8 %v2672
        %v2674 = vlaneseq
        %v2675 = vshrl.u32 %v2674, 7
        %v2676 = vsub.s32 %v2673, %v2675
        %v2677 = vrot.slane %v2669, %v2676
        %v2679 = vunpack.c.l.s4 1934713408
        %v2680 = vunpack.c.0.s8 %v2679
        %v2681 = vlaneseq
        %v2682 = vshrl.u32 %v2681, 7
        %v2683 = vsub.s32 %v2680, %v2682
        %v2684 = vrot.slane %v2670, %v2683
        %v2685 = vcombine.high %v2677, 0
        %v2686 = vcombine.high %v2684, 0
        %v2687 = vcombine.low %v2422, %v2438
        %v2689 = vunpack.c.l.s4 1983009808
        %v2690 = vunpack.c.0.s8 %v2689
        %v2691 = vlaneseq
        %v2692 = vshrl.u32 %v2691, 7
        %v2693 = vsub.s32 %v2690, %v2692
        %v2694 = vrot.slane %v2687, %v2693
        %v2695 = vcombine.low %v2430, %v2446
        %v2697 = vunpack.c.l.s4 1983009808
        %v2698 = vunpack.c.0.s8 %v2697
        %v2699 = vlaneseq
        %v2700 = vshrl.u32 %v2699, 7
        %v2701 = vsub.s32 %v2698, %v2700
        %v2702 = vrot.slane %v2695, %v2701
        %v2703 = vcombine.low %v2694, %v2702
        %v2704 = vcombine.high %v2694, %v2702
        %v2706 = vunpack.c.l.s4 1934713408
        %v2707 = vunpack.c.0.s8 %v2706
        %v2708 = vlaneseq
        %v2709 = vshrl.u32 %v2708, 7
        %v2710 = vsub.s32 %v2707, %v2709
        %v2711 = vrot.slane %v2703, %v2710
        %v2713 = vunpack.c.l.s4 1934713408
        %v2714 = vunpack.c.0.s8 %v2713
        %v2715 = vlaneseq
        %v2716 = vshrl.u32 %v2715, 7
        %v2717 = vsub.s32 %v2714, %v2716
        %v2718 = vrot.slane %v2704, %v2717
        %v2719 = vcombine.high %v2711, 0
        %v2720 = vcombine.high %v2718, 0
        %v2721 = vcombine.low %v2426, %v2442
        %v2723 = vunpack.c.l.s4 1983009808
        %v2724 = vunpack.c.0.s8 %v2723
        %v2725 = vlaneseq
        %v2726 = vshrl.u32 %v2725, 7
        %v2727 = vsub.s32 %v2724, %v2726
        %v2728 = vrot.slane %v2721, %v2727
        %v2729 = vcombine.low %v2434, %v2450
        %v2731 = vunpack.c.l.s4 1983009808
        %v2732 = vunpack.c.0.s8 %v2731
        %v2733 = vlaneseq
        %v2734 = vshrl.u32 %v2733, 7
        %v2735 = vsub.s32 %v2732, %v2734
        %v2736 = vrot.slane %v2729, %v2735
        %v2737 = vcombine.low %v2728, %v2736
        %v2738 = vcombine.high %v2728, %v2736
        %v2740 = vunpack.c.l.s4 1934713408
        %v2741 = vunpack.c.0.s8 %v2740
        %v2742 = vlaneseq
        %v2743 = vshrl.u32 %v2742, 7
        %v2744 = vsub.s32 %v2741, %v2743
        %v2745 = vrot.slane %v2737, %v2744
        %v2747 = vunpack.c.l.s4 1934713408
        %v2748 = vunpack.c.0.s8 %v2747
        %v2749 = vlaneseq
        %v2750 = vshrl.u32 %v2749, 7
        %v2751 = vsub.s32 %v2748, %v2750
        %v2752 = vrot.slane %v2738, %v2751
        %v2753 = vcombine.high %v2745, 0
        %v2754 = vcombine.high %v2752, 0
        %v2757 = vpack.i.b16 %v2541, %v2507
        %v2758 = vshrl.u32 %v2507, 16
        %v2759 = vshrl.u32 %v2541, 16
        %v2760 = vpack.i.b16 %v2759, %v2758
        %v2763 = vpack.i.b16 %v2549, %v2515
        %v2764 = vshrl.u32 %v2515, 16
        %v2765 = vshrl.u32 %v2549, 16
        %v2766 = vpack.i.b16 %v2765, %v2764
        %v2769 = vpack.i.b16 %v2548, %v2514
        %v2770 = vshrl.u32 %v2514, 16
        %v2771 = vshrl.u32 %v2548, 16
        %v2772 = vpack.i.b16 %v2771, %v2770
        %v2775 = vpack.i.b16 %v2550, %v2516
        %v2776 = vshrl.u32 %v2516, 16
        %v2777 = vshrl.u32 %v2550, 16
        %v2778 = vpack.i.b16 %v2777, %v2776
        %v2781 = vpack.i.b16 %v2677, %v2643
        %v2782 = vshrl.u32 %v2643, 16
        %v2783 = vshrl.u32 %v2677, 16
        %v2784 = vpack.i.b16 %v2783, %v2782
        %v2787 = vpack.i.b16 %v2685, %v2651
        %v2788 = vshrl.u32 %v2651, 16
        %v2789 = vshrl.u32 %v2685, 16
        %v2790 = vpack.i.b16 %v2789, %v2788
        %v2793 = vpack.i.b16 %v2684, %v2650
        %v2794 = vshrl.u32 %v2650, 16
        %v2795 = vshrl.u32 %v2684, 16
        %v2796 = vpack.i.b16 %v2795, %v2794
        %v2799 = vpack.i.b16 %v2686, %v2652
        %v2800 = vshrl.u32 %v2652, 16
        %v2801 = vshrl.u32 %v2686, 16
        %v2802 = vpack.i.b16 %v2801, %v2800
        %v2805 = vpack.i.b16 %v2609, %v2575
        %v2806 = vshrl.u32 %v2575, 16
        %v2807 = vshrl.u32 %v2609, 16
        %v2808 = vpack.i.b16 %v2807, %v2806
        %v2811 = vpack.i.b16 %v2617, %v2583
        %v2812 = vshrl.u32 %v2583, 16
        %v2813 = vshrl.u32 %v2617, 16
        %v2814 = vpack.i.b16 %v2813, %v2812
        %v2817 = vpack.i.b16 %v2616, %v2582
        %v2818 = vshrl.u32 %v2582, 16
        %v2819 = vshrl.u32 %v2616, 16
        %v2820 = vpack.i.b16 %v2819, %v2818
        %v2823 = vpack.i.b16 %v2618, %v2584
        %v2824 = vshrl.u32 %v2584, 16
        %v2825 = vshrl.u32 %v2618, 16
        %v2826 = vpack.i.b16 %v2825, %v2824
        %v2829 = vpack.i.b16 %v2745, %v2711
        %v2830 = vshrl.u32 %v2711, 16
        %v2831 = vshrl.u32 %v2745, 16
        %v2832 = vpack.i.b16 %v2831, %v2830
        %v2835 = vpack.i.b16 %v2753, %v2719
        %v2836 = vshrl.u32 %v2719, 16
        %v2837 = vshrl.u32 %v2753, 16
        %v2838 = vpack.i.b16 %v2837, %v2836
        %v2841 = vpack.i.b16 %v2752, %v2718
        %v2842 = vshrl.u32 %v2718, 16
        %v2843 = vshrl.u32 %v2752, 16
        %v2844 = vpack.i.b16 %v2843, %v2842
        %v2847 = vpack.i.b16 %v2754, %v2720
        %v2848 = vshrl.u32 %v2720, 16
        %v2849 = vshrl.u32 %v2754, 16
        %v2850 = vpack.i.b16 %v2849, %v2848
        %2851 = vrot.lane.b32.xlu0 %v1616, 120
        %v2852 = vpop.permute.xlu0 %2851
        %2853 = vrot.lane.b32.xlu0 %v1626, 120
        %v2854 = vpop.permute.xlu0 %2853
        %2855 = vrot.lane.b32.xlu0 %v1640, 120
        %v2856 = vpop.permute.xlu0 %2855
        %2857 = vrot.lane.b32.xlu0 %v1650, 120
        %v2858 = vpop.permute.xlu0 %2857
        %2859 = vrot.lane.b32.xlu0 %v1664, 120
        %v2860 = vpop.permute.xlu0 %2859
        %2861 = vrot.lane.b32.xlu0 %v1674, 120
        %v2862 = vpop.permute.xlu0 %2861
        %2863 = vrot.lane.b32.xlu0 %v1688, 120
        %v2864 = vpop.permute.xlu0 %2863
        %2865 = vrot.lane.b32.xlu0 %v1698, 120
        %v2866 = vpop.permute.xlu0 %2865
        %2867 = vrot.lane.b32.xlu0 %v1712, 120
        %v2868 = vpop.permute.xlu0 %2867
        %2869 = vrot.lane.b32.xlu0 %v1722, 120
        %v2870 = vpop.permute.xlu0 %2869
        %2871 = vrot.lane.b32.xlu0 %v1736, 120
        %v2872 = vpop.permute.xlu0 %2871
        %2873 = vrot.lane.b32.xlu0 %v1746, 120
        %v2874 = vpop.permute.xlu0 %2873
        %2875 = vrot.lane.b32.xlu0 %v1760, 120
        %v2876 = vpop.permute.xlu0 %2875
        %2877 = vrot.lane.b32.xlu0 %v1770, 120
        %v2878 = vpop.permute.xlu0 %2877
        %2879 = vrot.lane.b32.xlu0 %v1784, 120
        %v2880 = vpop.permute.xlu0 %2879
        %2881 = vrot.lane.b32.xlu0 %v1794, 120
        %v2882 = vpop.permute.xlu0 %2881
        %2883 = vrot.lane.b32.xlu0 %v1808, 120
        %v2884 = vpop.permute.xlu0 %2883
        %2885 = vrot.lane.b32.xlu0 %v1818, 120
        %v2886 = vpop.permute.xlu0 %2885
        %2887 = vrot.lane.b32.xlu0 %v1832, 120
        %v2888 = vpop.permute.xlu0 %2887
        %2889 = vrot.lane.b32.xlu0 %v1842, 120
        %v2890 = vpop.permute.xlu0 %2889
        %2891 = vrot.lane.b32.xlu0 %v1856, 120
        %v2892 = vpop.permute.xlu0 %2891
        %2893 = vrot.lane.b32.xlu0 %v1866, 120
        %v2894 = vpop.permute.xlu0 %2893
        %2895 = vrot.lane.b32.xlu0 %v1880, 120
        %v2896 = vpop.permute.xlu0 %2895
        %2897 = vrot.lane.b32.xlu0 %v1890, 120
        %v2898 = vpop.permute.xlu0 %2897
        %2899 = vrot.lane.b32.xlu0 %v1904, 120
        %v2900 = vpop.permute.xlu0 %2899
        %2901 = vrot.lane.b32.xlu0 %v1914, 120
        %v2902 = vpop.permute.xlu0 %2901
        %2903 = vrot.lane.b32.xlu0 %v1928, 120
        %v2904 = vpop.permute.xlu0 %2903
        %2905 = vrot.lane.b32.xlu0 %v1938, 120
        %v2906 = vpop.permute.xlu0 %2905
        %2907 = vrot.lane.b32.xlu0 %v1952, 120
        %v2908 = vpop.permute.xlu0 %2907
        %2909 = vrot.lane.b32.xlu0 %v1962, 120
        %v2910 = vpop.permute.xlu0 %2909
        %2911 = vrot.lane.b32.xlu0 %v1976, 120
        %v2912 = vpop.permute.xlu0 %2911
        %2913 = vrot.lane.b32.xlu0 %v1986, 120
        %v2914 = vpop.permute.xlu0 %2913
        %v2947 = vcombine.low %v2852, %v2868
        %v2949 = vunpack.c.l.s4 1983009808
        %v2950 = vunpack.c.0.s8 %v2949
        %v2951 = vlaneseq
        %v2952 = vshrl.u32 %v2951, 7
        %v2953 = vsub.s32 %v2950, %v2952
        %v2954 = vrot.slane %v2947, %v2953
        %v2955 = vcombine.low %v2860, %v2876
        %v2957 = vunpack.c.l.s4 1983009808
        %v2958 = vunpack.c.0.s8 %v2957
        %v2959 = vlaneseq
        %v2960 = vshrl.u32 %v2959, 7
        %v2961 = vsub.s32 %v2958, %v2960
        %v2962 = vrot.slane %v2955, %v2961
        %v2963 = vcombine.low %v2954, %v2962
        %v2964 = vcombine.high %v2954, %v2962
        %v2966 = vunpack.c.l.s4 1934713408
        %v2967 = vunpack.c.0.s8 %v2966
        %v2968 = vlaneseq
        %v2969 = vshrl.u32 %v2968, 7
        %v2970 = vsub.s32 %v2967, %v2969
        %v2971 = vrot.slane %v2963, %v2970
        %v2973 = vunpack.c.l.s4 1934713408
        %v2974 = vunpack.c.0.s8 %v2973
        %v2975 = vlaneseq
        %v2976 = vshrl.u32 %v2975, 7
        %v2977 = vsub.s32 %v2974, %v2976
        %v2978 = vrot.slane %v2964, %v2977
        %v2979 = vcombine.high %v2971, 0
        %v2980 = vcombine.high %v2978, 0
        %v2981 = vcombine.low %v2856, %v2872
        %v2983 = vunpack.c.l.s4 1983009808
        %v2984 = vunpack.c.0.s8 %v2983
        %v2985 = vlaneseq
        %v2986 = vshrl.u32 %v2985, 7
        %v2987 = vsub.s32 %v2984, %v2986
        %v2988 = vrot.slane %v2981, %v2987
        %v2989 = vcombine.low %v2864, %v2880
        %v2991 = vunpack.c.l.s4 1983009808
        %v2992 = vunpack.c.0.s8 %v2991
        %v2993 = vlaneseq
        %v2994 = vshrl.u32 %v2993, 7
        %v2995 = vsub.s32 %v2992, %v2994
        %v2996 = vrot.slane %v2989, %v2995
        %v2997 = vcombine.low %v2988, %v2996
        %v2998 = vcombine.high %v2988, %v2996
        %v3000 = vunpack.c.l.s4 1934713408
        %v3001 = vunpack.c.0.s8 %v3000
        %v3002 = vlaneseq
        %v3003 = vshrl.u32 %v3002, 7
        %v3004 = vsub.s32 %v3001, %v3003
        %v3005 = vrot.slane %v2997, %v3004
        %v3007 = vunpack.c.l.s4 1934713408
        %v3008 = vunpack.c.0.s8 %v3007
        %v3009 = vlaneseq
        %v3010 = vshrl.u32 %v3009, 7
        %v3011 = vsub.s32 %v3008, %v3010
        %v3012 = vrot.slane %v2998, %v3011
        %v3013 = vcombine.high %v3005, 0
        %v3014 = vcombine.high %v3012, 0
        %v3015 = vcombine.low %v2884, %v2900
        %v3017 = vunpack.c.l.s4 1983009808
        %v3018 = vunpack.c.0.s8 %v3017
        %v3019 = vlaneseq
        %v3020 = vshrl.u32 %v3019, 7
        %v3021 = vsub.s32 %v3018, %v3020
        %v3022 = vrot.slane %v3015, %v3021
        %v3023 = vcombine.low %v2892, %v2908
        %v3025 = vunpack.c.l.s4 1983009808
        %v3026 = vunpack.c.0.s8 %v3025
        %v3027 = vlaneseq
        %v3028 = vshrl.u32 %v3027, 7
        %v3029 = vsub.s32 %v3026, %v3028
        %v3030 = vrot.slane %v3023, %v3029
        %v3031 = vcombine.low %v3022, %v3030
        %v3032 = vcombine.high %v3022, %v3030
        %v3034 = vunpack.c.l.s4 1934713408
        %v3035 = vunpack.c.0.s8 %v3034
        %v3036 = vlaneseq
        %v3037 = vshrl.u32 %v3036, 7
        %v3038 = vsub.s32 %v3035, %v3037
        %v3039 = vrot.slane %v3031, %v3038
        %v3041 = vunpack.c.l.s4 1934713408
        %v3042 = vunpack.c.0.s8 %v3041
        %v3043 = vlaneseq
        %v3044 = vshrl.u32 %v3043, 7
        %v3045 = vsub.s32 %v3042, %v3044
        %v3046 = vrot.slane %v3032, %v3045
        %v3047 = vcombine.high %v3039, 0
        %v3048 = vcombine.high %v3046, 0
        %v3049 = vcombine.low %v2888, %v2904
        %v3051 = vunpack.c.l.s4 1983009808
        %v3052 = vunpack.c.0.s8 %v3051
        %v3053 = vlaneseq
        %v3054 = vshrl.u32 %v3053, 7
        %v3055 = vsub.s32 %v3052, %v3054
        %v3056 = vrot.slane %v3049, %v3055
        %v3057 = vcombine.low %v2896, %v2912
        %v3059 = vunpack.c.l.s4 1983009808
        %v3060 = vunpack.c.0.s8 %v3059
        %v3061 = vlaneseq
        %v3062 = vshrl.u32 %v3061, 7
        %v3063 = vsub.s32 %v3060, %v3062
        %v3064 = vrot.slane %v3057, %v3063
        %v3065 = vcombine.low %v3056, %v3064
        %v3066 = vcombine.high %v3056, %v3064
        %v3068 = vunpack.c.l.s4 1934713408
        %v3069 = vunpack.c.0.s8 %v3068
        %v3070 = vlaneseq
        %v3071 = vshrl.u32 %v3070, 7
        %v3072 = vsub.s32 %v3069, %v3071
        %v3073 = vrot.slane %v3065, %v3072
        %v3075 = vunpack.c.l.s4 1934713408
        %v3076 = vunpack.c.0.s8 %v3075
        %v3077 = vlaneseq
        %v3078 = vshrl.u32 %v3077, 7
        %v3079 = vsub.s32 %v3076, %v3078
        %v3080 = vrot.slane %v3066, %v3079
        %v3081 = vcombine.high %v3073, 0
        %v3082 = vcombine.high %v3080, 0
        %v3083 = vcombine.low %v2854, %v2870
        %v3085 = vunpack.c.l.s4 1983009808
        %v3086 = vunpack.c.0.s8 %v3085
        %v3087 = vlaneseq
        %v3088 = vshrl.u32 %v3087, 7
        %v3089 = vsub.s32 %v3086, %v3088
        %v3090 = vrot.slane %v3083, %v3089
        %v3091 = vcombine.low %v2862, %v2878
        %v3093 = vunpack.c.l.s4 1983009808
        %v3094 = vunpack.c.0.s8 %v3093
        %v3095 = vlaneseq
        %v3096 = vshrl.u32 %v3095, 7
        %v3097 = vsub.s32 %v3094, %v3096
        %v3098 = vrot.slane %v3091, %v3097
        %v3099 = vcombine.low %v3090, %v3098
        %v3100 = vcombine.high %v3090, %v3098
        %v3102 = vunpack.c.l.s4 1934713408
        %v3103 = vunpack.c.0.s8 %v3102
        %v3104 = vlaneseq
        %v3105 = vshrl.u32 %v3104, 7
        %v3106 = vsub.s32 %v3103, %v3105
        %v3107 = vrot.slane %v3099, %v3106
        %v3109 = vunpack.c.l.s4 1934713408
        %v3110 = vunpack.c.0.s8 %v3109
        %v3111 = vlaneseq
        %v3112 = vshrl.u32 %v3111, 7
        %v3113 = vsub.s32 %v3110, %v3112
        %v3114 = vrot.slane %v3100, %v3113
        %v3115 = vcombine.high %v3107, 0
        %v3116 = vcombine.high %v3114, 0
        %v3117 = vcombine.low %v2858, %v2874
        %v3119 = vunpack.c.l.s4 1983009808
        %v3120 = vunpack.c.0.s8 %v3119
        %v3121 = vlaneseq
        %v3122 = vshrl.u32 %v3121, 7
        %v3123 = vsub.s32 %v3120, %v3122
        %v3124 = vrot.slane %v3117, %v3123
        %v3125 = vcombine.low %v2866, %v2882
        %v3127 = vunpack.c.l.s4 1983009808
        %v3128 = vunpack.c.0.s8 %v3127
        %v3129 = vlaneseq
        %v3130 = vshrl.u32 %v3129, 7
        %v3131 = vsub.s32 %v3128, %v3130
        %v3132 = vrot.slane %v3125, %v3131
        %v3133 = vcombine.low %v3124, %v3132
        %v3134 = vcombine.high %v3124, %v3132
        %v3136 = vunpack.c.l.s4 1934713408
        %v3137 = vunpack.c.0.s8 %v3136
        %v3138 = vlaneseq
        %v3139 = vshrl.u32 %v3138, 7
        %v3140 = vsub.s32 %v3137, %v3139
        %v3141 = vrot.slane %v3133, %v3140
        %v3143 = vunpack.c.l.s4 1934713408
        %v3144 = vunpack.c.0.s8 %v3143
        %v3145 = vlaneseq
        %v3146 = vshrl.u32 %v3145, 7
        %v3147 = vsub.s32 %v3144, %v3146
        %v3148 = vrot.slane %v3134, %v3147
        %v3149 = vcombine.high %v3141, 0
        %v3150 = vcombine.high %v3148, 0
        %v3151 = vcombine.low %v2886, %v2902
        %v3153 = vunpack.c.l.s4 1983009808
        %v3154 = vunpack.c.0.s8 %v3153
        %v3155 = vlaneseq
        %v3156 = vshrl.u32 %v3155, 7
        %v3157 = vsub.s32 %v3154, %v3156
        %v3158 = vrot.slane %v3151, %v3157
        %v3159 = vcombine.low %v2894, %v2910
        %v3161 = vunpack.c.l.s4 1983009808
        %v3162 = vunpack.c.0.s8 %v3161
        %v3163 = vlaneseq
        %v3164 = vshrl.u32 %v3163, 7
        %v3165 = vsub.s32 %v3162, %v3164
        %v3166 = vrot.slane %v3159, %v3165
        %v3167 = vcombine.low %v3158, %v3166
        %v3168 = vcombine.high %v3158, %v3166
        %v3170 = vunpack.c.l.s4 1934713408
        %v3171 = vunpack.c.0.s8 %v3170
        %v3172 = vlaneseq
        %v3173 = vshrl.u32 %v3172, 7
        %v3174 = vsub.s32 %v3171, %v3173
        %v3175 = vrot.slane %v3167, %v3174
        %v3177 = vunpack.c.l.s4 1934713408
        %v3178 = vunpack.c.0.s8 %v3177
        %v3179 = vlaneseq
        %v3180 = vshrl.u32 %v3179, 7
        %v3181 = vsub.s32 %v3178, %v3180
        %v3182 = vrot.slane %v3168, %v3181
        %v3183 = vcombine.high %v3175, 0
        %v3184 = vcombine.high %v3182, 0
        %v3185 = vcombine.low %v2890, %v2906
        %v3187 = vunpack.c.l.s4 1983009808
        %v3188 = vunpack.c.0.s8 %v3187
        %v3189 = vlaneseq
        %v3190 = vshrl.u32 %v3189, 7
        %v3191 = vsub.s32 %v3188, %v3190
        %v3192 = vrot.slane %v3185, %v3191
        %v3193 = vcombine.low %v2898, %v2914
        %v3195 = vunpack.c.l.s4 1983009808
        %v3196 = vunpack.c.0.s8 %v3195
        %v3197 = vlaneseq
        %v3198 = vshrl.u32 %v3197, 7
        %v3199 = vsub.s32 %v3196, %v3198
        %v3200 = vrot.slane %v3193, %v3199
        %v3201 = vcombine.low %v3192, %v3200
        %v3202 = vcombine.high %v3192, %v3200
        %v3204 = vunpack.c.l.s4 1934713408
        %v3205 = vunpack.c.0.s8 %v3204
        %v3206 = vlaneseq
        %v3207 = vshrl.u32 %v3206, 7
        %v3208 = vsub.s32 %v3205, %v3207
        %v3209 = vrot.slane %v3201, %v3208
        %v3211 = vunpack.c.l.s4 1934713408
        %v3212 = vunpack.c.0.s8 %v3211
        %v3213 = vlaneseq
        %v3214 = vshrl.u32 %v3213, 7
        %v3215 = vsub.s32 %v3212, %v3214
        %v3216 = vrot.slane %v3202, %v3215
        %v3217 = vcombine.high %v3209, 0
        %v3218 = vcombine.high %v3216, 0
        %v3221 = vpack.i.b16 %v3005, %v2971
        %v3222 = vshrl.u32 %v2971, 16
        %v3223 = vshrl.u32 %v3005, 16
        %v3224 = vpack.i.b16 %v3223, %v3222
        %v3227 = vpack.i.b16 %v3013, %v2979
        %v3228 = vshrl.u32 %v2979, 16
        %v3229 = vshrl.u32 %v3013, 16
        %v3230 = vpack.i.b16 %v3229, %v3228
        %v3233 = vpack.i.b16 %v3012, %v2978
        %v3234 = vshrl.u32 %v2978, 16
        %v3235 = vshrl.u32 %v3012, 16
        %v3236 = vpack.i.b16 %v3235, %v3234
        %v3239 = vpack.i.b16 %v3014, %v2980
        %v3240 = vshrl.u32 %v2980, 16
        %v3241 = vshrl.u32 %v3014, 16
        %v3242 = vpack.i.b16 %v3241, %v3240
        %v3245 = vpack.i.b16 %v3141, %v3107
        %v3246 = vshrl.u32 %v3107, 16
        %v3247 = vshrl.u32 %v3141, 16
        %v3248 = vpack.i.b16 %v3247, %v3246
        %v3251 = vpack.i.b16 %v3149, %v3115
        %v3252 = vshrl.u32 %v3115, 16
        %v3253 = vshrl.u32 %v3149, 16
        %v3254 = vpack.i.b16 %v3253, %v3252
        %v3257 = vpack.i.b16 %v3148, %v3114
        %v3258 = vshrl.u32 %v3114, 16
        %v3259 = vshrl.u32 %v3148, 16
        %v3260 = vpack.i.b16 %v3259, %v3258
        %v3263 = vpack.i.b16 %v3150, %v3116
        %v3264 = vshrl.u32 %v3116, 16
        %v3265 = vshrl.u32 %v3150, 16
        %v3266 = vpack.i.b16 %v3265, %v3264
        %v3269 = vpack.i.b16 %v3073, %v3039
        %v3270 = vshrl.u32 %v3039, 16
        %v3271 = vshrl.u32 %v3073, 16
        %v3272 = vpack.i.b16 %v3271, %v3270
        %v3275 = vpack.i.b16 %v3081, %v3047
        %v3276 = vshrl.u32 %v3047, 16
        %v3277 = vshrl.u32 %v3081, 16
        %v3278 = vpack.i.b16 %v3277, %v3276
        %v3281 = vpack.i.b16 %v3080, %v3046
        %v3282 = vshrl.u32 %v3046, 16
        %v3283 = vshrl.u32 %v3080, 16
        %v3284 = vpack.i.b16 %v3283, %v3282
        %v3287 = vpack.i.b16 %v3082, %v3048
        %v3288 = vshrl.u32 %v3048, 16
        %v3289 = vshrl.u32 %v3082, 16
        %v3290 = vpack.i.b16 %v3289, %v3288
        %v3293 = vpack.i.b16 %v3209, %v3175
        %v3294 = vshrl.u32 %v3175, 16
        %v3295 = vshrl.u32 %v3209, 16
        %v3296 = vpack.i.b16 %v3295, %v3294
        %v3299 = vpack.i.b16 %v3217, %v3183
        %v3300 = vshrl.u32 %v3183, 16
        %v3301 = vshrl.u32 %v3217, 16
        %v3302 = vpack.i.b16 %v3301, %v3300
        %v3305 = vpack.i.b16 %v3216, %v3182
        %v3306 = vshrl.u32 %v3182, 16
        %v3307 = vshrl.u32 %v3216, 16
        %v3308 = vpack.i.b16 %v3307, %v3306
        %v3311 = vpack.i.b16 %v3218, %v3184
        %v3312 = vshrl.u32 %v3184, 16
        %v3313 = vshrl.u32 %v3218, 16
        %v3314 = vpack.i.b16 %v3313, %v3312
        %vm3315 = vcmask 1042432
        %vm3316 = vcmask 1046532
        %vm3317 = vmor %vm3315, %vm3316
        %v3318 = vrot.slane %v190, 5
        %v3319 = vrot.slane %v3318, 4
        %v3320 = vrot.slane %v191, 5
        %v3321 = vsel %vm3317, %v3319, %v3320
        %v3322 = vrot.slane %v3320, 4
        %v3323 = vrot.slane %v192, 5
        %v3324 = vsel %vm3317, %v3322, %v3323
        %v3325 = vrot.slane %v196, 5
        %v3326 = vrot.slane %v3325, 4
        %v3327 = vrot.slane %v198, 5
        %v3328 = vsel %vm3317, %v3326, %v3327
        %v3329 = vrot.slane %v3327, 4
        %v3330 = vrot.slane %v1571, 5
        %v3331 = vsel %vm3317, %v3329, %v3330
        %v3332 = vrot.slane %v202, 5
        %v3333 = vrot.slane %v3332, 4
        %v3334 = vrot.slane %v204, 5
        %v3335 = vsel %vm3317, %v3333, %v3334
        %v3336 = vrot.slane %v3334, 4
        %v3337 = vrot.slane %v1573, 5
        %v3338 = vsel %vm3317, %v3336, %v3337
        %v3339 = vrot.slane %v208, 5
        %v3340 = vrot.slane %v3339, 4
        %v3341 = vrot.slane %v210, 5
        %v3342 = vsel %vm3317, %v3340, %v3341
        %v3343 = vrot.slane %v3341, 4
        %v3344 = vrot.slane %v1575, 5
        %v3345 = vsel %vm3317, %v3343, %v3344
        %v3346 = vrot.slane %v214, 5
        %v3347 = vrot.slane %v3346, 4
        %v3348 = vrot.slane %v216, 5
        %v3349 = vsel %vm3317, %v3347, %v3348
        %v3350 = vrot.slane %v3348, 4
        %v3351 = vrot.slane %v1577, 5
        %v3352 = vsel %vm3317, %v3350, %v3351
        %v3353 = vrot.slane %v220, 5
        %v3354 = vrot.slane %v3353, 4
        %v3355 = vrot.slane %v222, 5
        %v3356 = vsel %vm3317, %v3354, %v3355
        %v3357 = vrot.slane %v3355, 4
        %v3358 = vrot.slane %v1579, 5
        %v3359 = vsel %vm3317, %v3357, %v3358
        %v3360 = vrot.slane %v226, 5
        %v3361 = vrot.slane %v3360, 4
        %v3362 = vrot.slane %v228, 5
        %v3363 = vsel %vm3317, %v3361, %v3362
        %v3364 = vrot.slane %v3362, 4
        %v3365 = vrot.slane %v1581, 5
        %v3366 = vsel %vm3317, %v3364, %v3365
        %v3367 = vrot.slane %v232, 5
        %v3368 = vrot.slane %v3367, 4
        %v3369 = vrot.slane %v234, 5
        %v3370 = vsel %vm3317, %v3368, %v3369
        %v3371 = vrot.slane %v3369, 4
        %v3372 = vrot.slane %v1583, 5
        %v3373 = vsel %vm3317, %v3371, %v3372
        %v3374 = vrot.slane %v238, 5
        %v3375 = vrot.slane %v3374, 4
        %v3376 = vrot.slane %v240, 5
        %v3377 = vsel %vm3317, %v3375, %v3376
        %v3378 = vrot.slane %v3376, 4
        %v3379 = vrot.slane %v1585, 5
        %v3380 = vsel %vm3317, %v3378, %v3379
        %v3381 = vrot.slane %v244, 5
        %v3382 = vrot.slane %v3381, 4
        %v3383 = vrot.slane %v246, 5
        %v3384 = vsel %vm3317, %v3382, %v3383
        %v3385 = vrot.slane %v3383, 4
        %v3386 = vrot.slane %v1587, 5
        %v3387 = vsel %vm3317, %v3385, %v3386
        %v3388 = vrot.slane %v250, 5
        %v3389 = vrot.slane %v3388, 4
        %v3390 = vrot.slane %v252, 5
        %v3391 = vsel %vm3317, %v3389, %v3390
        %v3392 = vrot.slane %v3390, 4
        %v3393 = vrot.slane %v1589, 5
        %v3394 = vsel %vm3317, %v3392, %v3393
        %v3395 = vrot.slane %v256, 5
        %v3396 = vrot.slane %v3395, 4
        %v3397 = vrot.slane %v258, 5
        %v3398 = vsel %vm3317, %v3396, %v3397
        %v3399 = vrot.slane %v3397, 4
        %v3400 = vrot.slane %v1591, 5
        %v3401 = vsel %vm3317, %v3399, %v3400
        %v3402 = vrot.slane %v262, 5
        %v3403 = vrot.slane %v3402, 4
        %v3404 = vrot.slane %v264, 5
        %v3405 = vsel %vm3317, %v3403, %v3404
        %v3406 = vrot.slane %v3404, 4
        %v3407 = vrot.slane %v1593, 5
        %v3408 = vsel %vm3317, %v3406, %v3407
        %v3409 = vrot.slane %v268, 5
        %v3410 = vrot.slane %v3409, 4
        %v3411 = vrot.slane %v270, 5
        %v3412 = vsel %vm3317, %v3410, %v3411
        %v3413 = vrot.slane %v3411, 4
        %v3414 = vrot.slane %v1595, 5
        %v3415 = vsel %vm3317, %v3413, %v3414
        %v3416 = vrot.slane %v274, 5
        %v3417 = vrot.slane %v3416, 4
        %v3418 = vrot.slane %v276, 5
        %v3419 = vsel %vm3317, %v3417, %v3418
        %v3420 = vrot.slane %v3418, 4
        %v3421 = vrot.slane %v1597, 5
        %v3422 = vsel %vm3317, %v3420, %v3421
        %v3423 = vrot.slane %v280, 5
        %v3424 = vrot.slane %v3423, 4
        %v3425 = vrot.slane %v282, 5
        %v3426 = vsel %vm3317, %v3424, %v3425
        %v3427 = vrot.slane %v3425, 4
        %v3428 = vrot.slane %v1599, 5
        %v3429 = vsel %vm3317, %v3427, %v3428
        %v3462 = vcombine.low %v3321, %v3349
        %v3464 = vunpack.c.l.s4 1983009808
        %v3465 = vunpack.c.0.s8 %v3464
        %v3466 = vlaneseq
        %v3467 = vshrl.u32 %v3466, 7
        %v3468 = vsub.s32 %v3465, %v3467
        %v3469 = vrot.slane %v3462, %v3468
        %v3470 = vcombine.low %v3335, %v3363
        %v3472 = vunpack.c.l.s4 1983009808
        %v3473 = vunpack.c.0.s8 %v3472
        %v3474 = vlaneseq
        %v3475 = vshrl.u32 %v3474, 7
        %v3476 = vsub.s32 %v3473, %v3475
        %v3477 = vrot.slane %v3470, %v3476
        %v3478 = vcombine.low %v3469, %v3477
        %v3479 = vcombine.high %v3469, %v3477
        %v3481 = vunpack.c.l.s4 1934713408
        %v3482 = vunpack.c.0.s8 %v3481
        %v3483 = vlaneseq
        %v3484 = vshrl.u32 %v3483, 7
        %v3485 = vsub.s32 %v3482, %v3484
        %v3486 = vrot.slane %v3478, %v3485
        %v3488 = vunpack.c.l.s4 1934713408
        %v3489 = vunpack.c.0.s8 %v3488
        %v3490 = vlaneseq
        %v3491 = vshrl.u32 %v3490, 7
        %v3492 = vsub.s32 %v3489, %v3491
        %v3493 = vrot.slane %v3479, %v3492
        %v3494 = vcombine.high %v3486, 0
        %v3495 = vcombine.high %v3493, 0
        %v3496 = vcombine.low %v3328, %v3356
        %v3498 = vunpack.c.l.s4 1983009808
        %v3499 = vunpack.c.0.s8 %v3498
        %v3500 = vlaneseq
        %v3501 = vshrl.u32 %v3500, 7
        %v3502 = vsub.s32 %v3499, %v3501
        %v3503 = vrot.slane %v3496, %v3502
        %v3504 = vcombine.low %v3342, %v3370
        %v3506 = vunpack.c.l.s4 1983009808
        %v3507 = vunpack.c.0.s8 %v3506
        %v3508 = vlaneseq
        %v3509 = vshrl.u32 %v3508, 7
        %v3510 = vsub.s32 %v3507, %v3509
        %v3511 = vrot.slane %v3504, %v3510
        %v3512 = vcombine.low %v3503, %v3511
        %v3513 = vcombine.high %v3503, %v3511
        %v3515 = vunpack.c.l.s4 1934713408
        %v3516 = vunpack.c.0.s8 %v3515
        %v3517 = vlaneseq
        %v3518 = vshrl.u32 %v3517, 7
        %v3519 = vsub.s32 %v3516, %v3518
        %v3520 = vrot.slane %v3512, %v3519
        %v3522 = vunpack.c.l.s4 1934713408
        %v3523 = vunpack.c.0.s8 %v3522
        %v3524 = vlaneseq
        %v3525 = vshrl.u32 %v3524, 7
        %v3526 = vsub.s32 %v3523, %v3525
        %v3527 = vrot.slane %v3513, %v3526
        %v3528 = vcombine.high %v3520, 0
        %v3529 = vcombine.high %v3527, 0
        %v3530 = vcombine.low %v3377, %v3405
        %v3532 = vunpack.c.l.s4 1983009808
        %v3533 = vunpack.c.0.s8 %v3532
        %v3534 = vlaneseq
        %v3535 = vshrl.u32 %v3534, 7
        %v3536 = vsub.s32 %v3533, %v3535
        %v3537 = vrot.slane %v3530, %v3536
        %v3538 = vcombine.low %v3391, %v3419
        %v3540 = vunpack.c.l.s4 1983009808
        %v3541 = vunpack.c.0.s8 %v3540
        %v3542 = vlaneseq
        %v3543 = vshrl.u32 %v3542, 7
        %v3544 = vsub.s32 %v3541, %v3543
        %v3545 = vrot.slane %v3538, %v3544
        %v3546 = vcombine.low %v3537, %v3545
        %v3547 = vcombine.high %v3537, %v3545
        %v3549 = vunpack.c.l.s4 1934713408
        %v3550 = vunpack.c.0.s8 %v3549
        %v3551 = vlaneseq
        %v3552 = vshrl.u32 %v3551, 7
        %v3553 = vsub.s32 %v3550, %v3552
        %v3554 = vrot.slane %v3546, %v3553
        %v3556 = vunpack.c.l.s4 1934713408
        %v3557 = vunpack.c.0.s8 %v3556
        %v3558 = vlaneseq
        %v3559 = vshrl.u32 %v3558, 7
        %v3560 = vsub.s32 %v3557, %v3559
        %v3561 = vrot.slane %v3547, %v3560
        %v3562 = vcombine.high %v3554, 0
        %v3563 = vcombine.high %v3561, 0
        %v3564 = vcombine.low %v3384, %v3412
        %v3566 = vunpack.c.l.s4 1983009808
        %v3567 = vunpack.c.0.s8 %v3566
        %v3568 = vlaneseq
        %v3569 = vshrl.u32 %v3568, 7
        %v3570 = vsub.s32 %v3567, %v3569
        %v3571 = vrot.slane %v3564, %v3570
        %v3572 = vcombine.low %v3398, %v3426
        %v3574 = vunpack.c.l.s4 1983009808
        %v3575 = vunpack.c.0.s8 %v3574
        %v3576 = vlaneseq
        %v3577 = vshrl.u32 %v3576, 7
        %v3578 = vsub.s32 %v3575, %v3577
        %v3579 = vrot.slane %v3572, %v3578
        %v3580 = vcombine.low %v3571, %v3579
        %v3581 = vcombine.high %v3571, %v3579
        %v3583 = vunpack.c.l.s4 1934713408
        %v3584 = vunpack.c.0.s8 %v3583
        %v3585 = vlaneseq
        %v3586 = vshrl.u32 %v3585, 7
        %v3587 = vsub.s32 %v3584, %v3586
        %v3588 = vrot.slane %v3580, %v3587
        %v3590 = vunpack.c.l.s4 1934713408
        %v3591 = vunpack.c.0.s8 %v3590
        %v3592 = vlaneseq
        %v3593 = vshrl.u32 %v3592, 7
        %v3594 = vsub.s32 %v3591, %v3593
        %v3595 = vrot.slane %v3581, %v3594
        %v3596 = vcombine.high %v3588, 0
        %v3597 = vcombine.high %v3595, 0
        %v3598 = vcombine.low %v3324, %v3352
        %v3600 = vunpack.c.l.s4 1983009808
        %v3601 = vunpack.c.0.s8 %v3600
        %v3602 = vlaneseq
        %v3603 = vshrl.u32 %v3602, 7
        %v3604 = vsub.s32 %v3601, %v3603
        %v3605 = vrot.slane %v3598, %v3604
        %v3606 = vcombine.low %v3338, %v3366
        %v3608 = vunpack.c.l.s4 1983009808
        %v3609 = vunpack.c.0.s8 %v3608
        %v3610 = vlaneseq
        %v3611 = vshrl.u32 %v3610, 7
        %v3612 = vsub.s32 %v3609, %v3611
        %v3613 = vrot.slane %v3606, %v3612
        %v3614 = vcombine.low %v3605, %v3613
        %v3615 = vcombine.high %v3605, %v3613
        %v3617 = vunpack.c.l.s4 1934713408
        %v3618 = vunpack.c.0.s8 %v3617
        %v3619 = vlaneseq
        %v3620 = vshrl.u32 %v3619, 7
        %v3621 = vsub.s32 %v3618, %v3620
        %v3622 = vrot.slane %v3614, %v3621
        %v3624 = vunpack.c.l.s4 1934713408
        %v3625 = vunpack.c.0.s8 %v3624
        %v3626 = vlaneseq
        %v3627 = vshrl.u32 %v3626, 7
        %v3628 = vsub.s32 %v3625, %v3627
        %v3629 = vrot.slane %v3615, %v3628
        %v3630 = vcombine.high %v3622, 0
        %v3631 = vcombine.high %v3629, 0
        %v3632 = vcombine.low %v3331, %v3359
        %v3634 = vunpack.c.l.s4 1983009808
        %v3635 = vunpack.c.0.s8 %v3634
        %v3636 = vlaneseq
        %v3637 = vshrl.u32 %v3636, 7
        %v3638 = vsub.s32 %v3635, %v3637
        %v3639 = vrot.slane %v3632, %v3638
        %v3640 = vcombine.low %v3345, %v3373
        %v3642 = vunpack.c.l.s4 1983009808
        %v3643 = vunpack.c.0.s8 %v3642
        %v3644 = vlaneseq
        %v3645 = vshrl.u32 %v3644, 7
        %v3646 = vsub.s32 %v3643, %v3645
        %v3647 = vrot.slane %v3640, %v3646
        %v3648 = vcombine.low %v3639, %v3647
        %v3649 = vcombine.high %v3639, %v3647
        %v3651 = vunpack.c.l.s4 1934713408
        %v3652 = vunpack.c.0.s8 %v3651
        %v3653 = vlaneseq
        %v3654 = vshrl.u32 %v3653, 7
        %v3655 = vsub.s32 %v3652, %v3654
        %v3656 = vrot.slane %v3648, %v3655
        %v3658 = vunpack.c.l.s4 1934713408
        %v3659 = vunpack.c.0.s8 %v3658
        %v3660 = vlaneseq
        %v3661 = vshrl.u32 %v3660, 7
        %v3662 = vsub.s32 %v3659, %v3661
        %v3663 = vrot.slane %v3649, %v3662
        %v3664 = vcombine.high %v3656, 0
        %v3665 = vcombine.high %v3663, 0
        %v3666 = vcombine.low %v3380, %v3408
        %v3668 = vunpack.c.l.s4 1983009808
        %v3669 = vunpack.c.0.s8 %v3668
        %v3670 = vlaneseq
        %v3671 = vshrl.u32 %v3670, 7
        %v3672 = vsub.s32 %v3669, %v3671
        %v3673 = vrot.slane %v3666, %v3672
        %v3674 = vcombine.low %v3394, %v3422
        %v3676 = vunpack.c.l.s4 1983009808
        %v3677 = vunpack.c.0.s8 %v3676
        %v3678 = vlaneseq
        %v3679 = vshrl.u32 %v3678, 7
        %v3680 = vsub.s32 %v3677, %v3679
        %v3681 = vrot.slane %v3674, %v3680
        %v3682 = vcombine.low %v3673, %v3681
        %v3683 = vcombine.high %v3673, %v3681
        %v3685 = vunpack.c.l.s4 1934713408
        %v3686 = vunpack.c.0.s8 %v3685
        %v3687 = vlaneseq
        %v3688 = vshrl.u32 %v3687, 7
        %v3689 = vsub.s32 %v3686, %v3688
        %v3690 = vrot.slane %v3682, %v3689
        %v3692 = vunpack.c.l.s4 1934713408
        %v3693 = vunpack.c.0.s8 %v3692
        %v3694 = vlaneseq
        %v3695 = vshrl.u32 %v3694, 7
        %v3696 = vsub.s32 %v3693, %v3695
        %v3697 = vrot.slane %v3683, %v3696
        %v3698 = vcombine.high %v3690, 0
        %v3699 = vcombine.high %v3697, 0
        %v3700 = vcombine.low %v3387, %v3415
        %v3702 = vunpack.c.l.s4 1983009808
        %v3703 = vunpack.c.0.s8 %v3702
        %v3704 = vlaneseq
        %v3705 = vshrl.u32 %v3704, 7
        %v3706 = vsub.s32 %v3703, %v3705
        %v3707 = vrot.slane %v3700, %v3706
        %v3708 = vcombine.low %v3401, %v3429
        %v3710 = vunpack.c.l.s4 1983009808
        %v3711 = vunpack.c.0.s8 %v3710
        %v3712 = vlaneseq
        %v3713 = vshrl.u32 %v3712, 7
        %v3714 = vsub.s32 %v3711, %v3713
        %v3715 = vrot.slane %v3708, %v3714
        %v3716 = vcombine.low %v3707, %v3715
        %v3717 = vcombine.high %v3707, %v3715
        %v3719 = vunpack.c.l.s4 1934713408
        %v3720 = vunpack.c.0.s8 %v3719
        %v3721 = vlaneseq
        %v3722 = vshrl.u32 %v3721, 7
        %v3723 = vsub.s32 %v3720, %v3722
        %v3724 = vrot.slane %v3716, %v3723
        %v3726 = vunpack.c.l.s4 1934713408
        %v3727 = vunpack.c.0.s8 %v3726
        %v3728 = vlaneseq
        %v3729 = vshrl.u32 %v3728, 7
        %v3730 = vsub.s32 %v3727, %v3729
        %v3731 = vrot.slane %v3717, %v3730
        %v3732 = vcombine.high %v3724, 0
        %v3733 = vcombine.high %v3731, 0
        %v3736 = vpack.i.b16 %v3520, %v3486
        %v3737 = vshrl.u32 %v3486, 16
        %v3738 = vshrl.u32 %v3520, 16
        %v3739 = vpack.i.b16 %v3738, %v3737
        %v3742 = vpack.i.b16 %v3528, %v3494
        %v3743 = vshrl.u32 %v3494, 16
        %v3744 = vshrl.u32 %v3528, 16
        %v3745 = vpack.i.b16 %v3744, %v3743
        %v3748 = vpack.i.b16 %v3527, %v3493
        %v3749 = vshrl.u32 %v3493, 16
        %v3750 = vshrl.u32 %v3527, 16
        %v3751 = vpack.i.b16 %v3750, %v3749
        %v3754 = vpack.i.b16 %v3529, %v3495
        %v3755 = vshrl.u32 %v3495, 16
        %v3756 = vshrl.u32 %v3529, 16
        %v3757 = vpack.i.b16 %v3756, %v3755
        %v3760 = vpack.i.b16 %v3656, %v3622
        %v3761 = vshrl.u32 %v3622, 16
        %v3762 = vshrl.u32 %v3656, 16
        %v3763 = vpack.i.b16 %v3762, %v3761
        %v3766 = vpack.i.b16 %v3664, %v3630
        %v3767 = vshrl.u32 %v3630, 16
        %v3768 = vshrl.u32 %v3664, 16
        %v3769 = vpack.i.b16 %v3768, %v3767
        %v3772 = vpack.i.b16 %v3663, %v3629
        %v3773 = vshrl.u32 %v3629, 16
        %v3774 = vshrl.u32 %v3663, 16
        %v3775 = vpack.i.b16 %v3774, %v3773
        %v3778 = vpack.i.b16 %v3665, %v3631
        %v3779 = vshrl.u32 %v3631, 16
        %v3780 = vshrl.u32 %v3665, 16
        %v3781 = vpack.i.b16 %v3780, %v3779
        %v3784 = vpack.i.b16 %v3588, %v3554
        %v3785 = vshrl.u32 %v3554, 16
        %v3786 = vshrl.u32 %v3588, 16
        %v3787 = vpack.i.b16 %v3786, %v3785
        %v3790 = vpack.i.b16 %v3596, %v3562
        %v3791 = vshrl.u32 %v3562, 16
        %v3792 = vshrl.u32 %v3596, 16
        %v3793 = vpack.i.b16 %v3792, %v3791
        %v3796 = vpack.i.b16 %v3595, %v3561
        %v3797 = vshrl.u32 %v3561, 16
        %v3798 = vshrl.u32 %v3595, 16
        %v3799 = vpack.i.b16 %v3798, %v3797
        %v3802 = vpack.i.b16 %v3597, %v3563
        %v3803 = vshrl.u32 %v3563, 16
        %v3804 = vshrl.u32 %v3597, 16
        %v3805 = vpack.i.b16 %v3804, %v3803
        %v3808 = vpack.i.b16 %v3724, %v3690
        %v3809 = vshrl.u32 %v3690, 16
        %v3810 = vshrl.u32 %v3724, 16
        %v3811 = vpack.i.b16 %v3810, %v3809
        %v3814 = vpack.i.b16 %v3732, %v3698
        %v3815 = vshrl.u32 %v3698, 16
        %v3816 = vshrl.u32 %v3732, 16
        %v3817 = vpack.i.b16 %v3816, %v3815
        %v3820 = vpack.i.b16 %v3731, %v3697
        %v3821 = vshrl.u32 %v3697, 16
        %v3822 = vshrl.u32 %v3731, 16
        %v3823 = vpack.i.b16 %v3822, %v3821
        %v3826 = vpack.i.b16 %v3733, %v3699
        %v3827 = vshrl.u32 %v3699, 16
        %v3828 = vshrl.u32 %v3733, 16
        %v3829 = vpack.i.b16 %v3828, %v3827
        %3830 = vrot.lane.b32.xlu0 %v3321, 124
        %v3831 = vpop.permute.xlu0 %3830
        %3832 = vrot.lane.b32.xlu0 %v3324, 124
        %v3833 = vpop.permute.xlu0 %3832
        %3834 = vrot.lane.b32.xlu0 %v3328, 124
        %v3835 = vpop.permute.xlu0 %3834
        %3836 = vrot.lane.b32.xlu0 %v3331, 124
        %v3837 = vpop.permute.xlu0 %3836
        %3838 = vrot.lane.b32.xlu0 %v3335, 124
        %v3839 = vpop.permute.xlu0 %3838
        %3840 = vrot.lane.b32.xlu0 %v3338, 124
        %v3841 = vpop.permute.xlu0 %3840
        %3842 = vrot.lane.b32.xlu0 %v3342, 124
        %v3843 = vpop.permute.xlu0 %3842
        %3844 = vrot.lane.b32.xlu0 %v3345, 124
        %v3845 = vpop.permute.xlu0 %3844
        %3846 = vrot.lane.b32.xlu0 %v3349, 124
        %v3847 = vpop.permute.xlu0 %3846
        %3848 = vrot.lane.b32.xlu0 %v3352, 124
        %v3849 = vpop.permute.xlu0 %3848
        %3850 = vrot.lane.b32.xlu0 %v3356, 124
        %v3851 = vpop.permute.xlu0 %3850
        %3852 = vrot.lane.b32.xlu0 %v3359, 124
        %v3853 = vpop.permute.xlu0 %3852
        %3854 = vrot.lane.b32.xlu0 %v3363, 124
        %v3855 = vpop.permute.xlu0 %3854
        %3856 = vrot.lane.b32.xlu0 %v3366, 124
        %v3857 = vpop.permute.xlu0 %3856
        %3858 = vrot.lane.b32.xlu0 %v3370, 124
        %v3859 = vpop.permute.xlu0 %3858
        %3860 = vrot.lane.b32.xlu0 %v3373, 124
        %v3861 = vpop.permute.xlu0 %3860
        %3862 = vrot.lane.b32.xlu0 %v3377, 124
        %v3863 = vpop.permute.xlu0 %3862
        %3864 = vrot.lane.b32.xlu0 %v3380, 124
        %v3865 = vpop.permute.xlu0 %3864
        %3866 = vrot.lane.b32.xlu0 %v3384, 124
        %v3867 = vpop.permute.xlu0 %3866
        %3868 = vrot.lane.b32.xlu0 %v3387, 124
        %v3869 = vpop.permute.xlu0 %3868
        %3870 = vrot.lane.b32.xlu0 %v3391, 124
        %v3871 = vpop.permute.xlu0 %3870
        %3872 = vrot.lane.b32.xlu0 %v3394, 124
        %v3873 = vpop.permute.xlu0 %3872
        %3874 = vrot.lane.b32.xlu0 %v3398, 124
        %v3875 = vpop.permute.xlu0 %3874
        %3876 = vrot.lane.b32.xlu0 %v3401, 124
        %v3877 = vpop.permute.xlu0 %3876
        %3878 = vrot.lane.b32.xlu0 %v3405, 124
        %v3879 = vpop.permute.xlu0 %3878
        %3880 = vrot.lane.b32.xlu0 %v3408, 124
        %v3881 = vpop.permute.xlu0 %3880
        %3882 = vrot.lane.b32.xlu0 %v3412, 124
        %v3883 = vpop.permute.xlu0 %3882
        %3884 = vrot.lane.b32.xlu0 %v3415, 124
        %v3885 = vpop.permute.xlu0 %3884
        %3886 = vrot.lane.b32.xlu0 %v3419, 124
        %v3887 = vpop.permute.xlu0 %3886
        %3888 = vrot.lane.b32.xlu0 %v3422, 124
        %v3889 = vpop.permute.xlu0 %3888
        %3890 = vrot.lane.b32.xlu0 %v3426, 124
        %v3891 = vpop.permute.xlu0 %3890
        %3892 = vrot.lane.b32.xlu0 %v3429, 124
        %v3893 = vpop.permute.xlu0 %3892
        %v3926 = vcombine.low %v3831, %v3847
        %v3928 = vunpack.c.l.s4 1983009808
        %v3929 = vunpack.c.0.s8 %v3928
        %v3930 = vlaneseq
        %v3931 = vshrl.u32 %v3930, 7
        %v3932 = vsub.s32 %v3929, %v3931
        %v3933 = vrot.slane %v3926, %v3932
        %v3934 = vcombine.low %v3839, %v3855
        %v3936 = vunpack.c.l.s4 1983009808
        %v3937 = vunpack.c.0.s8 %v3936
        %v3938 = vlaneseq
        %v3939 = vshrl.u32 %v3938, 7
        %v3940 = vsub.s32 %v3937, %v3939
        %v3941 = vrot.slane %v3934, %v3940
        %v3942 = vcombine.low %v3933, %v3941
        %v3943 = vcombine.high %v3933, %v3941
        %v3945 = vunpack.c.l.s4 1934713408
        %v3946 = vunpack.c.0.s8 %v3945
        %v3947 = vlaneseq
        %v3948 = vshrl.u32 %v3947, 7
        %v3949 = vsub.s32 %v3946, %v3948
        %v3950 = vrot.slane %v3942, %v3949
        %v3952 = vunpack.c.l.s4 1934713408
        %v3953 = vunpack.c.0.s8 %v3952
        %v3954 = vlaneseq
        %v3955 = vshrl.u32 %v3954, 7
        %v3956 = vsub.s32 %v3953, %v3955
        %v3957 = vrot.slane %v3943, %v3956
        %v3958 = vcombine.high %v3950, 0
        %v3959 = vcombine.high %v3957, 0
        %v3960 = vcombine.low %v3835, %v3851
        %v3962 = vunpack.c.l.s4 1983009808
        %v3963 = vunpack.c.0.s8 %v3962
        %v3964 = vlaneseq
        %v3965 = vshrl.u32 %v3964, 7
        %v3966 = vsub.s32 %v3963, %v3965
        %v3967 = vrot.slane %v3960, %v3966
        %v3968 = vcombine.low %v3843, %v3859
        %v3970 = vunpack.c.l.s4 1983009808
        %v3971 = vunpack.c.0.s8 %v3970
        %v3972 = vlaneseq
        %v3973 = vshrl.u32 %v3972, 7
        %v3974 = vsub.s32 %v3971, %v3973
        %v3975 = vrot.slane %v3968, %v3974
        %v3976 = vcombine.low %v3967, %v3975
        %v3977 = vcombine.high %v3967, %v3975
        %v3979 = vunpack.c.l.s4 1934713408
        %v3980 = vunpack.c.0.s8 %v3979
        %v3981 = vlaneseq
        %v3982 = vshrl.u32 %v3981, 7
        %v3983 = vsub.s32 %v3980, %v3982
        %v3984 = vrot.slane %v3976, %v3983
        %v3986 = vunpack.c.l.s4 1934713408
        %v3987 = vunpack.c.0.s8 %v3986
        %v3988 = vlaneseq
        %v3989 = vshrl.u32 %v3988, 7
        %v3990 = vsub.s32 %v3987, %v3989
        %v3991 = vrot.slane %v3977, %v3990
        %v3992 = vcombine.high %v3984, 0
        %v3993 = vcombine.high %v3991, 0
        %v3994 = vcombine.low %v3863, %v3879
        %v3996 = vunpack.c.l.s4 1983009808
        %v3997 = vunpack.c.0.s8 %v3996
        %v3998 = vlaneseq
        %v3999 = vshrl.u32 %v3998, 7
        %v4000 = vsub.s32 %v3997, %v3999
        %v4001 = vrot.slane %v3994, %v4000
        %v4002 = vcombine.low %v3871, %v3887
        %v4004 = vunpack.c.l.s4 1983009808
        %v4005 = vunpack.c.0.s8 %v4004
        %v4006 = vlaneseq
        %v4007 = vshrl.u32 %v4006, 7
        %v4008 = vsub.s32 %v4005, %v4007
        %v4009 = vrot.slane %v4002, %v4008
        %v4010 = vcombine.low %v4001, %v4009
        %v4011 = vcombine.high %v4001, %v4009
        %v4013 = vunpack.c.l.s4 1934713408
        %v4014 = vunpack.c.0.s8 %v4013
        %v4015 = vlaneseq
        %v4016 = vshrl.u32 %v4015, 7
        %v4017 = vsub.s32 %v4014, %v4016
        %v4018 = vrot.slane %v4010, %v4017
        %v4020 = vunpack.c.l.s4 1934713408
        %v4021 = vunpack.c.0.s8 %v4020
        %v4022 = vlaneseq
        %v4023 = vshrl.u32 %v4022, 7
        %v4024 = vsub.s32 %v4021, %v4023
        %v4025 = vrot.slane %v4011, %v4024
        %v4026 = vcombine.high %v4018, 0
        %v4027 = vcombine.high %v4025, 0
        %v4028 = vcombine.low %v3867, %v3883
        %v4030 = vunpack.c.l.s4 1983009808
        %v4031 = vunpack.c.0.s8 %v4030
        %v4032 = vlaneseq
        %v4033 = vshrl.u32 %v4032, 7
        %v4034 = vsub.s32 %v4031, %v4033
        %v4035 = vrot.slane %v4028, %v4034
        %v4036 = vcombine.low %v3875, %v3891
        %v4038 = vunpack.c.l.s4 1983009808
        %v4039 = vunpack.c.0.s8 %v4038
        %v4040 = vlaneseq
        %v4041 = vshrl.u32 %v4040, 7
        %v4042 = vsub.s32 %v4039, %v4041
        %v4043 = vrot.slane %v4036, %v4042
        %v4044 = vcombine.low %v4035, %v4043
        %v4045 = vcombine.high %v4035, %v4043
        %v4047 = vunpack.c.l.s4 1934713408
        %v4048 = vunpack.c.0.s8 %v4047
        %v4049 = vlaneseq
        %v4050 = vshrl.u32 %v4049, 7
        %v4051 = vsub.s32 %v4048, %v4050
        %v4052 = vrot.slane %v4044, %v4051
        %v4054 = vunpack.c.l.s4 1934713408
        %v4055 = vunpack.c.0.s8 %v4054
        %v4056 = vlaneseq
        %v4057 = vshrl.u32 %v4056, 7
        %v4058 = vsub.s32 %v4055, %v4057
        %v4059 = vrot.slane %v4045, %v4058
        %v4060 = vcombine.high %v4052, 0
        %v4061 = vcombine.high %v4059, 0
        %v4062 = vcombine.low %v3833, %v3849
        %v4064 = vunpack.c.l.s4 1983009808
        %v4065 = vunpack.c.0.s8 %v4064
        %v4066 = vlaneseq
        %v4067 = vshrl.u32 %v4066, 7
        %v4068 = vsub.s32 %v4065, %v4067
        %v4069 = vrot.slane %v4062, %v4068
        %v4070 = vcombine.low %v3841, %v3857
        %v4072 = vunpack.c.l.s4 1983009808
        %v4073 = vunpack.c.0.s8 %v4072
        %v4074 = vlaneseq
        %v4075 = vshrl.u32 %v4074, 7
        %v4076 = vsub.s32 %v4073, %v4075
        %v4077 = vrot.slane %v4070, %v4076
        %v4078 = vcombine.low %v4069, %v4077
        %v4079 = vcombine.high %v4069, %v4077
        %v4081 = vunpack.c.l.s4 1934713408
        %v4082 = vunpack.c.0.s8 %v4081
        %v4083 = vlaneseq
        %v4084 = vshrl.u32 %v4083, 7
        %v4085 = vsub.s32 %v4082, %v4084
        %v4086 = vrot.slane %v4078, %v4085
        %v4088 = vunpack.c.l.s4 1934713408
        %v4089 = vunpack.c.0.s8 %v4088
        %v4090 = vlaneseq
        %v4091 = vshrl.u32 %v4090, 7
        %v4092 = vsub.s32 %v4089, %v4091
        %v4093 = vrot.slane %v4079, %v4092
        %v4094 = vcombine.high %v4086, 0
        %v4095 = vcombine.high %v4093, 0
        %v4096 = vcombine.low %v3837, %v3853
        %v4098 = vunpack.c.l.s4 1983009808
        %v4099 = vunpack.c.0.s8 %v4098
        %v4100 = vlaneseq
        %v4101 = vshrl.u32 %v4100, 7
        %v4102 = vsub.s32 %v4099, %v4101
        %v4103 = vrot.slane %v4096, %v4102
        %v4104 = vcombine.low %v3845, %v3861
        %v4106 = vunpack.c.l.s4 1983009808
        %v4107 = vunpack.c.0.s8 %v4106
        %v4108 = vlaneseq
        %v4109 = vshrl.u32 %v4108, 7
        %v4110 = vsub.s32 %v4107, %v4109
        %v4111 = vrot.slane %v4104, %v4110
        %v4112 = vcombine.low %v4103, %v4111
        %v4113 = vcombine.high %v4103, %v4111
        %v4115 = vunpack.c.l.s4 1934713408
        %v4116 = vunpack.c.0.s8 %v4115
        %v4117 = vlaneseq
        %v4118 = vshrl.u32 %v4117, 7
        %v4119 = vsub.s32 %v4116, %v4118
        %v4120 = vrot.slane %v4112, %v4119
        %v4122 = vunpack.c.l.s4 1934713408
        %v4123 = vunpack.c.0.s8 %v4122
        %v4124 = vlaneseq
        %v4125 = vshrl.u32 %v4124, 7
        %v4126 = vsub.s32 %v4123, %v4125
        %v4127 = vrot.slane %v4113, %v4126
        %v4128 = vcombine.high %v4120, 0
        %v4129 = vcombine.high %v4127, 0
        %v4130 = vcombine.low %v3865, %v3881
        %v4132 = vunpack.c.l.s4 1983009808
        %v4133 = vunpack.c.0.s8 %v4132
        %v4134 = vlaneseq
        %v4135 = vshrl.u32 %v4134, 7
        %v4136 = vsub.s32 %v4133, %v4135
        %v4137 = vrot.slane %v4130, %v4136
        %v4138 = vcombine.low %v3873, %v3889
        %v4140 = vunpack.c.l.s4 1983009808
        %v4141 = vunpack.c.0.s8 %v4140
        %v4142 = vlaneseq
        %v4143 = vshrl.u32 %v4142, 7
        %v4144 = vsub.s32 %v4141, %v4143
        %v4145 = vrot.slane %v4138, %v4144
        %v4146 = vcombine.low %v4137, %v4145
        %v4147 = vcombine.high %v4137, %v4145
        %v4149 = vunpack.c.l.s4 1934713408
        %v4150 = vunpack.c.0.s8 %v4149
        %v4151 = vlaneseq
        %v4152 = vshrl.u32 %v4151, 7
        %v4153 = vsub.s32 %v4150, %v4152
        %v4154 = vrot.slane %v4146, %v4153
        %v4156 = vunpack.c.l.s4 1934713408
        %v4157 = vunpack.c.0.s8 %v4156
        %v4158 = vlaneseq
        %v4159 = vshrl.u32 %v4158, 7
        %v4160 = vsub.s32 %v4157, %v4159
        %v4161 = vrot.slane %v4147, %v4160
        %v4162 = vcombine.high %v4154, 0
        %v4163 = vcombine.high %v4161, 0
        %v4164 = vcombine.low %v3869, %v3885
        %v4166 = vunpack.c.l.s4 1983009808
        %v4167 = vunpack.c.0.s8 %v4166
        %v4168 = vlaneseq
        %v4169 = vshrl.u32 %v4168, 7
        %v4170 = vsub.s32 %v4167, %v4169
        %v4171 = vrot.slane %v4164, %v4170
        %v4172 = vcombine.low %v3877, %v3893
        %v4174 = vunpack.c.l.s4 1983009808
        %v4175 = vunpack.c.0.s8 %v4174
        %v4176 = vlaneseq
        %v4177 = vshrl.u32 %v4176, 7
        %v4178 = vsub.s32 %v4175, %v4177
        %v4179 = vrot.slane %v4172, %v4178
        %v4180 = vcombine.low %v4171, %v4179
        %v4181 = vcombine.high %v4171, %v4179
        %v4183 = vunpack.c.l.s4 1934713408
        %v4184 = vunpack.c.0.s8 %v4183
        %v4185 = vlaneseq
        %v4186 = vshrl.u32 %v4185, 7
        %v4187 = vsub.s32 %v4184, %v4186
        %v4188 = vrot.slane %v4180, %v4187
        %v4190 = vunpack.c.l.s4 1934713408
        %v4191 = vunpack.c.0.s8 %v4190
        %v4192 = vlaneseq
        %v4193 = vshrl.u32 %v4192, 7
        %v4194 = vsub.s32 %v4191, %v4193
        %v4195 = vrot.slane %v4181, %v4194
        %v4196 = vcombine.high %v4188, 0
        %v4197 = vcombine.high %v4195, 0
        %v4200 = vpack.i.b16 %v3984, %v3950
        %v4201 = vshrl.u32 %v3950, 16
        %v4202 = vshrl.u32 %v3984, 16
        %v4203 = vpack.i.b16 %v4202, %v4201
        %v4206 = vpack.i.b16 %v3992, %v3958
        %v4207 = vshrl.u32 %v3958, 16
        %v4208 = vshrl.u32 %v3992, 16
        %v4209 = vpack.i.b16 %v4208, %v4207
        %v4212 = vpack.i.b16 %v3991, %v3957
        %v4213 = vshrl.u32 %v3957, 16
        %v4214 = vshrl.u32 %v3991, 16
        %v4215 = vpack.i.b16 %v4214, %v4213
        %v4218 = vpack.i.b16 %v3993, %v3959
        %v4219 = vshrl.u32 %v3959, 16
        %v4220 = vshrl.u32 %v3993, 16
        %v4221 = vpack.i.b16 %v4220, %v4219
        %v4224 = vpack.i.b16 %v4120, %v4086
        %v4225 = vshrl.u32 %v4086, 16
        %v4226 = vshrl.u32 %v4120, 16
        %v4227 = vpack.i.b16 %v4226, %v4225
        %v4230 = vpack.i.b16 %v4128, %v4094
        %v4231 = vshrl.u32 %v4094, 16
        %v4232 = vshrl.u32 %v4128, 16
        %v4233 = vpack.i.b16 %v4232, %v4231
        %v4236 = vpack.i.b16 %v4127, %v4093
        %v4237 = vshrl.u32 %v4093, 16
        %v4238 = vshrl.u32 %v4127, 16
        %v4239 = vpack.i.b16 %v4238, %v4237
        %v4242 = vpack.i.b16 %v4129, %v4095
        %v4243 = vshrl.u32 %v4095, 16
        %v4244 = vshrl.u32 %v4129, 16
        %v4245 = vpack.i.b16 %v4244, %v4243
        %v4248 = vpack.i.b16 %v4052, %v4018
        %v4249 = vshrl.u32 %v4018, 16
        %v4250 = vshrl.u32 %v4052, 16
        %v4251 = vpack.i.b16 %v4250, %v4249
        %v4254 = vpack.i.b16 %v4060, %v4026
        %v4255 = vshrl.u32 %v4026, 16
        %v4256 = vshrl.u32 %v4060, 16
        %v4257 = vpack.i.b16 %v4256, %v4255
        %v4260 = vpack.i.b16 %v4059, %v4025
        %v4261 = vshrl.u32 %v4025, 16
        %v4262 = vshrl.u32 %v4059, 16
        %v4263 = vpack.i.b16 %v4262, %v4261
        %v4266 = vpack.i.b16 %v4061, %v4027
        %v4267 = vshrl.u32 %v4027, 16
        %v4268 = vshrl.u32 %v4061, 16
        %v4269 = vpack.i.b16 %v4268, %v4267
        %v4272 = vpack.i.b16 %v4188, %v4154
        %v4273 = vshrl.u32 %v4154, 16
        %v4274 = vshrl.u32 %v4188, 16
        %v4275 = vpack.i.b16 %v4274, %v4273
        %v4278 = vpack.i.b16 %v4196, %v4162
        %v4279 = vshrl.u32 %v4162, 16
        %v4280 = vshrl.u32 %v4196, 16
        %v4281 = vpack.i.b16 %v4280, %v4279
        %v4284 = vpack.i.b16 %v4195, %v4161
        %v4285 = vshrl.u32 %v4161, 16
        %v4286 = vshrl.u32 %v4195, 16
        %v4287 = vpack.i.b16 %v4286, %v4285
        %v4290 = vpack.i.b16 %v4197, %v4163
        %v4291 = vshrl.u32 %v4163, 16
        %v4292 = vshrl.u32 %v4197, 16
        %v4293 = vpack.i.b16 %v4292, %v4291
        %4294 = vrot.lane.b32.xlu0 %v3321, 120
        %v4295 = vpop.permute.xlu0 %4294
        %4296 = vrot.lane.b32.xlu0 %v3324, 120
        %v4297 = vpop.permute.xlu0 %4296
        %4298 = vrot.lane.b32.xlu0 %v3328, 120
        %v4299 = vpop.permute.xlu0 %4298
        %4300 = vrot.lane.b32.xlu0 %v3331, 120
        %v4301 = vpop.permute.xlu0 %4300
        %4302 = vrot.lane.b32.xlu0 %v3335, 120
        %v4303 = vpop.permute.xlu0 %4302
        %4304 = vrot.lane.b32.xlu0 %v3338, 120
        %v4305 = vpop.permute.xlu0 %4304
        %4306 = vrot.lane.b32.xlu0 %v3342, 120
        %v4307 = vpop.permute.xlu0 %4306
        %4308 = vrot.lane.b32.xlu0 %v3345, 120
        %v4309 = vpop.permute.xlu0 %4308
        %4310 = vrot.lane.b32.xlu0 %v3349, 120
        %v4311 = vpop.permute.xlu0 %4310
        %4312 = vrot.lane.b32.xlu0 %v3352, 120
        %v4313 = vpop.permute.xlu0 %4312
        %4314 = vrot.lane.b32.xlu0 %v3356, 120
        %v4315 = vpop.permute.xlu0 %4314
        %4316 = vrot.lane.b32.xlu0 %v3359, 120
        %v4317 = vpop.permute.xlu0 %4316
        %4318 = vrot.lane.b32.xlu0 %v3363, 120
        %v4319 = vpop.permute.xlu0 %4318
        %4320 = vrot.lane.b32.xlu0 %v3366, 120
        %v4321 = vpop.permute.xlu0 %4320
        %4322 = vrot.lane.b32.xlu0 %v3370, 120
        %v4323 = vpop.permute.xlu0 %4322
        %4324 = vrot.lane.b32.xlu0 %v3373, 120
        %v4325 = vpop.permute.xlu0 %4324
        %4326 = vrot.lane.b32.xlu0 %v3377, 120
        %v4327 = vpop.permute.xlu0 %4326
        %4328 = vrot.lane.b32.xlu0 %v3380, 120
        %v4329 = vpop.permute.xlu0 %4328
        %4330 = vrot.lane.b32.xlu0 %v3384, 120
        %v4331 = vpop.permute.xlu0 %4330
        %4332 = vrot.lane.b32.xlu0 %v3387, 120
        %v4333 = vpop.permute.xlu0 %4332
        %4334 = vrot.lane.b32.xlu0 %v3391, 120
        %v4335 = vpop.permute.xlu0 %4334
        %4336 = vrot.lane.b32.xlu0 %v3394, 120
        %v4337 = vpop.permute.xlu0 %4336
        %4338 = vrot.lane.b32.xlu0 %v3398, 120
        %v4339 = vpop.permute.xlu0 %4338
        %4340 = vrot.lane.b32.xlu0 %v3401, 120
        %v4341 = vpop.permute.xlu0 %4340
        %4342 = vrot.lane.b32.xlu0 %v3405, 120
        %v4343 = vpop.permute.xlu0 %4342
        %4344 = vrot.lane.b32.xlu0 %v3408, 120
        %v4345 = vpop.permute.xlu0 %4344
        %4346 = vrot.lane.b32.xlu0 %v3412, 120
        %v4347 = vpop.permute.xlu0 %4346
        %4348 = vrot.lane.b32.xlu0 %v3415, 120
        %v4349 = vpop.permute.xlu0 %4348
        %4350 = vrot.lane.b32.xlu0 %v3419, 120
        %v4351 = vpop.permute.xlu0 %4350
        %4352 = vrot.lane.b32.xlu0 %v3422, 120
        %v4353 = vpop.permute.xlu0 %4352
        %4354 = vrot.lane.b32.xlu0 %v3426, 120
        %v4355 = vpop.permute.xlu0 %4354
        %4356 = vrot.lane.b32.xlu0 %v3429, 120
        %v4357 = vpop.permute.xlu0 %4356
        %v4390 = vcombine.low %v4295, %v4311
        %v4392 = vunpack.c.l.s4 1983009808
        %v4393 = vunpack.c.0.s8 %v4392
        %v4394 = vlaneseq
        %v4395 = vshrl.u32 %v4394, 7
        %v4396 = vsub.s32 %v4393, %v4395
        %v4397 = vrot.slane %v4390, %v4396
        %v4398 = vcombine.low %v4303, %v4319
        %v4400 = vunpack.c.l.s4 1983009808
        %v4401 = vunpack.c.0.s8 %v4400
        %v4402 = vlaneseq
        %v4403 = vshrl.u32 %v4402, 7
        %v4404 = vsub.s32 %v4401, %v4403
        %v4405 = vrot.slane %v4398, %v4404
        %v4406 = vcombine.low %v4397, %v4405
        %v4407 = vcombine.high %v4397, %v4405
        %v4409 = vunpack.c.l.s4 1934713408
        %v4410 = vunpack.c.0.s8 %v4409
        %v4411 = vlaneseq
        %v4412 = vshrl.u32 %v4411, 7
        %v4413 = vsub.s32 %v4410, %v4412
        %v4414 = vrot.slane %v4406, %v4413
        %v4416 = vunpack.c.l.s4 1934713408
        %v4417 = vunpack.c.0.s8 %v4416
        %v4418 = vlaneseq
        %v4419 = vshrl.u32 %v4418, 7
        %v4420 = vsub.s32 %v4417, %v4419
        %v4421 = vrot.slane %v4407, %v4420
        %v4422 = vcombine.high %v4414, 0
        %v4423 = vcombine.high %v4421, 0
        %v4424 = vcombine.low %v4299, %v4315
        %v4426 = vunpack.c.l.s4 1983009808
        %v4427 = vunpack.c.0.s8 %v4426
        %v4428 = vlaneseq
        %v4429 = vshrl.u32 %v4428, 7
        %v4430 = vsub.s32 %v4427, %v4429
        %v4431 = vrot.slane %v4424, %v4430
        %v4432 = vcombine.low %v4307, %v4323
        %v4434 = vunpack.c.l.s4 1983009808
        %v4435 = vunpack.c.0.s8 %v4434
        %v4436 = vlaneseq
        %v4437 = vshrl.u32 %v4436, 7
        %v4438 = vsub.s32 %v4435, %v4437
        %v4439 = vrot.slane %v4432, %v4438
        %v4440 = vcombine.low %v4431, %v4439
        %v4441 = vcombine.high %v4431, %v4439
        %v4443 = vunpack.c.l.s4 1934713408
        %v4444 = vunpack.c.0.s8 %v4443
        %v4445 = vlaneseq
        %v4446 = vshrl.u32 %v4445, 7
        %v4447 = vsub.s32 %v4444, %v4446
        %v4448 = vrot.slane %v4440, %v4447
        %v4450 = vunpack.c.l.s4 1934713408
        %v4451 = vunpack.c.0.s8 %v4450
        %v4452 = vlaneseq
        %v4453 = vshrl.u32 %v4452, 7
        %v4454 = vsub.s32 %v4451, %v4453
        %v4455 = vrot.slane %v4441, %v4454
        %v4456 = vcombine.high %v4448, 0
        %v4457 = vcombine.high %v4455, 0
        %v4458 = vcombine.low %v4327, %v4343
        %v4460 = vunpack.c.l.s4 1983009808
        %v4461 = vunpack.c.0.s8 %v4460
        %v4462 = vlaneseq
        %v4463 = vshrl.u32 %v4462, 7
        %v4464 = vsub.s32 %v4461, %v4463
        %v4465 = vrot.slane %v4458, %v4464
        %v4466 = vcombine.low %v4335, %v4351
        %v4468 = vunpack.c.l.s4 1983009808
        %v4469 = vunpack.c.0.s8 %v4468
        %v4470 = vlaneseq
        %v4471 = vshrl.u32 %v4470, 7
        %v4472 = vsub.s32 %v4469, %v4471
        %v4473 = vrot.slane %v4466, %v4472
        %v4474 = vcombine.low %v4465, %v4473
        %v4475 = vcombine.high %v4465, %v4473
        %v4477 = vunpack.c.l.s4 1934713408
        %v4478 = vunpack.c.0.s8 %v4477
        %v4479 = vlaneseq
        %v4480 = vshrl.u32 %v4479, 7
        %v4481 = vsub.s32 %v4478, %v4480
        %v4482 = vrot.slane %v4474, %v4481
        %v4484 = vunpack.c.l.s4 1934713408
        %v4485 = vunpack.c.0.s8 %v4484
        %v4486 = vlaneseq
        %v4487 = vshrl.u32 %v4486, 7
        %v4488 = vsub.s32 %v4485, %v4487
        %v4489 = vrot.slane %v4475, %v4488
        %v4490 = vcombine.high %v4482, 0
        %v4491 = vcombine.high %v4489, 0
        %v4492 = vcombine.low %v4331, %v4347
        %v4494 = vunpack.c.l.s4 1983009808
        %v4495 = vunpack.c.0.s8 %v4494
        %v4496 = vlaneseq
        %v4497 = vshrl.u32 %v4496, 7
        %v4498 = vsub.s32 %v4495, %v4497
        %v4499 = vrot.slane %v4492, %v4498
        %v4500 = vcombine.low %v4339, %v4355
        %v4502 = vunpack.c.l.s4 1983009808
        %v4503 = vunpack.c.0.s8 %v4502
        %v4504 = vlaneseq
        %v4505 = vshrl.u32 %v4504, 7
        %v4506 = vsub.s32 %v4503, %v4505
        %v4507 = vrot.slane %v4500, %v4506
        %v4508 = vcombine.low %v4499, %v4507
        %v4509 = vcombine.high %v4499, %v4507
        %v4511 = vunpack.c.l.s4 1934713408
        %v4512 = vunpack.c.0.s8 %v4511
        %v4513 = vlaneseq
        %v4514 = vshrl.u32 %v4513, 7
        %v4515 = vsub.s32 %v4512, %v4514
        %v4516 = vrot.slane %v4508, %v4515
        %v4518 = vunpack.c.l.s4 1934713408
        %v4519 = vunpack.c.0.s8 %v4518
        %v4520 = vlaneseq
        %v4521 = vshrl.u32 %v4520, 7
        %v4522 = vsub.s32 %v4519, %v4521
        %v4523 = vrot.slane %v4509, %v4522
        %v4524 = vcombine.high %v4516, 0
        %v4525 = vcombine.high %v4523, 0
        %v4526 = vcombine.low %v4297, %v4313
        %v4528 = vunpack.c.l.s4 1983009808
        %v4529 = vunpack.c.0.s8 %v4528
        %v4530 = vlaneseq
        %v4531 = vshrl.u32 %v4530, 7
        %v4532 = vsub.s32 %v4529, %v4531
        %v4533 = vrot.slane %v4526, %v4532
        %v4534 = vcombine.low %v4305, %v4321
        %v4536 = vunpack.c.l.s4 1983009808
        %v4537 = vunpack.c.0.s8 %v4536
        %v4538 = vlaneseq
        %v4539 = vshrl.u32 %v4538, 7
        %v4540 = vsub.s32 %v4537, %v4539
        %v4541 = vrot.slane %v4534, %v4540
        %v4542 = vcombine.low %v4533, %v4541
        %v4543 = vcombine.high %v4533, %v4541
        %v4545 = vunpack.c.l.s4 1934713408
        %v4546 = vunpack.c.0.s8 %v4545
        %v4547 = vlaneseq
        %v4548 = vshrl.u32 %v4547, 7
        %v4549 = vsub.s32 %v4546, %v4548
        %v4550 = vrot.slane %v4542, %v4549
        %v4552 = vunpack.c.l.s4 1934713408
        %v4553 = vunpack.c.0.s8 %v4552
        %v4554 = vlaneseq
        %v4555 = vshrl.u32 %v4554, 7
        %v4556 = vsub.s32 %v4553, %v4555
        %v4557 = vrot.slane %v4543, %v4556
        %v4558 = vcombine.high %v4550, 0
        %v4559 = vcombine.high %v4557, 0
        %v4560 = vcombine.low %v4301, %v4317
        %v4562 = vunpack.c.l.s4 1983009808
        %v4563 = vunpack.c.0.s8 %v4562
        %v4564 = vlaneseq
        %v4565 = vshrl.u32 %v4564, 7
        %v4566 = vsub.s32 %v4563, %v4565
        %v4567 = vrot.slane %v4560, %v4566
        %v4568 = vcombine.low %v4309, %v4325
        %v4570 = vunpack.c.l.s4 1983009808
        %v4571 = vunpack.c.0.s8 %v4570
        %v4572 = vlaneseq
        %v4573 = vshrl.u32 %v4572, 7
        %v4574 = vsub.s32 %v4571, %v4573
        %v4575 = vrot.slane %v4568, %v4574
        %v4576 = vcombine.low %v4567, %v4575
        %v4577 = vcombine.high %v4567, %v4575
        %v4579 = vunpack.c.l.s4 1934713408
        %v4580 = vunpack.c.0.s8 %v4579
        %v4581 = vlaneseq
        %v4582 = vshrl.u32 %v4581, 7
        %v4583 = vsub.s32 %v4580, %v4582
        %v4584 = vrot.slane %v4576, %v4583
        %v4586 = vunpack.c.l.s4 1934713408
        %v4587 = vunpack.c.0.s8 %v4586
        %v4588 = vlaneseq
        %v4589 = vshrl.u32 %v4588, 7
        %v4590 = vsub.s32 %v4587, %v4589
        %v4591 = vrot.slane %v4577, %v4590
        %v4592 = vcombine.high %v4584, 0
        %v4593 = vcombine.high %v4591, 0
        %v4594 = vcombine.low %v4329, %v4345
        %v4596 = vunpack.c.l.s4 1983009808
        %v4597 = vunpack.c.0.s8 %v4596
        %v4598 = vlaneseq
        %v4599 = vshrl.u32 %v4598, 7
        %v4600 = vsub.s32 %v4597, %v4599
        %v4601 = vrot.slane %v4594, %v4600
        %v4602 = vcombine.low %v4337, %v4353
        %v4604 = vunpack.c.l.s4 1983009808
        %v4605 = vunpack.c.0.s8 %v4604
        %v4606 = vlaneseq
        %v4607 = vshrl.u32 %v4606, 7
        %v4608 = vsub.s32 %v4605, %v4607
        %v4609 = vrot.slane %v4602, %v4608
        %v4610 = vcombine.low %v4601, %v4609
        %v4611 = vcombine.high %v4601, %v4609
        %v4613 = vunpack.c.l.s4 1934713408
        %v4614 = vunpack.c.0.s8 %v4613
        %v4615 = vlaneseq
        %v4616 = vshrl.u32 %v4615, 7
        %v4617 = vsub.s32 %v4614, %v4616
        %v4618 = vrot.slane %v4610, %v4617
        %v4620 = vunpack.c.l.s4 1934713408
        %v4621 = vunpack.c.0.s8 %v4620
        %v4622 = vlaneseq
        %v4623 = vshrl.u32 %v4622, 7
        %v4624 = vsub.s32 %v4621, %v4623
        %v4625 = vrot.slane %v4611, %v4624
        %v4626 = vcombine.high %v4618, 0
        %v4627 = vcombine.high %v4625, 0
        %v4628 = vcombine.low %v4333, %v4349
        %v4630 = vunpack.c.l.s4 1983009808
        %v4631 = vunpack.c.0.s8 %v4630
        %v4632 = vlaneseq
        %v4633 = vshrl.u32 %v4632, 7
        %v4634 = vsub.s32 %v4631, %v4633
        %v4635 = vrot.slane %v4628, %v4634
        %v4636 = vcombine.low %v4341, %v4357
        %v4638 = vunpack.c.l.s4 1983009808
        %v4639 = vunpack.c.0.s8 %v4638
        %v4640 = vlaneseq
        %v4641 = vshrl.u32 %v4640, 7
        %v4642 = vsub.s32 %v4639, %v4641
        %v4643 = vrot.slane %v4636, %v4642
        %v4644 = vcombine.low %v4635, %v4643
        %v4645 = vcombine.high %v4635, %v4643
        %v4647 = vunpack.c.l.s4 1934713408
        %v4648 = vunpack.c.0.s8 %v4647
        %v4649 = vlaneseq
        %v4650 = vshrl.u32 %v4649, 7
        %v4651 = vsub.s32 %v4648, %v4650
        %v4652 = vrot.slane %v4644, %v4651
        %v4654 = vunpack.c.l.s4 1934713408
        %v4655 = vunpack.c.0.s8 %v4654
        %v4656 = vlaneseq
        %v4657 = vshrl.u32 %v4656, 7
        %v4658 = vsub.s32 %v4655, %v4657
        %v4659 = vrot.slane %v4645, %v4658
        %v4660 = vcombine.high %v4652, 0
        %v4661 = vcombine.high %v4659, 0
        %v4664 = vpack.i.b16 %v4448, %v4414
        %v4665 = vshrl.u32 %v4414, 16
        %v4666 = vshrl.u32 %v4448, 16
        %v4667 = vpack.i.b16 %v4666, %v4665
        %v4670 = vpack.i.b16 %v4456, %v4422
        %v4671 = vshrl.u32 %v4422, 16
        %v4672 = vshrl.u32 %v4456, 16
        %v4673 = vpack.i.b16 %v4672, %v4671
        %v4676 = vpack.i.b16 %v4455, %v4421
        %v4677 = vshrl.u32 %v4421, 16
        %v4678 = vshrl.u32 %v4455, 16
        %v4679 = vpack.i.b16 %v4678, %v4677
        %v4682 = vpack.i.b16 %v4457, %v4423
        %v4683 = vshrl.u32 %v4423, 16
        %v4684 = vshrl.u32 %v4457, 16
        %v4685 = vpack.i.b16 %v4684, %v4683
        %v4688 = vpack.i.b16 %v4584, %v4550
        %v4689 = vshrl.u32 %v4550, 16
        %v4690 = vshrl.u32 %v4584, 16
        %v4691 = vpack.i.b16 %v4690, %v4689
        %v4694 = vpack.i.b16 %v4592, %v4558
        %v4695 = vshrl.u32 %v4558, 16
        %v4696 = vshrl.u32 %v4592, 16
        %v4697 = vpack.i.b16 %v4696, %v4695
        %v4700 = vpack.i.b16 %v4591, %v4557
        %v4701 = vshrl.u32 %v4557, 16
        %v4702 = vshrl.u32 %v4591, 16
        %v4703 = vpack.i.b16 %v4702, %v4701
        %v4706 = vpack.i.b16 %v4593, %v4559
        %v4707 = vshrl.u32 %v4559, 16
        %v4708 = vshrl.u32 %v4593, 16
        %v4709 = vpack.i.b16 %v4708, %v4707
        %v4712 = vpack.i.b16 %v4516, %v4482
        %v4713 = vshrl.u32 %v4482, 16
        %v4714 = vshrl.u32 %v4516, 16
        %v4715 = vpack.i.b16 %v4714, %v4713
        %v4718 = vpack.i.b16 %v4524, %v4490
        %v4719 = vshrl.u32 %v4490, 16
        %v4720 = vshrl.u32 %v4524, 16
        %v4721 = vpack.i.b16 %v4720, %v4719
        %v4724 = vpack.i.b16 %v4523, %v4489
        %v4725 = vshrl.u32 %v4489, 16
        %v4726 = vshrl.u32 %v4523, 16
        %v4727 = vpack.i.b16 %v4726, %v4725
        %v4730 = vpack.i.b16 %v4525, %v4491
        %v4731 = vshrl.u32 %v4491, 16
        %v4732 = vshrl.u32 %v4525, 16
        %v4733 = vpack.i.b16 %v4732, %v4731
        %v4736 = vpack.i.b16 %v4652, %v4618
        %v4737 = vshrl.u32 %v4618, 16
        %v4738 = vshrl.u32 %v4652, 16
        %v4739 = vpack.i.b16 %v4738, %v4737
        %v4742 = vpack.i.b16 %v4660, %v4626
        %v4743 = vshrl.u32 %v4626, 16
        %v4744 = vshrl.u32 %v4660, 16
        %v4745 = vpack.i.b16 %v4744, %v4743
        %v4748 = vpack.i.b16 %v4659, %v4625
        %v4749 = vshrl.u32 %v4625, 16
        %v4750 = vshrl.u32 %v4659, 16
        %v4751 = vpack.i.b16 %v4750, %v4749
        %v4754 = vpack.i.b16 %v4661, %v4627
        %v4755 = vshrl.u32 %v4627, 16
        %v4756 = vshrl.u32 %v4661, 16
        %v4757 = vpack.i.b16 %v4756, %v4755
        %v4758 = vunpack.c.l.b16 %v559
        %v4759 = vunpack.c.l.b16 %v607
        %v4760 = vunpack.c.l.b16 %v562
        %v4761 = vunpack.c.l.b16 %v610
        %v4762 = vunpack.c.l.b16 %v565
        %v4763 = vunpack.c.l.b16 %v613
        %v4764 = vunpack.c.l.b16 %v568
        %v4765 = vunpack.c.l.b16 %v616
        %v4766 = vunpack.c.l.b16 %v571
        %v4767 = vunpack.c.l.b16 %v619
        %v4768 = vunpack.c.l.b16 %v574
        %v4769 = vunpack.c.l.b16 %v622
        %v4770 = vunpack.c.l.b16 %v577
        %v4771 = vunpack.c.l.b16 %v625
        %v4772 = vunpack.c.l.b16 %v580
        %v4773 = vunpack.c.l.b16 %v628
        %v4774 = vunpack.c.l.b16 %v583
        %v4775 = vunpack.c.l.b16 %v631
        %v4776 = vunpack.c.l.b16 %v586
        %v4777 = vunpack.c.l.b16 %v634
        %v4778 = vunpack.c.l.b16 %v589
        %v4779 = vunpack.c.l.b16 %v637
        %v4780 = vunpack.c.l.b16 %v592
        %v4781 = vunpack.c.l.b16 %v640
        %v4782 = vunpack.c.l.b16 %v595
        %v4783 = vunpack.c.l.b16 %v643
        %v4784 = vunpack.c.l.b16 %v598
        %v4785 = vunpack.c.l.b16 %v646
        %v4786 = vunpack.c.l.b16 %v601
        %v4787 = vunpack.c.l.b16 %v649
        %v4788 = vunpack.c.l.b16 %v604
        %v4789 = vunpack.c.l.b16 %v652
        %v4790 = vpack.c.b16 %v4759, %v4758
        %v4791 = vpack.c.b16 %v4761, %v4760
        %v4792 = vpack.c.b16 %v4763, %v4762
        %v4793 = vpack.c.b16 %v4765, %v4764
        %v4794 = vpack.c.b16 %v4767, %v4766
        %v4795 = vpack.c.b16 %v4769, %v4768
        %v4796 = vpack.c.b16 %v4771, %v4770
        %v4797 = vpack.c.b16 %v4773, %v4772
        %v4798 = vpack.c.b16 %v4775, %v4774
        %v4799 = vpack.c.b16 %v4777, %v4776
        %v4800 = vpack.c.b16 %v4779, %v4778
        %v4801 = vpack.c.b16 %v4781, %v4780
        %v4802 = vpack.c.b16 %v4783, %v4782
        %v4803 = vpack.c.b16 %v4785, %v4784
        %v4804 = vpack.c.b16 %v4787, %v4786
        %v4805 = vpack.c.b16 %v4789, %v4788
        %v4806 = vunpack.c.l.b16 %v1017
        %v4807 = vunpack.c.l.b16 %v1065
        %v4808 = vunpack.c.l.b16 %v1020
        %v4809 = vunpack.c.l.b16 %v1068
        %v4810 = vunpack.c.l.b16 %v1023
        %v4811 = vunpack.c.l.b16 %v1071
        %v4812 = vunpack.c.l.b16 %v1026
        %v4813 = vunpack.c.l.b16 %v1074
        %v4814 = vunpack.c.l.b16 %v1029
        %v4815 = vunpack.c.l.b16 %v1077
        %v4816 = vunpack.c.l.b16 %v1032
        %v4817 = vunpack.c.l.b16 %v1080
        %v4818 = vunpack.c.l.b16 %v1035
        %v4819 = vunpack.c.l.b16 %v1083
        %v4820 = vunpack.c.l.b16 %v1038
        %v4821 = vunpack.c.l.b16 %v1086
        %v4822 = vunpack.c.l.b16 %v1041
        %v4823 = vunpack.c.l.b16 %v1089
        %v4824 = vunpack.c.l.b16 %v1044
        %v4825 = vunpack.c.l.b16 %v1092
        %v4826 = vunpack.c.l.b16 %v1047
        %v4827 = vunpack.c.l.b16 %v1095
        %v4828 = vunpack.c.l.b16 %v1050
        %v4829 = vunpack.c.l.b16 %v1098
        %v4830 = vunpack.c.l.b16 %v1053
        %v4831 = vunpack.c.l.b16 %v1101
        %v4832 = vunpack.c.l.b16 %v1056
        %v4833 = vunpack.c.l.b16 %v1104
        %v4834 = vunpack.c.l.b16 %v1059
        %v4835 = vunpack.c.l.b16 %v1107
        %v4836 = vunpack.c.l.b16 %v1062
        %v4837 = vunpack.c.l.b16 %v1110
        %v4838 = vpack.c.b16 %v4807, %v4806
        %v4839 = vpack.c.b16 %v4809, %v4808
        %v4840 = vpack.c.b16 %v4811, %v4810
        %v4841 = vpack.c.b16 %v4813, %v4812
        %v4842 = vpack.c.b16 %v4815, %v4814
        %v4843 = vpack.c.b16 %v4817, %v4816
        %v4844 = vpack.c.b16 %v4819, %v4818
        %v4845 = vpack.c.b16 %v4821, %v4820
        %v4846 = vpack.c.b16 %v4823, %v4822
        %v4847 = vpack.c.b16 %v4825, %v4824
        %v4848 = vpack.c.b16 %v4827, %v4826
        %v4849 = vpack.c.b16 %v4829, %v4828
        %v4850 = vpack.c.b16 %v4831, %v4830
        %v4851 = vpack.c.b16 %v4833, %v4832
        %v4852 = vpack.c.b16 %v4835, %v4834
        %v4853 = vpack.c.b16 %v4837, %v4836
        %4854 = vrot.lane.b32.xlu0 %v4838, 4
        %v4855 = vpop.permute.xlu0 %4854
        %4856 = vrot.lane.b32.xlu0 %v4839, 4
        %v4857 = vpop.permute.xlu0 %4856
        %4858 = vrot.lane.b32.xlu0 %v4840, 4
        %v4859 = vpop.permute.xlu0 %4858
        %4860 = vrot.lane.b32.xlu0 %v4841, 4
        %v4861 = vpop.permute.xlu0 %4860
        %4862 = vrot.lane.b32.xlu0 %v4842, 4
        %v4863 = vpop.permute.xlu0 %4862
        %4864 = vrot.lane.b32.xlu0 %v4843, 4
        %v4865 = vpop.permute.xlu0 %4864
        %4866 = vrot.lane.b32.xlu0 %v4844, 4
        %v4867 = vpop.permute.xlu0 %4866
        %4868 = vrot.lane.b32.xlu0 %v4845, 4
        %v4869 = vpop.permute.xlu0 %4868
        %4870 = vrot.lane.b32.xlu0 %v4846, 4
        %v4871 = vpop.permute.xlu0 %4870
        %4872 = vrot.lane.b32.xlu0 %v4847, 4
        %v4873 = vpop.permute.xlu0 %4872
        %4874 = vrot.lane.b32.xlu0 %v4848, 4
        %v4875 = vpop.permute.xlu0 %4874
        %4876 = vrot.lane.b32.xlu0 %v4849, 4
        %v4877 = vpop.permute.xlu0 %4876
        %4878 = vrot.lane.b32.xlu0 %v4850, 4
        %v4879 = vpop.permute.xlu0 %4878
        %4880 = vrot.lane.b32.xlu0 %v4851, 4
        %v4881 = vpop.permute.xlu0 %4880
        %4882 = vrot.lane.b32.xlu0 %v4852, 4
        %v4883 = vpop.permute.xlu0 %4882
        %4884 = vrot.lane.b32.xlu0 %v4853, 4
        %v4885 = vpop.permute.xlu0 %4884
        %v4886 = vunpack.c.l.b16 %v1475
        %v4887 = vunpack.c.l.b16 %v1523
        %v4888 = vunpack.c.l.b16 %v1478
        %v4889 = vunpack.c.l.b16 %v1526
        %v4890 = vunpack.c.l.b16 %v1481
        %v4891 = vunpack.c.l.b16 %v1529
        %v4892 = vunpack.c.l.b16 %v1484
        %v4893 = vunpack.c.l.b16 %v1532
        %v4894 = vunpack.c.l.b16 %v1487
        %v4895 = vunpack.c.l.b16 %v1535
        %v4896 = vunpack.c.l.b16 %v1490
        %v4897 = vunpack.c.l.b16 %v1538
        %v4898 = vunpack.c.l.b16 %v1493
        %v4899 = vunpack.c.l.b16 %v1541
        %v4900 = vunpack.c.l.b16 %v1496
        %v4901 = vunpack.c.l.b16 %v1544
        %v4902 = vunpack.c.l.b16 %v1499
        %v4903 = vunpack.c.l.b16 %v1547
        %v4904 = vunpack.c.l.b16 %v1502
        %v4905 = vunpack.c.l.b16 %v1550
        %v4906 = vunpack.c.l.b16 %v1505
        %v4907 = vunpack.c.l.b16 %v1553
        %v4908 = vunpack.c.l.b16 %v1508
        %v4909 = vunpack.c.l.b16 %v1556
        %v4910 = vunpack.c.l.b16 %v1511
        %v4911 = vunpack.c.l.b16 %v1559
        %v4912 = vunpack.c.l.b16 %v1514
        %v4913 = vunpack.c.l.b16 %v1562
        %v4914 = vunpack.c.l.b16 %v1517
        %v4915 = vunpack.c.l.b16 %v1565
        %v4916 = vunpack.c.l.b16 %v1520
        %v4917 = vunpack.c.l.b16 %v1568
        %v4918 = vpack.c.b16 %v4887, %v4886
        %v4919 = vpack.c.b16 %v4889, %v4888
        %v4920 = vpack.c.b16 %v4891, %v4890
        %v4921 = vpack.c.b16 %v4893, %v4892
        %v4922 = vpack.c.b16 %v4895, %v4894
        %v4923 = vpack.c.b16 %v4897, %v4896
        %v4924 = vpack.c.b16 %v4899, %v4898
        %v4925 = vpack.c.b16 %v4901, %v4900
        %v4926 = vpack.c.b16 %v4903, %v4902
        %v4927 = vpack.c.b16 %v4905, %v4904
        %v4928 = vpack.c.b16 %v4907, %v4906
        %v4929 = vpack.c.b16 %v4909, %v4908
        %v4930 = vpack.c.b16 %v4911, %v4910
        %v4931 = vpack.c.b16 %v4913, %v4912
        %v4932 = vpack.c.b16 %v4915, %v4914
        %v4933 = vpack.c.b16 %v4917, %v4916
        %4934 = vrot.lane.b32.xlu0 %v4918, 8
        %v4935 = vpop.permute.xlu0 %4934
        %4936 = vrot.lane.b32.xlu0 %v4919, 8
        %v4937 = vpop.permute.xlu0 %4936
        %4938 = vrot.lane.b32.xlu0 %v4920, 8
        %v4939 = vpop.permute.xlu0 %4938
        %4940 = vrot.lane.b32.xlu0 %v4921, 8
        %v4941 = vpop.permute.xlu0 %4940
        %4942 = vrot.lane.b32.xlu0 %v4922, 8
        %v4943 = vpop.permute.xlu0 %4942
        %4944 = vrot.lane.b32.xlu0 %v4923, 8
        %v4945 = vpop.permute.xlu0 %4944
        %4946 = vrot.lane.b32.xlu0 %v4924, 8
        %v4947 = vpop.permute.xlu0 %4946
        %4948 = vrot.lane.b32.xlu0 %v4925, 8
        %v4949 = vpop.permute.xlu0 %4948
        %4950 = vrot.lane.b32.xlu0 %v4926, 8
        %v4951 = vpop.permute.xlu0 %4950
        %4952 = vrot.lane.b32.xlu0 %v4927, 8
        %v4953 = vpop.permute.xlu0 %4952
        %4954 = vrot.lane.b32.xlu0 %v4928, 8
        %v4955 = vpop.permute.xlu0 %4954
        %4956 = vrot.lane.b32.xlu0 %v4929, 8
        %v4957 = vpop.permute.xlu0 %4956
        %4958 = vrot.lane.b32.xlu0 %v4930, 8
        %v4959 = vpop.permute.xlu0 %4958
        %4960 = vrot.lane.b32.xlu0 %v4931, 8
        %v4961 = vpop.permute.xlu0 %4960
        %4962 = vrot.lane.b32.xlu0 %v4932, 8
        %v4963 = vpop.permute.xlu0 %4962
        %4964 = vrot.lane.b32.xlu0 %v4933, 8
        %v4965 = vpop.permute.xlu0 %4964
        %v4966 = vunpack.c.l.b16 %v2293
        %v4967 = vunpack.c.l.b16 %v2341
        %v4968 = vunpack.c.l.b16 %v2296
        %v4969 = vunpack.c.l.b16 %v2344
        %v4970 = vunpack.c.l.b16 %v2299
        %v4971 = vunpack.c.l.b16 %v2347
        %v4972 = vunpack.c.l.b16 %v2302
        %v4973 = vunpack.c.l.b16 %v2350
        %v4974 = vunpack.c.l.b16 %v2305
        %v4975 = vunpack.c.l.b16 %v2353
        %v4976 = vunpack.c.l.b16 %v2308
        %v4977 = vunpack.c.l.b16 %v2356
        %v4978 = vunpack.c.l.b16 %v2311
        %v4979 = vunpack.c.l.b16 %v2359
        %v4980 = vunpack.c.l.b16 %v2314
        %v4981 = vunpack.c.l.b16 %v2362
        %v4982 = vunpack.c.l.b16 %v2317
        %v4983 = vunpack.c.l.b16 %v2365
        %v4984 = vunpack.c.l.b16 %v2320
        %v4985 = vunpack.c.l.b16 %v2368
        %v4986 = vunpack.c.l.b16 %v2323
        %v4987 = vunpack.c.l.b16 %v2371
        %v4988 = vunpack.c.l.b16 %v2326
        %v4989 = vunpack.c.l.b16 %v2374
        %v4990 = vunpack.c.l.b16 %v2329
        %v4991 = vunpack.c.l.b16 %v2377
        %v4992 = vunpack.c.l.b16 %v2332
        %v4993 = vunpack.c.l.b16 %v2380
        %v4994 = vunpack.c.l.b16 %v2335
        %v4995 = vunpack.c.l.b16 %v2383
        %v4996 = vunpack.c.l.b16 %v2338
        %v4997 = vunpack.c.l.b16 %v2386
        %v4998 = vpack.c.b16 %v4967, %v4966
        %v4999 = vpack.c.b16 %v4969, %v4968
        %v5000 = vpack.c.b16 %v4971, %v4970
        %v5001 = vpack.c.b16 %v4973, %v4972
        %v5002 = vpack.c.b16 %v4975, %v4974
        %v5003 = vpack.c.b16 %v4977, %v4976
        %v5004 = vpack.c.b16 %v4979, %v4978
        %v5005 = vpack.c.b16 %v4981, %v4980
        %v5006 = vpack.c.b16 %v4983, %v4982
        %v5007 = vpack.c.b16 %v4985, %v4984
        %v5008 = vpack.c.b16 %v4987, %v4986
        %v5009 = vpack.c.b16 %v4989, %v4988
        %v5010 = vpack.c.b16 %v4991, %v4990
        %v5011 = vpack.c.b16 %v4993, %v4992
        %v5012 = vpack.c.b16 %v4995, %v4994
        %v5013 = vpack.c.b16 %v4997, %v4996
        %5014 = vrot.lane.b32.xlu0 %v4998, 12
        %v5015 = vpop.permute.xlu0 %5014
        %5016 = vrot.lane.b32.xlu0 %v4999, 12
        %v5017 = vpop.permute.xlu0 %5016
        %5018 = vrot.lane.b32.xlu0 %v5000, 12
        %v5019 = vpop.permute.xlu0 %5018
        %5020 = vrot.lane.b32.xlu0 %v5001, 12
        %v5021 = vpop.permute.xlu0 %5020
        %5022 = vrot.lane.b32.xlu0 %v5002, 12
        %v5023 = vpop.permute.xlu0 %5022
        %5024 = vrot.lane.b32.xlu0 %v5003, 12
        %v5025 = vpop.permute.xlu0 %5024
        %5026 = vrot.lane.b32.xlu0 %v5004, 12
        %v5027 = vpop.permute.xlu0 %5026
        %5028 = vrot.lane.b32.xlu0 %v5005, 12
        %v5029 = vpop.permute.xlu0 %5028
        %5030 = vrot.lane.b32.xlu0 %v5006, 12
        %v5031 = vpop.permute.xlu0 %5030
        %5032 = vrot.lane.b32.xlu0 %v5007, 12
        %v5033 = vpop.permute.xlu0 %5032
        %5034 = vrot.lane.b32.xlu0 %v5008, 12
        %v5035 = vpop.permute.xlu0 %5034
        %5036 = vrot.lane.b32.xlu0 %v5009, 12
        %v5037 = vpop.permute.xlu0 %5036
        %5038 = vrot.lane.b32.xlu0 %v5010, 12
        %v5039 = vpop.permute.xlu0 %5038
        %5040 = vrot.lane.b32.xlu0 %v5011, 12
        %v5041 = vpop.permute.xlu0 %5040
        %5042 = vrot.lane.b32.xlu0 %v5012, 12
        %v5043 = vpop.permute.xlu0 %5042
        %5044 = vrot.lane.b32.xlu0 %v5013, 12
        %v5045 = vpop.permute.xlu0 %5044
        %v5046 = vunpack.c.l.b16 %v2757
        %v5047 = vunpack.c.l.b16 %v2805
        %v5048 = vunpack.c.l.b16 %v2760
        %v5049 = vunpack.c.l.b16 %v2808
        %v5050 = vunpack.c.l.b16 %v2763
        %v5051 = vunpack.c.l.b16 %v2811
        %v5052 = vunpack.c.l.b16 %v2766
        %v5053 = vunpack.c.l.b16 %v2814
        %v5054 = vunpack.c.l.b16 %v2769
        %v5055 = vunpack.c.l.b16 %v2817
        %v5056 = vunpack.c.l.b16 %v2772
        %v5057 = vunpack.c.l.b16 %v2820
        %v5058 = vunpack.c.l.b16 %v2775
        %v5059 = vunpack.c.l.b16 %v2823
        %v5060 = vunpack.c.l.b16 %v2778
        %v5061 = vunpack.c.l.b16 %v2826
        %v5062 = vunpack.c.l.b16 %v2781
        %v5063 = vunpack.c.l.b16 %v2829
        %v5064 = vunpack.c.l.b16 %v2784
        %v5065 = vunpack.c.l.b16 %v2832
        %v5066 = vunpack.c.l.b16 %v2787
        %v5067 = vunpack.c.l.b16 %v2835
        %v5068 = vunpack.c.l.b16 %v2790
        %v5069 = vunpack.c.l.b16 %v2838
        %v5070 = vunpack.c.l.b16 %v2793
        %v5071 = vunpack.c.l.b16 %v2841
        %v5072 = vunpack.c.l.b16 %v2796
        %v5073 = vunpack.c.l.b16 %v2844
        %v5074 = vunpack.c.l.b16 %v2799
        %v5075 = vunpack.c.l.b16 %v2847
        %v5076 = vunpack.c.l.b16 %v2802
        %v5077 = vunpack.c.l.b16 %v2850
        %v5078 = vpack.c.b16 %v5047, %v5046
        %v5079 = vpack.c.b16 %v5049, %v5048
        %v5080 = vpack.c.b16 %v5051, %v5050
        %v5081 = vpack.c.b16 %v5053, %v5052
        %v5082 = vpack.c.b16 %v5055, %v5054
        %v5083 = vpack.c.b16 %v5057, %v5056
        %v5084 = vpack.c.b16 %v5059, %v5058
        %v5085 = vpack.c.b16 %v5061, %v5060
        %v5086 = vpack.c.b16 %v5063, %v5062
        %v5087 = vpack.c.b16 %v5065, %v5064
        %v5088 = vpack.c.b16 %v5067, %v5066
        %v5089 = vpack.c.b16 %v5069, %v5068
        %v5090 = vpack.c.b16 %v5071, %v5070
        %v5091 = vpack.c.b16 %v5073, %v5072
        %v5092 = vpack.c.b16 %v5075, %v5074
        %v5093 = vpack.c.b16 %v5077, %v5076
        %5094 = vrot.lane.b32.xlu0 %v5078, 16
        %v5095 = vpop.permute.xlu0 %5094
        %5096 = vrot.lane.b32.xlu0 %v5079, 16
        %v5097 = vpop.permute.xlu0 %5096
        %5098 = vrot.lane.b32.xlu0 %v5080, 16
        %v5099 = vpop.permute.xlu0 %5098
        %5100 = vrot.lane.b32.xlu0 %v5081, 16
        %v5101 = vpop.permute.xlu0 %5100
        %5102 = vrot.lane.b32.xlu0 %v5082, 16
        %v5103 = vpop.permute.xlu0 %5102
        %5104 = vrot.lane.b32.xlu0 %v5083, 16
        %v5105 = vpop.permute.xlu0 %5104
        %5106 = vrot.lane.b32.xlu0 %v5084, 16
        %v5107 = vpop.permute.xlu0 %5106
        %5108 = vrot.lane.b32.xlu0 %v5085, 16
        %v5109 = vpop.permute.xlu0 %5108
        %5110 = vrot.lane.b32.xlu0 %v5086, 16
        %v5111 = vpop.permute.xlu0 %5110
        %5112 = vrot.lane.b32.xlu0 %v5087, 16
        %v5113 = vpop.permute.xlu0 %5112
        %5114 = vrot.lane.b32.xlu0 %v5088, 16
        %v5115 = vpop.permute.xlu0 %5114
        %5116 = vrot.lane.b32.xlu0 %v5089, 16
        %v5117 = vpop.permute.xlu0 %5116
        %5118 = vrot.lane.b32.xlu0 %v5090, 16
        %v5119 = vpop.permute.xlu0 %5118
        %5120 = vrot.lane.b32.xlu0 %v5091, 16
        %v5121 = vpop.permute.xlu0 %5120
        %5122 = vrot.lane.b32.xlu0 %v5092, 16
        %v5123 = vpop.permute.xlu0 %5122
        %5124 = vrot.lane.b32.xlu0 %v5093, 16
        %v5125 = vpop.permute.xlu0 %5124
        %v5126 = vunpack.c.l.b16 %v3221
        %v5127 = vunpack.c.l.b16 %v3269
        %v5128 = vunpack.c.l.b16 %v3224
        %v5129 = vunpack.c.l.b16 %v3272
        %v5130 = vunpack.c.l.b16 %v3227
        %v5131 = vunpack.c.l.b16 %v3275
        %v5132 = vunpack.c.l.b16 %v3230
        %v5133 = vunpack.c.l.b16 %v3278
        %v5134 = vunpack.c.l.b16 %v3233
        %v5135 = vunpack.c.l.b16 %v3281
        %v5136 = vunpack.c.l.b16 %v3236
        %v5137 = vunpack.c.l.b16 %v3284
        %v5138 = vunpack.c.l.b16 %v3239
        %v5139 = vunpack.c.l.b16 %v3287
        %v5140 = vunpack.c.l.b16 %v3242
        %v5141 = vunpack.c.l.b16 %v3290
        %v5142 = vunpack.c.l.b16 %v3245
        %v5143 = vunpack.c.l.b16 %v3293
        %v5144 = vunpack.c.l.b16 %v3248
        %v5145 = vunpack.c.l.b16 %v3296
        %v5146 = vunpack.c.l.b16 %v3251
        %v5147 = vunpack.c.l.b16 %v3299
        %v5148 = vunpack.c.l.b16 %v3254
        %v5149 = vunpack.c.l.b16 %v3302
        %v5150 = vunpack.c.l.b16 %v3257
        %v5151 = vunpack.c.l.b16 %v3305
        %v5152 = vunpack.c.l.b16 %v3260
        %v5153 = vunpack.c.l.b16 %v3308
        %v5154 = vunpack.c.l.b16 %v3263
        %v5155 = vunpack.c.l.b16 %v3311
        %v5156 = vunpack.c.l.b16 %v3266
        %v5157 = vunpack.c.l.b16 %v3314
        %v5158 = vpack.c.b16 %v5127, %v5126
        %v5159 = vpack.c.b16 %v5129, %v5128
        %v5160 = vpack.c.b16 %v5131, %v5130
        %v5161 = vpack.c.b16 %v5133, %v5132
        %v5162 = vpack.c.b16 %v5135, %v5134
        %v5163 = vpack.c.b16 %v5137, %v5136
        %v5164 = vpack.c.b16 %v5139, %v5138
        %v5165 = vpack.c.b16 %v5141, %v5140
        %v5166 = vpack.c.b16 %v5143, %v5142
        %v5167 = vpack.c.b16 %v5145, %v5144
        %v5168 = vpack.c.b16 %v5147, %v5146
        %v5169 = vpack.c.b16 %v5149, %v5148
        %v5170 = vpack.c.b16 %v5151, %v5150
        %v5171 = vpack.c.b16 %v5153, %v5152
        %v5172 = vpack.c.b16 %v5155, %v5154
        %v5173 = vpack.c.b16 %v5157, %v5156
        %5174 = vrot.lane.b32.xlu0 %v5158, 20
        %v5175 = vpop.permute.xlu0 %5174
        %5176 = vrot.lane.b32.xlu0 %v5159, 20
        %v5177 = vpop.permute.xlu0 %5176
        %5178 = vrot.lane.b32.xlu0 %v5160, 20
        %v5179 = vpop.permute.xlu0 %5178
        %5180 = vrot.lane.b32.xlu0 %v5161, 20
        %v5181 = vpop.permute.xlu0 %5180
        %5182 = vrot.lane.b32.xlu0 %v5162, 20
        %v5183 = vpop.permute.xlu0 %5182
        %5184 = vrot.lane.b32.xlu0 %v5163, 20
        %v5185 = vpop.permute.xlu0 %5184
        %5186 = vrot.lane.b32.xlu0 %v5164, 20
        %v5187 = vpop.permute.xlu0 %5186
        %5188 = vrot.lane.b32.xlu0 %v5165, 20
        %v5189 = vpop.permute.xlu0 %5188
        %5190 = vrot.lane.b32.xlu0 %v5166, 20
        %v5191 = vpop.permute.xlu0 %5190
        %5192 = vrot.lane.b32.xlu0 %v5167, 20
        %v5193 = vpop.permute.xlu0 %5192
        %5194 = vrot.lane.b32.xlu0 %v5168, 20
        %v5195 = vpop.permute.xlu0 %5194
        %5196 = vrot.lane.b32.xlu0 %v5169, 20
        %v5197 = vpop.permute.xlu0 %5196
        %5198 = vrot.lane.b32.xlu0 %v5170, 20
        %v5199 = vpop.permute.xlu0 %5198
        %5200 = vrot.lane.b32.xlu0 %v5171, 20
        %v5201 = vpop.permute.xlu0 %5200
        %5202 = vrot.lane.b32.xlu0 %v5172, 20
        %v5203 = vpop.permute.xlu0 %5202
        %5204 = vrot.lane.b32.xlu0 %v5173, 20
        %v5205 = vpop.permute.xlu0 %5204
        %v5206 = vunpack.c.l.b16 %v3736
        %v5207 = vunpack.c.l.b16 %v3784
        %v5208 = vunpack.c.l.b16 %v3739
        %v5209 = vunpack.c.l.b16 %v3787
        %v5210 = vunpack.c.l.b16 %v3742
        %v5211 = vunpack.c.l.b16 %v3790
        %v5212 = vunpack.c.l.b16 %v3745
        %v5213 = vunpack.c.l.b16 %v3793
        %v5214 = vunpack.c.l.b16 %v3748
        %v5215 = vunpack.c.l.b16 %v3796
        %v5216 = vunpack.c.l.b16 %v3751
        %v5217 = vunpack.c.l.b16 %v3799
        %v5218 = vunpack.c.l.b16 %v3754
        %v5219 = vunpack.c.l.b16 %v3802
        %v5220 = vunpack.c.l.b16 %v3757
        %v5221 = vunpack.c.l.b16 %v3805
        %v5222 = vunpack.c.l.b16 %v3760
        %v5223 = vunpack.c.l.b16 %v3808
        %v5224 = vunpack.c.l.b16 %v3763
        %v5225 = vunpack.c.l.b16 %v3811
        %v5226 = vunpack.c.l.b16 %v3766
        %v5227 = vunpack.c.l.b16 %v3814
        %v5228 = vunpack.c.l.b16 %v3769
        %v5229 = vunpack.c.l.b16 %v3817
        %v5230 = vunpack.c.l.b16 %v3772
        %v5231 = vunpack.c.l.b16 %v3820
        %v5232 = vunpack.c.l.b16 %v3775
        %v5233 = vunpack.c.l.b16 %v3823
        %v5234 = vunpack.c.l.b16 %v3778
        %v5235 = vunpack.c.l.b16 %v3826
        %v5236 = vunpack.c.l.b16 %v3781
        %v5237 = vunpack.c.l.b16 %v3829
        %v5238 = vpack.c.b16 %v5207, %v5206
        %v5239 = vpack.c.b16 %v5209, %v5208
        %v5240 = vpack.c.b16 %v5211, %v5210
        %v5241 = vpack.c.b16 %v5213, %v5212
        %v5242 = vpack.c.b16 %v5215, %v5214
        %v5243 = vpack.c.b16 %v5217, %v5216
        %v5244 = vpack.c.b16 %v5219, %v5218
        %v5245 = vpack.c.b16 %v5221, %v5220
        %v5246 = vpack.c.b16 %v5223, %v5222
        %v5247 = vpack.c.b16 %v5225, %v5224
        %v5248 = vpack.c.b16 %v5227, %v5226
        %v5249 = vpack.c.b16 %v5229, %v5228
        %v5250 = vpack.c.b16 %v5231, %v5230
        %v5251 = vpack.c.b16 %v5233, %v5232
        %v5252 = vpack.c.b16 %v5235, %v5234
        %v5253 = vpack.c.b16 %v5237, %v5236
        %5254 = vrot.lane.b32.xlu0 %v5238, 24
        %v5255 = vpop.permute.xlu0 %5254
        %5256 = vrot.lane.b32.xlu0 %v5239, 24
        %v5257 = vpop.permute.xlu0 %5256
        %5258 = vrot.lane.b32.xlu0 %v5240, 24
        %v5259 = vpop.permute.xlu0 %5258
        %5260 = vrot.lane.b32.xlu0 %v5241, 24
        %v5261 = vpop.permute.xlu0 %5260
        %5262 = vrot.lane.b32.xlu0 %v5242, 24
        %v5263 = vpop.permute.xlu0 %5262
        %5264 = vrot.lane.b32.xlu0 %v5243, 24
        %v5265 = vpop.permute.xlu0 %5264
        %5266 = vrot.lane.b32.xlu0 %v5244, 24
        %v5267 = vpop.permute.xlu0 %5266
        %5268 = vrot.lane.b32.xlu0 %v5245, 24
        %v5269 = vpop.permute.xlu0 %5268
        %5270 = vrot.lane.b32.xlu0 %v5246, 24
        %v5271 = vpop.permute.xlu0 %5270
        %5272 = vrot.lane.b32.xlu0 %v5247, 24
        %v5273 = vpop.permute.xlu0 %5272
        %5274 = vrot.lane.b32.xlu0 %v5248, 24
        %v5275 = vpop.permute.xlu0 %5274
        %5276 = vrot.lane.b32.xlu0 %v5249, 24
        %v5277 = vpop.permute.xlu0 %5276
        %5278 = vrot.lane.b32.xlu0 %v5250, 24
        %v5279 = vpop.permute.xlu0 %5278
        %5280 = vrot.lane.b32.xlu0 %v5251, 24
        %v5281 = vpop.permute.xlu0 %5280
        %5282 = vrot.lane.b32.xlu0 %v5252, 24
        %v5283 = vpop.permute.xlu0 %5282
        %5284 = vrot.lane.b32.xlu0 %v5253, 24
        %v5285 = vpop.permute.xlu0 %5284
        %v5286 = vunpack.c.l.b16 %v4200
        %v5287 = vunpack.c.l.b16 %v4248
        %v5288 = vunpack.c.l.b16 %v4203
        %v5289 = vunpack.c.l.b16 %v4251
        %v5290 = vunpack.c.l.b16 %v4206
        %v5291 = vunpack.c.l.b16 %v4254
        %v5292 = vunpack.c.l.b16 %v4209
        %v5293 = vunpack.c.l.b16 %v4257
        %v5294 = vunpack.c.l.b16 %v4212
        %v5295 = vunpack.c.l.b16 %v4260
        %v5296 = vunpack.c.l.b16 %v4215
        %v5297 = vunpack.c.l.b16 %v4263
        %v5298 = vunpack.c.l.b16 %v4218
        %v5299 = vunpack.c.l.b16 %v4266
        %v5300 = vunpack.c.l.b16 %v4221
        %v5301 = vunpack.c.l.b16 %v4269
        %v5302 = vunpack.c.l.b16 %v4224
        %v5303 = vunpack.c.l.b16 %v4272
        %v5304 = vunpack.c.l.b16 %v4227
        %v5305 = vunpack.c.l.b16 %v4275
        %v5306 = vunpack.c.l.b16 %v4230
        %v5307 = vunpack.c.l.b16 %v4278
        %v5308 = vunpack.c.l.b16 %v4233
        %v5309 = vunpack.c.l.b16 %v4281
        %v5310 = vunpack.c.l.b16 %v4236
        %v5311 = vunpack.c.l.b16 %v4284
        %v5312 = vunpack.c.l.b16 %v4239
        %v5313 = vunpack.c.l.b16 %v4287
        %v5314 = vunpack.c.l.b16 %v4242
        %v5315 = vunpack.c.l.b16 %v4290
        %v5316 = vunpack.c.l.b16 %v4245
        %v5317 = vunpack.c.l.b16 %v4293
        %v5318 = vpack.c.b16 %v5287, %v5286
        %v5319 = vpack.c.b16 %v5289, %v5288
        %v5320 = vpack.c.b16 %v5291, %v5290
        %v5321 = vpack.c.b16 %v5293, %v5292
        %v5322 = vpack.c.b16 %v5295, %v5294
        %v5323 = vpack.c.b16 %v5297, %v5296
        %v5324 = vpack.c.b16 %v5299, %v5298
        %v5325 = vpack.c.b16 %v5301, %v5300
        %v5326 = vpack.c.b16 %v5303, %v5302
        %v5327 = vpack.c.b16 %v5305, %v5304
        %v5328 = vpack.c.b16 %v5307, %v5306
        %v5329 = vpack.c.b16 %v5309, %v5308
        %v5330 = vpack.c.b16 %v5311, %v5310
        %v5331 = vpack.c.b16 %v5313, %v5312
        %v5332 = vpack.c.b16 %v5315, %v5314
        %v5333 = vpack.c.b16 %v5317, %v5316
        %5334 = vrot.lane.b32.xlu0 %v5318, 28
        %v5335 = vpop.permute.xlu0 %5334
        %5336 = vrot.lane.b32.xlu0 %v5319, 28
        %v5337 = vpop.permute.xlu0 %5336
        %5338 = vrot.lane.b32.xlu0 %v5320, 28
        %v5339 = vpop.permute.xlu0 %5338
        %5340 = vrot.lane.b32.xlu0 %v5321, 28
        %v5341 = vpop.permute.xlu0 %5340
        %5342 = vrot.lane.b32.xlu0 %v5322, 28
        %v5343 = vpop.permute.xlu0 %5342
        %5344 = vrot.lane.b32.xlu0 %v5323, 28
        %v5345 = vpop.permute.xlu0 %5344
        %5346 = vrot.lane.b32.xlu0 %v5324, 28
        %v5347 = vpop.permute.xlu0 %5346
        %5348 = vrot.lane.b32.xlu0 %v5325, 28
        %v5349 = vpop.permute.xlu0 %5348
        %5350 = vrot.lane.b32.xlu0 %v5326, 28
        %v5351 = vpop.permute.xlu0 %5350
        %5352 = vrot.lane.b32.xlu0 %v5327, 28
        %v5353 = vpop.permute.xlu0 %5352
        %5354 = vrot.lane.b32.xlu0 %v5328, 28
        %v5355 = vpop.permute.xlu0 %5354
        %5356 = vrot.lane.b32.xlu0 %v5329, 28
        %v5357 = vpop.permute.xlu0 %5356
        %5358 = vrot.lane.b32.xlu0 %v5330, 28
        %v5359 = vpop.permute.xlu0 %5358
        %5360 = vrot.lane.b32.xlu0 %v5331, 28
        %v5361 = vpop.permute.xlu0 %5360
        %5362 = vrot.lane.b32.xlu0 %v5332, 28
        %v5363 = vpop.permute.xlu0 %5362
        %5364 = vrot.lane.b32.xlu0 %v5333, 28
        %v5365 = vpop.permute.xlu0 %5364
        %v5366 = vunpack.c.l.b16 %v4664
        %v5367 = vunpack.c.l.b16 %v4712
        %v5368 = vunpack.c.l.b16 %v4667
        %v5369 = vunpack.c.l.b16 %v4715
        %v5370 = vunpack.c.l.b16 %v4670
        %v5371 = vunpack.c.l.b16 %v4718
        %v5372 = vunpack.c.l.b16 %v4673
        %v5373 = vunpack.c.l.b16 %v4721
        %v5374 = vunpack.c.l.b16 %v4676
        %v5375 = vunpack.c.l.b16 %v4724
        %v5376 = vunpack.c.l.b16 %v4679
        %v5377 = vunpack.c.l.b16 %v4727
        %v5378 = vunpack.c.l.b16 %v4682
        %v5379 = vunpack.c.l.b16 %v4730
        %v5380 = vunpack.c.l.b16 %v4685
        %v5381 = vunpack.c.l.b16 %v4733
        %v5382 = vunpack.c.l.b16 %v4688
        %v5383 = vunpack.c.l.b16 %v4736
        %v5384 = vunpack.c.l.b16 %v4691
        %v5385 = vunpack.c.l.b16 %v4739
        %v5386 = vunpack.c.l.b16 %v4694
        %v5387 = vunpack.c.l.b16 %v4742
        %v5388 = vunpack.c.l.b16 %v4697
        %v5389 = vunpack.c.l.b16 %v4745
        %v5390 = vunpack.c.l.b16 %v4700
        %v5391 = vunpack.c.l.b16 %v4748
        %v5392 = vunpack.c.l.b16 %v4703
        %v5393 = vunpack.c.l.b16 %v4751
        %v5394 = vunpack.c.l.b16 %v4706
        %v5395 = vunpack.c.l.b16 %v4754
        %v5396 = vunpack.c.l.b16 %v4709
        %v5397 = vunpack.c.l.b16 %v4757
        %v5398 = vpack.c.b16 %v5367, %v5366
        %v5399 = vpack.c.b16 %v5369, %v5368
        %v5400 = vpack.c.b16 %v5371, %v5370
        %v5401 = vpack.c.b16 %v5373, %v5372
        %v5402 = vpack.c.b16 %v5375, %v5374
        %v5403 = vpack.c.b16 %v5377, %v5376
        %v5404 = vpack.c.b16 %v5379, %v5378
        %v5405 = vpack.c.b16 %v5381, %v5380
        %v5406 = vpack.c.b16 %v5383, %v5382
        %v5407 = vpack.c.b16 %v5385, %v5384
        %v5408 = vpack.c.b16 %v5387, %v5386
        %v5409 = vpack.c.b16 %v5389, %v5388
        %v5410 = vpack.c.b16 %v5391, %v5390
        %v5411 = vpack.c.b16 %v5393, %v5392
        %v5412 = vpack.c.b16 %v5395, %v5394
        %v5413 = vpack.c.b16 %v5397, %v5396
        %5414 = vrot.lane.b32.xlu0 %v5398, 32
        %v5415 = vpop.permute.xlu0 %5414
        %5416 = vrot.lane.b32.xlu0 %v5399, 32
        %v5417 = vpop.permute.xlu0 %5416
        %5418 = vrot.lane.b32.xlu0 %v5400, 32
        %v5419 = vpop.permute.xlu0 %5418
        %5420 = vrot.lane.b32.xlu0 %v5401, 32
        %v5421 = vpop.permute.xlu0 %5420
        %5422 = vrot.lane.b32.xlu0 %v5402, 32
        %v5423 = vpop.permute.xlu0 %5422
        %5424 = vrot.lane.b32.xlu0 %v5403, 32
        %v5425 = vpop.permute.xlu0 %5424
        %5426 = vrot.lane.b32.xlu0 %v5404, 32
        %v5427 = vpop.permute.xlu0 %5426
        %5428 = vrot.lane.b32.xlu0 %v5405, 32
        %v5429 = vpop.permute.xlu0 %5428
        %5430 = vrot.lane.b32.xlu0 %v5406, 32
        %v5431 = vpop.permute.xlu0 %5430
        %5432 = vrot.lane.b32.xlu0 %v5407, 32
        %v5433 = vpop.permute.xlu0 %5432
        %5434 = vrot.lane.b32.xlu0 %v5408, 32
        %v5435 = vpop.permute.xlu0 %5434
        %5436 = vrot.lane.b32.xlu0 %v5409, 32
        %v5437 = vpop.permute.xlu0 %5436
        %5438 = vrot.lane.b32.xlu0 %v5410, 32
        %v5439 = vpop.permute.xlu0 %5438
        %5440 = vrot.lane.b32.xlu0 %v5411, 32
        %v5441 = vpop.permute.xlu0 %5440
        %5442 = vrot.lane.b32.xlu0 %v5412, 32
        %v5443 = vpop.permute.xlu0 %5442
        %5444 = vrot.lane.b32.xlu0 %v5413, 32
        %v5445 = vpop.permute.xlu0 %5444
        %vm5446 = vcmask 31744
        %v5449 = vsel %vm5446, %v4790, %v4855
        %v5452 = vsel %vm5446, %v4791, %v4857
        %v5455 = vsel %vm5446, %v4792, %v4859
        %v5458 = vsel %vm5446, %v4793, %v4861
        %v5461 = vsel %vm5446, %v4794, %v4863
        %v5464 = vsel %vm5446, %v4795, %v4865
        %v5467 = vsel %vm5446, %v4796, %v4867
        %v5470 = vsel %vm5446, %v4797, %v4869
        %v5473 = vsel %vm5446, %v4798, %v4871
        %v5476 = vsel %vm5446, %v4799, %v4873
        %v5479 = vsel %vm5446, %v4800, %v4875
        %v5482 = vsel %vm5446, %v4801, %v4877
        %v5485 = vsel %vm5446, %v4802, %v4879
        %v5488 = vsel %vm5446, %v4803, %v4881
        %v5491 = vsel %vm5446, %v4804, %v4883
        %v5494 = vsel %vm5446, %v4805, %v4885
        %vm5495 = vcmask 64512
        %v5497 = vsel %vm5495, %v5449, %v4935
        %v5499 = vsel %vm5495, %v5452, %v4937
        %v5501 = vsel %vm5495, %v5455, %v4939
        %v5503 = vsel %vm5495, %v5458, %v4941
        %v5505 = vsel %vm5495, %v5461, %v4943
        %v5507 = vsel %vm5495, %v5464, %v4945
        %v5509 = vsel %vm5495, %v5467, %v4947
        %v5511 = vsel %vm5495, %v5470, %v4949
        %v5513 = vsel %vm5495, %v5473, %v4951
        %v5515 = vsel %vm5495, %v5476, %v4953
        %v5517 = vsel %vm5495, %v5479, %v4955
        %v5519 = vsel %vm5495, %v5482, %v4957
        %v5521 = vsel %vm5495, %v5485, %v4959
        %v5523 = vsel %vm5495, %v5488, %v4961
        %v5525 = vsel %vm5495, %v5491, %v4963
        %v5527 = vsel %vm5495, %v5494, %v4965
        %vm5528 = vcmask 97280
        %v5530 = vsel %vm5528, %v5497, %v5015
        %v5532 = vsel %vm5528, %v5499, %v5017
        %v5534 = vsel %vm5528, %v5501, %v5019
        %v5536 = vsel %vm5528, %v5503, %v5021
        %v5538 = vsel %vm5528, %v5505, %v5023
        %v5540 = vsel %vm5528, %v5507, %v5025
        %v5542 = vsel %vm5528, %v5509, %v5027
        %v5544 = vsel %vm5528, %v5511, %v5029
        %v5546 = vsel %vm5528, %v5513, %v5031
        %v5548 = vsel %vm5528, %v5515, %v5033
        %v5550 = vsel %vm5528, %v5517, %v5035
        %v5552 = vsel %vm5528, %v5519, %v5037
        %v5554 = vsel %vm5528, %v5521, %v5039
        %v5556 = vsel %vm5528, %v5523, %v5041
        %v5558 = vsel %vm5528, %v5525, %v5043
        %v5560 = vsel %vm5528, %v5527, %v5045
        %vm5561 = vcmask 130048
        %v5563 = vsel %vm5561, %v5530, %v5095
        %v5565 = vsel %vm5561, %v5532, %v5097
        %v5567 = vsel %vm5561, %v5534, %v5099
        %v5569 = vsel %vm5561, %v5536, %v5101
        %v5571 = vsel %vm5561, %v5538, %v5103
        %v5573 = vsel %vm5561, %v5540, %v5105
        %v5575 = vsel %vm5561, %v5542, %v5107
        %v5577 = vsel %vm5561, %v5544, %v5109
        %v5579 = vsel %vm5561, %v5546, %v5111
        %v5581 = vsel %vm5561, %v5548, %v5113
        %v5583 = vsel %vm5561, %v5550, %v5115
        %v5585 = vsel %vm5561, %v5552, %v5117
        %v5587 = vsel %vm5561, %v5554, %v5119
        %v5589 = vsel %vm5561, %v5556, %v5121
        %v5591 = vsel %vm5561, %v5558, %v5123
        %v5593 = vsel %vm5561, %v5560, %v5125
        %vm5594 = vcmask 162816
        %v5596 = vsel %vm5594, %v5563, %v5175
        %v5598 = vsel %vm5594, %v5565, %v5177
        %v5600 = vsel %vm5594, %v5567, %v5179
        %v5602 = vsel %vm5594, %v5569, %v5181
        %v5604 = vsel %vm5594, %v5571, %v5183
        %v5606 = vsel %vm5594, %v5573, %v5185
        %v5608 = vsel %vm5594, %v5575, %v5187
        %v5610 = vsel %vm5594, %v5577, %v5189
        %v5612 = vsel %vm5594, %v5579, %v5191
        %v5614 = vsel %vm5594, %v5581, %v5193
        %v5616 = vsel %vm5594, %v5583, %v5195
        %v5618 = vsel %vm5594, %v5585, %v5197
        %v5620 = vsel %vm5594, %v5587, %v5199
        %v5622 = vsel %vm5594, %v5589, %v5201
        %v5624 = vsel %vm5594, %v5591, %v5203
        %v5626 = vsel %vm5594, %v5593, %v5205
        %vm5627 = vcmask 195584
        %v5629 = vsel %vm5627, %v5596, %v5255
        %v5631 = vsel %vm5627, %v5598, %v5257
        %v5633 = vsel %vm5627, %v5600, %v5259
        %v5635 = vsel %vm5627, %v5602, %v5261
        %v5637 = vsel %vm5627, %v5604, %v5263
        %v5639 = vsel %vm5627, %v5606, %v5265
        %v5641 = vsel %vm5627, %v5608, %v5267
        %v5643 = vsel %vm5627, %v5610, %v5269
        %v5645 = vsel %vm5627, %v5612, %v5271
        %v5647 = vsel %vm5627, %v5614, %v5273
        %v5649 = vsel %vm5627, %v5616, %v5275
        %v5651 = vsel %vm5627, %v5618, %v5277
        %v5653 = vsel %vm5627, %v5620, %v5279
        %v5655 = vsel %vm5627, %v5622, %v5281
        %v5657 = vsel %vm5627, %v5624, %v5283
        %v5659 = vsel %vm5627, %v5626, %v5285
        %vm5660 = vcmask 228352
        %v5662 = vsel %vm5660, %v5629, %v5335
        %v5664 = vsel %vm5660, %v5631, %v5337
        %v5666 = vsel %vm5660, %v5633, %v5339
        %v5668 = vsel %vm5660, %v5635, %v5341
        %v5670 = vsel %vm5660, %v5637, %v5343
        %v5672 = vsel %vm5660, %v5639, %v5345
        %v5674 = vsel %vm5660, %v5641, %v5347
        %v5676 = vsel %vm5660, %v5643, %v5349
        %v5678 = vsel %vm5660, %v5645, %v5351
        %v5680 = vsel %vm5660, %v5647, %v5353
        %v5682 = vsel %vm5660, %v5649, %v5355
        %v5684 = vsel %vm5660, %v5651, %v5357
        %v5686 = vsel %vm5660, %v5653, %v5359
        %v5688 = vsel %vm5660, %v5655, %v5361
        %v5690 = vsel %vm5660, %v5657, %v5363
        %v5692 = vsel %vm5660, %v5659, %v5365
        %vm5693 = vcmask 261120
        %v5695 = vsel %vm5693, %v5662, %v5415
        %v5697 = vsel %vm5693, %v5664, %v5417
        %v5699 = vsel %vm5693, %v5666, %v5419
        %v5701 = vsel %vm5693, %v5668, %v5421
        %v5703 = vsel %vm5693, %v5670, %v5423
        %v5705 = vsel %vm5693, %v5672, %v5425
        %v5707 = vsel %vm5693, %v5674, %v5427
        %v5709 = vsel %vm5693, %v5676, %v5429
        %v5711 = vsel %vm5693, %v5678, %v5431
        %v5713 = vsel %vm5693, %v5680, %v5433
        %v5715 = vsel %vm5693, %v5682, %v5435
        %v5717 = vsel %vm5693, %v5684, %v5437
        %v5719 = vsel %vm5693, %v5686, %v5439
        %v5721 = vsel %vm5693, %v5688, %v5441
        %v5723 = vsel %vm5693, %v5690, %v5443
        %v5725 = vsel %vm5693, %v5692, %v5445
        %vm5726 = vcmask 293888
        %v5728 = vsel %vm5726, %v5695, 0
        %v5729 = vsel %vm5726, %v5697, 0
        %v5730 = vsel %vm5726, %v5699, 0
        %v5731 = vsel %vm5726, %v5701, 0
        %v5732 = vsel %vm5726, %v5703, 0
        %v5733 = vsel %vm5726, %v5705, 0
        %v5734 = vsel %vm5726, %v5707, 0
        %v5735 = vsel %vm5726, %v5709, 0
        %v5736 = vsel %vm5726, %v5711, 0
        %v5737 = vsel %vm5726, %v5713, 0
        %v5738 = vsel %vm5726, %v5715, 0
        %v5739 = vsel %vm5726, %v5717, 0
        %v5740 = vsel %vm5726, %v5719, 0
        %v5741 = vsel %vm5726, %v5721, 0
        %v5742 = vsel %vm5726, %v5723, 0
        %v5743 = vsel %vm5726, %v5725, 0
        %v5744 = vld [vmem:[%s1] sm:$0xf]
        %v5745 = vld [vmem:[%s1 + $0x4] sm:$0xf]
        %v5746 = vld [vmem:[%s1 + $0x8] sm:$0xf]
        %v5747 = vld [vmem:[%s1 + $0xc] sm:$0xf]
        %v5748 = vld [vmem:[%s1 + $0x10] sm:$0xf]
        %v5749 = vld [vmem:[%s1 + $0x14] sm:$0xf]
        %v5750 = vld [vmem:[%s2] sm:$0x1]
        %v5752 = vlaneseq
        %v5753 = vshrl.u32 %v5752, 7
        %v5754 = vsub.s32 0, %v5753
        %v5755 = vrot.slane %v5750, %v5754
        %v5763 = vunpack.c.l.b16 %v5744
        %v5764 = vunpack.c.l.b16 %v5745
        %v5765 = vunpack.c.l.b16 %v5746
        %v5766 = vunpack.c.l.b16 %v5747
        %v5767 = vunpack.c.l.b16 %v5748
        %v5768 = vunpack.c.l.b16 %v5749
        %v5769 = vpack.c.b16 %v5764, %v5763
        %v5770 = vpack.c.b16 %v5766, %v5765
        %v5771 = vpack.c.b16 %v5768, %v5767
        %vm5775 = vcmask 392192
        %v5776 = vsel %vm5775, %v5728, 0
        %v5778 = vsel %vm5775, %v5729, 0
        %v5780 = vsel %vm5775, %v5730, 0
        %v5782 = vsel %vm5775, %v5731, 0
        %v5784 = vsel %vm5775, %v5732, 0
        %v5786 = vsel %vm5775, %v5733, 0
        %v5788 = vsel %vm5775, %v5734, 0
        %v5790 = vsel %vm5775, %v5735, 0
        %v5792 = vsel %vm5775, %v5736, 0
        %v5794 = vsel %vm5775, %v5737, 0
        %v5796 = vsel %vm5775, %v5738, 0
        %v5798 = vsel %vm5775, %v5739, 0
        %v5800 = vsel %vm5775, %v5740, 0
        %v5802 = vsel %vm5775, %v5741, 0
        %v5804 = vsel %vm5775, %v5742, 0
        %v5806 = vsel %vm5775, %v5743, 0
        %5808 = vmatprep.subr.bf16.mxu0 0
        %5809 = vmatpush1.bf16.msra.mxu0 %v5769
        %5810 = vmatprep.subr.bf16.mxu0 0
        %5811 = vmatpush1.bf16.msra.mxu0 %v5770
        %5812 = vmatprep.subr.bf16.mxu0 0
        %5813 = vmatpush1.bf16.msra.mxu0 %v5771
        %5814 = vmatprep.subr.bf16.mxu0 0
        %5815 = vmatpush1.bf16.msra.mxu0 0
        %5816 = vmatprep.subr.bf16.mxu0 0
        %5817 = vmatpush1.bf16.msra.mxu0 0
        %5818 = vmatprep.subr.bf16.mxu0 0
        %5819 = vmatpush1.bf16.msra.mxu0 0
        %5820 = vmatprep.subr.bf16.mxu0 0
        %5821 = vmatpush1.bf16.msra.mxu0 0
        %5822 = vmatprep.subr.bf16.mxu0 0
        %5823 = vmatpush1.bf16.msra.mxu0 0
        %5824 = vmatprep.subr.bf16.mxu0 0
        %5825 = vmatpush1.bf16.msra.mxu0 0
        %5826 = vmatprep.subr.bf16.mxu0 0
        %5827 = vmatpush1.bf16.msra.mxu0 0
        %5828 = vmatprep.subr.bf16.mxu0 0
        %5829 = vmatpush1.bf16.msra.mxu0 0
        %5830 = vmatprep.subr.bf16.mxu0 0
        %5831 = vmatpush1.bf16.msra.mxu0 0
        %5832 = vmatprep.subr.bf16.mxu0 0
        %5833 = vmatpush1.bf16.msra.mxu0 0
        %5834 = vmatprep.subr.bf16.mxu0 0
        %5835 = vmatpush1.bf16.msra.mxu0 0
        %5836 = vmatprep.subr.bf16.mxu0 0
        %5837 = vmatpush1.bf16.msra.mxu0 0
        %5838 = vmatprep.subr.bf16.mxu0 0
        %5839 = vmatpush1.bf16.msra.mxu0 0
        %5840 = vmatprep.mubr.bf16.mxu0 0
        %5841 = vmatmul.mubr.bf16.gmra.mrb[0].mxu0 %v5776
        %v5842 = vpop.f32.mrb[0].mxu0
        %v5843 = vadd.f32 %v5755, %v5842
        %v5844 = vpop.f32.mrb[0].mxu0
        %v5845 = vpop.f32.mrb[0].mxu0
        %v5846 = vadd.f32 %v5755, %v5845
        %v5847 = vpop.f32.mrb[0].mxu0
        %5848 = vmatprep.mubr.bf16.mxu0 0
        %5849 = vmatmul.mubr.bf16.gmra.mrb[0].mxu0 %v5778
        %v5850 = vpop.f32.mrb[0].mxu0
        %v5851 = vadd.f32 %v5755, %v5850
        %v5852 = vpop.f32.mrb[0].mxu0
        %v5853 = vpop.f32.mrb[0].mxu0
        %v5854 = vadd.f32 %v5755, %v5853
        %v5855 = vpop.f32.mrb[0].mxu0
        %5856 = vmatprep.mubr.bf16.mxu0 0
        %5857 = vmatmul.mubr.bf16.gmra.mrb[0].mxu0 %v5780
        %v5858 = vpop.f32.mrb[0].mxu0
        %v5859 = vadd.f32 %v5755, %v5858
        %v5860 = vpop.f32.mrb[0].mxu0
        %v5861 = vpop.f32.mrb[0].mxu0
        %v5862 = vadd.f32 %v5755, %v5861
        %v5863 = vpop.f32.mrb[0].mxu0
        %5864 = vmatprep.mubr.bf16.mxu0 0
        %5865 = vmatmul.mubr.bf16.gmra.mrb[0].mxu0 %v5782
        %v5866 = vpop.f32.mrb[0].mxu0
        %v5867 = vadd.f32 %v5755, %v5866
        %v5868 = vpop.f32.mrb[0].mxu0
        %v5869 = vpop.f32.mrb[0].mxu0
        %v5870 = vadd.f32 %v5755, %v5869
        %v5871 = vpop.f32.mrb[0].mxu0
        %5872 = vmatprep.mubr.bf16.mxu0 0
        %5873 = vmatmul.mubr.bf16.gmra.mrb[0].mxu0 %v5784
        %v5874 = vpop.f32.mrb[0].mxu0
        %v5875 = vadd.f32 %v5755, %v5874
        %v5876 = vpop.f32.mrb[0].mxu0
        %v5877 = vpop.f32.mrb[0].mxu0
        %v5878 = vadd.f32 %v5755, %v5877
        %v5879 = vpop.f32.mrb[0].mxu0
        %5880 = vmatprep.mubr.bf16.mxu0 0
        %5881 = vmatmul.mubr.bf16.gmra.mrb[0].mxu0 %v5786
        %v5882 = vpop.f32.mrb[0].mxu0
        %v5883 = vadd.f32 %v5755, %v5882
        %v5884 = vpop.f32.mrb[0].mxu0
        %v5885 = vpop.f32.mrb[0].mxu0
        %v5886 = vadd.f32 %v5755, %v5885
        %v5887 = vpop.f32.mrb[0].mxu0
        %5888 = vmatprep.mubr.bf16.mxu0 0
        %5889 = vmatmul.mubr.bf16.gmra.mrb[0].mxu0 %v5788
        %v5890 = vpop.f32.mrb[0].mxu0
        %v5891 = vadd.f32 %v5755, %v5890
        %v5892 = vpop.f32.mrb[0].mxu0
        %v5893 = vpop.f32.mrb[0].mxu0
        %v5894 = vadd.f32 %v5755, %v5893
        %v5895 = vpop.f32.mrb[0].mxu0
        %5896 = vmatprep.mubr.bf16.mxu0 0
        %5897 = vmatmul.mubr.bf16.gmra.mrb[0].mxu0 %v5790
        %v5898 = vpop.f32.mrb[0].mxu0
        %v5899 = vadd.f32 %v5755, %v5898
        %v5900 = vpop.f32.mrb[0].mxu0
        %v5901 = vpop.f32.mrb[0].mxu0
        %v5902 = vadd.f32 %v5755, %v5901
        %v5903 = vpop.f32.mrb[0].mxu0
        %5904 = vmatprep.mubr.bf16.mxu0 0
        %5905 = vmatmul.mubr.bf16.gmra.mrb[0].mxu0 %v5792
        %v5906 = vpop.f32.mrb[0].mxu0
        %v5907 = vadd.f32 %v5755, %v5906
        %v5908 = vpop.f32.mrb[0].mxu0
        %v5909 = vpop.f32.mrb[0].mxu0
        %v5910 = vadd.f32 %v5755, %v5909
        %v5911 = vpop.f32.mrb[0].mxu0
        %5912 = vmatprep.mubr.bf16.mxu0 0
        %5913 = vmatmul.mubr.bf16.gmra.mrb[0].mxu0 %v5794
        %v5914 = vpop.f32.mrb[0].mxu0
        %v5915 = vadd.f32 %v5755, %v5914
        %v5916 = vpop.f32.mrb[0].mxu0
        %v5917 = vpop.f32.mrb[0].mxu0
        %v5918 = vadd.f32 %v5755, %v5917
        %v5919 = vpop.f32.mrb[0].mxu0
        %5920 = vmatprep.mubr.bf16.mxu0 0
        %5921 = vmatmul.mubr.bf16.gmra.mrb[0].mxu0 %v5796
        %v5922 = vpop.f32.mrb[0].mxu0
        %v5923 = vadd.f32 %v5755, %v5922
        %v5924 = vpop.f32.mrb[0].mxu0
        %v5925 = vpop.f32.mrb[0].mxu0
        %v5926 = vadd.f32 %v5755, %v5925
        %v5927 = vpop.f32.mrb[0].mxu0
        %5928 = vmatprep.mubr.bf16.mxu0 0
        %5929 = vmatmul.mubr.bf16.gmra.mrb[0].mxu0 %v5798
        %v5930 = vpop.f32.mrb[0].mxu0
        %v5931 = vadd.f32 %v5755, %v5930
        %v5932 = vpop.f32.mrb[0].mxu0
        %v5933 = vpop.f32.mrb[0].mxu0
        %v5934 = vadd.f32 %v5755, %v5933
        %v5935 = vpop.f32.mrb[0].mxu0
        %5936 = vmatprep.mubr.bf16.mxu0 0
        %5937 = vmatmul.mubr.bf16.gmra.mrb[0].mxu0 %v5800
        %v5938 = vpop.f32.mrb[0].mxu0
        %v5939 = vadd.f32 %v5755, %v5938
        %v5940 = vpop.f32.mrb[0].mxu0
        %v5941 = vpop.f32.mrb[0].mxu0
        %v5942 = vadd.f32 %v5755, %v5941
        %v5943 = vpop.f32.mrb[0].mxu0
        %5944 = vmatprep.mubr.bf16.mxu0 0
        %5945 = vmatmul.mubr.bf16.gmra.mrb[0].mxu0 %v5802
        %v5946 = vpop.f32.mrb[0].mxu0
        %v5947 = vadd.f32 %v5755, %v5946
        %v5948 = vpop.f32.mrb[0].mxu0
        %v5949 = vpop.f32.mrb[0].mxu0
        %v5950 = vadd.f32 %v5755, %v5949
        %v5951 = vpop.f32.mrb[0].mxu0
        %5952 = vmatprep.mubr.bf16.mxu0 0
        %5953 = vmatmul.mubr.bf16.gmra.mrb[0].mxu0 %v5804
        %v5954 = vpop.f32.mrb[0].mxu0
        %v5955 = vadd.f32 %v5755, %v5954
        %v5956 = vpop.f32.mrb[0].mxu0
        %v5957 = vpop.f32.mrb[0].mxu0
        %v5958 = vadd.f32 %v5755, %v5957
        %v5959 = vpop.f32.mrb[0].mxu0
        %5960 = vmatprep.mubr.bf16.mxu0 0
        %5961 = vmatmul.mubr.bf16.gmra.mrb[0].mxu0 %v5806
        %v5962 = vpop.f32.mrb[0].mxu0
        %v5963 = vadd.f32 %v5755, %v5962
        %v5964 = vpop.f32.mrb[0].mxu0
        %v5965 = vpop.f32.mrb[0].mxu0
        %v5966 = vadd.f32 %v5755, %v5965
        %v5967 = vpop.f32.mrb[0].mxu0
        %5968 = vdwg.mxu0
        %v5969 = vmax.f32 %v5843, 0.0
        %v5970 = vmax.f32 %v5846, 0.0
        %v5971 = vmax.f32 %v5851, 0.0
        %v5972 = vmax.f32 %v5854, 0.0
        %v5973 = vmax.f32 %v5859, 0.0
        %v5974 = vmax.f32 %v5862, 0.0
        %v5975 = vmax.f32 %v5867, 0.0
        %v5976 = vmax.f32 %v5870, 0.0
        %v5977 = vmax.f32 %v5875, 0.0
        %v5978 = vmax.f32 %v5878, 0.0
        %v5979 = vmax.f32 %v5883, 0.0
        %v5980 = vmax.f32 %v5886, 0.0
        %v5981 = vmax.f32 %v5891, 0.0
        %v5982 = vmax.f32 %v5894, 0.0
        %v5983 = vmax.f32 %v5899, 0.0
        %v5984 = vmax.f32 %v5902, 0.0
        %v5985 = vmax.f32 %v5907, 0.0
        %v5986 = vmax.f32 %v5910, 0.0
        %v5987 = vmax.f32 %v5915, 0.0
        %v5988 = vmax.f32 %v5918, 0.0
        %v5989 = vmax.f32 %v5923, 0.0
        %v5990 = vmax.f32 %v5926, 0.0
        %v5991 = vmax.f32 %v5931, 0.0
        %v5992 = vmax.f32 %v5934, 0.0
        %v5993 = vmax.f32 %v5939, 0.0
        %v5994 = vmax.f32 %v5942, 0.0
        %v5995 = vmax.f32 %v5947, 0.0
        %v5996 = vmax.f32 %v5950, 0.0
        %v5997 = vmax.f32 %v5955, 0.0
        %v5998 = vmax.f32 %v5958, 0.0
        %v5999 = vmax.f32 %v5963, 0.0
        %v6000 = vmax.f32 %v5966, 0.0
        %v6001 = vpack.c.bf16 %v5970, %v5969
        %v6002 = vpack.c.bf16 %v5972, %v5971
        %v6003 = vpack.c.bf16 %v5974, %v5973
        %v6004 = vpack.c.bf16 %v5976, %v5975
        %v6005 = vpack.c.bf16 %v5978, %v5977
        %v6006 = vpack.c.bf16 %v5980, %v5979
        %v6007 = vpack.c.bf16 %v5982, %v5981
        %v6008 = vpack.c.bf16 %v5984, %v5983
        %v6009 = vpack.c.bf16 %v5986, %v5985
        %v6010 = vpack.c.bf16 %v5988, %v5987
        %v6011 = vpack.c.bf16 %v5990, %v5989
        %v6012 = vpack.c.bf16 %v5992, %v5991
        %v6013 = vpack.c.bf16 %v5994, %v5993
        %v6014 = vpack.c.bf16 %v5996, %v5995
        %v6015 = vpack.c.bf16 %v5998, %v5997
        %v6016 = vpack.c.bf16 %v6000, %v5999
        %v6033 = vunpack.c.l.b16 %v6001
        %v6034 = vunpack.c.h.b16 %v6001
        %v6035 = vunpack.c.l.b16 %v6002
        %v6036 = vunpack.c.h.b16 %v6002
        %v6037 = vunpack.c.l.b16 %v6003
        %v6038 = vunpack.c.h.b16 %v6003
        %v6039 = vunpack.c.l.b16 %v6004
        %v6040 = vunpack.c.h.b16 %v6004
        %v6041 = vunpack.c.l.b16 %v6005
        %v6042 = vunpack.c.h.b16 %v6005
        %v6043 = vunpack.c.l.b16 %v6006
        %v6044 = vunpack.c.h.b16 %v6006
        %v6045 = vunpack.c.l.b16 %v6007
        %v6046 = vunpack.c.h.b16 %v6007
        %v6047 = vunpack.c.l.b16 %v6008
        %v6048 = vunpack.c.h.b16 %v6008
        %v6049 = vunpack.c.l.b16 %v6009
        %v6050 = vunpack.c.h.b16 %v6009
        %v6051 = vunpack.c.l.b16 %v6010
        %v6052 = vunpack.c.h.b16 %v6010
        %v6053 = vunpack.c.l.b16 %v6011
        %v6054 = vunpack.c.h.b16 %v6011
        %v6055 = vunpack.c.l.b16 %v6012
        %v6056 = vunpack.c.h.b16 %v6012
        %v6057 = vunpack.c.l.b16 %v6013
        %v6058 = vunpack.c.h.b16 %v6013
        %v6059 = vunpack.c.l.b16 %v6014
        %v6060 = vunpack.c.h.b16 %v6014
        %v6061 = vunpack.c.l.b16 %v6015
        %v6062 = vunpack.c.h.b16 %v6015
        %v6063 = vunpack.c.l.b16 %v6016
        %v6064 = vunpack.c.h.b16 %v6016
        %v6065 = vpack.c.b16 %v6033, %v6033
        %v6066 = vpack.c.b16 %v6034, %v6034
        %v6067 = vpack.c.b16 %v6035, %v6035
        %v6068 = vpack.c.b16 %v6036, %v6036
        %v6069 = vpack.c.b16 %v6037, %v6037
        %v6070 = vpack.c.b16 %v6038, %v6038
        %v6071 = vpack.c.b16 %v6039, %v6039
        %v6072 = vpack.c.b16 %v6040, %v6040
        %v6073 = vpack.c.b16 %v6041, %v6041
        %v6074 = vpack.c.b16 %v6042, %v6042
        %v6075 = vpack.c.b16 %v6043, %v6043
        %v6076 = vpack.c.b16 %v6044, %v6044
        %v6077 = vpack.c.b16 %v6045, %v6045
        %v6078 = vpack.c.b16 %v6046, %v6046
        %v6079 = vpack.c.b16 %v6047, %v6047
        %v6080 = vpack.c.b16 %v6048, %v6048
        %v6081 = vpack.c.b16 %v6049, %v6049
        %v6082 = vpack.c.b16 %v6050, %v6050
        %v6083 = vpack.c.b16 %v6051, %v6051
        %v6084 = vpack.c.b16 %v6052, %v6052
        %v6085 = vpack.c.b16 %v6053, %v6053
        %v6086 = vpack.c.b16 %v6054, %v6054
        %v6087 = vpack.c.b16 %v6055, %v6055
        %v6088 = vpack.c.b16 %v6056, %v6056
        %v6089 = vpack.c.b16 %v6057, %v6057
        %v6090 = vpack.c.b16 %v6058, %v6058
        %v6091 = vpack.c.b16 %v6059, %v6059
        %v6092 = vpack.c.b16 %v6060, %v6060
        %v6093 = vpack.c.b16 %v6061, %v6061
        %v6094 = vpack.c.b16 %v6062, %v6062
        %v6095 = vpack.c.b16 %v6063, %v6063
        %v6096 = vpack.c.b16 %v6064, %v6064
        %6129 = vst [vmem:[%s177] sm:$0xf] %v6065
        %6130 = vst [vmem:[%s177 + $0x4] sm:$0xf] %v6066
        %6131 = vst [vmem:[%s177 + $0x8] sm:$0xf] %v6067
        %6132 = vst [vmem:[%s177 + $0xc] sm:$0xf] %v6068
        %6133 = vst [vmem:[%s177 + $0x10] sm:$0xf] %v6069
        %6134 = vst [vmem:[%s177 + $0x14] sm:$0xf] %v6070
        %6135 = vst [vmem:[%s177 + $0x18] sm:$0xf] %v6071
        %6136 = vst [vmem:[%s177 + $0x1c] sm:$0xf] %v6072
        %6137 = vst [vmem:[%s177 + $0x20] sm:$0xf] %v6073
        %6138 = vst [vmem:[%s177 + $0x24] sm:$0xf] %v6074
        %6139 = vst [vmem:[%s177 + $0x28] sm:$0xf] %v6075
        %6140 = vst [vmem:[%s177 + $0x2c] sm:$0xf] %v6076
        %6141 = vst [vmem:[%s177 + $0x30] sm:$0xf] %v6077
        %6142 = vst [vmem:[%s177 + $0x34] sm:$0xf] %v6078
        %6143 = vst [vmem:[%s177 + $0x38] sm:$0xf] %v6079
        %6144 = vst [vmem:[%s177 + $0x3c] sm:$0xf] %v6080
        %6145 = vst [vmem:[%s177 + $0x40] sm:$0xf] %v6081
        %6146 = vst [vmem:[%s177 + $0x44] sm:$0xf] %v6082
        %6147 = vst [vmem:[%s177 + $0x48] sm:$0xf] %v6083
        %6148 = vst [vmem:[%s177 + $0x4c] sm:$0xf] %v6084
        %6149 = vst [vmem:[%s177 + $0x50] sm:$0xf] %v6085
        %6150 = vst [vmem:[%s177 + $0x54] sm:$0xf] %v6086
        %6151 = vst [vmem:[%s177 + $0x58] sm:$0xf] %v6087
        %6152 = vst [vmem:[%s177 + $0x5c] sm:$0xf] %v6088
        %6153 = vst [vmem:[%s177 + $0x60] sm:$0xf] %v6089
        %6154 = vst [vmem:[%s177 + $0x64] sm:$0xf] %v6090
        %6155 = vst [vmem:[%s177 + $0x68] sm:$0xf] %v6091
        %6156 = vst [vmem:[%s177 + $0x6c] sm:$0xf] %v6092
        %6157 = vst [vmem:[%s177 + $0x70] sm:$0xf] %v6093
        %6158 = vst [vmem:[%s177 + $0x74] sm:$0xf] %v6094
        %6159 = vst [vmem:[%s177 + $0x78] sm:$0xf] %v6095
        %6160 = vst [vmem:[%s177 + $0x7c] sm:$0xf] %v6096
        %s6161 = sand.u32 %s107, 1
        %s6162 = scalar_lea.sflag [#allocation3], %s6161
        %s6163 = sand.u32 %s107, 1
        %s6164 = smul.addr %s6163, 128
        %s6165 = scalar_lea.vmem [#allocation2], %s6164
        // Predicated region
        $region33: #{tpu_custom_call.1} parent=31 // pred_check
          %p6166 = pneg %p117
        $region34: #{tpu_custom_call.1} parent=31 // pred_check_branch
          %6168 = sbr.rel (%p6166) target = $region36
        $region35: #{tpu_custom_call.1} parent=31 // pred_region
          %s6169 = smul.u32 32, %s22
          %s6171 = ssub.s32 2048, 2048
          %6172 = vsyncadd %s6162, %s6171
          %s6173 = smul.addr %s21, 32
          %s6174 = sadd.s32 %s6169, %s6173
          %s6175 = smul.addr %s6174, 64
          %s6176 = scalar_lea.hbm %s3, %s6175
          %s6177 = sshll.u32 %s6165, 4
          %s6178 = int_to_ptr.vmem [resolvable:$true] %s6177
          %6183 = dma.vmem_to_hbm [thread:$0]  %s6178, 2048, %s6176, %s6162, 64, 64, 4
        $region36: #{tpu_custom_call.1} parent=31 // pred_fallthru
          _
      $region32: #{tpu_custom_call.1} parent=5 // pred_fallthru
        _
      %p6184 = scmp.le.s32.totalorder 2, %s12
      // Predicated region
      $region37: #{tpu_custom_call.1} parent=5 // pred_check
        %p6185 = pneg %p6184
      $region38: #{tpu_custom_call.1} parent=5 // pred_check_branch
        %6187 = sbr.rel (%p6185) target = $region40
      $region39: #{tpu_custom_call.1} parent=5 // pred_region
        %s6188 = ssub.s32 %s12, 2
        // Predicated region
        $region41: #{tpu_custom_call.1} parent=39 // pred_check
          %p6189 = pneg %p123
        $region42: #{tpu_custom_call.1} parent=39 // pred_check_branch
          %6191 = sbr.rel (%p6189) target = $region44
        $region43: #{tpu_custom_call.1} parent=39 // pred_region
          %s6192 = sand.u32 %s108, 1
          %s6193 = scalar_lea.sflag [#allocation3], %s6192
          %s6194 = sand.u32 %s108, 1
          %s6195 = smul.addr %s6194, 128
          %s6196 = scalar_lea.vmem [#allocation2], %s6195
          %6197 = dma.done %s6193, 2048
        $region44: #{tpu_custom_call.1} parent=39 // pred_fallthru
          _
      $region40: #{tpu_custom_call.1} parent=5 // pred_fallthru
        _
    $region6: #{tpu_custom_call.1} parent=1 // loop_footer
      %s16 = sadd.s32 1, %s12
    $region7: #{tpu_custom_call.1} parent=1 // loop_footer_branch
      %11 = sbr.rel target = $region3
    $region8: #{tpu_custom_call.1} parent=1 // loop_exit
      _
    %6198 = vsyncpa [#allocation3], 1
    %s6199 = scalar_lea.sflag [#allocation3], 1
    %6200 = vsyncpa %s6199, 1

</llo_original>
